<compile_context>
chip_gen: v7x
topology: tpu7x:2x2x1
jax: 0.10.0
libtpu: 0.0.40
codegen_flags: <defaults>
</compile_context>

<pallas_src>
import functools
import math

import jax
import jax.numpy as jnp
from jax.experimental import pallas as pl
from jax.experimental.pallas import tpu as pltpu

NEG_BIG = -9000000000000000.0      # same padding constant the PyTorch forward uses
MXU_DTYPE = jnp.bfloat16           # MXU operand dtype (accumulation stays f32)
LANE = 128                         # lane-dense feature padding
SUBLANE = 8


def _round_up(a, b):
    return (a + b - 1) // b * b


def _row_tile(rows, cap):
    """Row tile: multiple of 8, <= cap, and >=2 grid steps when possible (v7x megacore)."""
    t = min(cap, _round_up(max(1, -(-rows // 2)), SUBLANE))
    return max(t, SUBLANE)


def _vmem_limit_bytes():
    """~75% of this generation's VMEM capacity, capped at 100 MiB (48 MiB v7x, 96 MiB v5e/v6e)."""
    cap = 64 * 1024 * 1024
    try:
        info_cap = int(pltpu.get_tpu_info().vmem_capacity_bytes)
        if info_cap > 0:
            cap = info_cap
    except Exception:
        pass
    return int(min(cap * 3 // 4, 100 * 1024 * 1024))


# --------------------------------------------------------------------------- #
# Batched gather + weighted sum:                                               #
#   dst[r, :] = sum_k w[r, k] * src[idx[row0_global + r, k], :]                #
# processed 8 output rows at a time: per k, 8 independent dynamic row loads    #
# are assembled into an (8, F) tile (independent SMEM-index -> vld chains),    #
# FMA'd with an (8,1) weight column, and each batch ends with one unmasked     #
# full-lane (8, F_pad) store.                                                  #
# --------------------------------------------------------------------------- #
def _gather_rows_batched(idx_ref, w_ref, src_ref, dst_ref, row0_global, K, t_rows, F,
                         relu=False):
    @pl.loop(0, t_rows // SUBLANE)
    def _(b):
        r0 = pl.multiple_of(b * SUBLANE, SUBLANE)
        wblk = w_ref[pl.ds(r0, SUBLANE), :]                     # (8, K) f32 weights
        acc = jnp.zeros((SUBLANE, F), jnp.float32)
        for k in range(K):                                      # K is small & static
            rows = []
            for r in range(SUBLANE):                            # 8 independent chains
                idx = idx_ref[(row0_global + r0 + r) * K + k]   # SMEM scalar index
                rows.append(src_ref[pl.ds(idx, 1), :])          # dynamic 1-row gather
            gath = jnp.concatenate(rows, axis=0)                # (8, F)
            acc = acc + wblk[:, k:k + 1] * gath                 # full-vreg FMA
        if relu:
            acc = jnp.maximum(acc, 0.0)
        dst_ref[pl.ds(r0, SUBLANE), :] = acc                    # unmasked (8, F) store


# --------------------------------------------------------------------------- #
# Fused edge stage:                                                            #
#   step 0: xp = (x @ W1) * inter_nw  -> VMEM-resident scratch (chunked dots)  #
#   each step: edge tile = relu(gather(xp, seq, nor)); e1 tile = edge @ W2     #
# --------------------------------------------------------------------------- #
def edge_kernel(K1, CN, seq_ref, inter_ref, x_ref, w1_ref, nor_ref, w2_ref,
                e1_ref, xp_scr, edge_scr):
    i = pl.program_id(0)
    t_rows, F = edge_scr.shape
    n_pad = xp_scr.shape[0]

    @pl.when(i == 0)
    def _():
        inter = inter_ref[0, 0]

        @pl.loop(0, n_pad // CN)
        def _(c):
            r0 = pl.multiple_of(c * CN, CN)
            xp_scr[pl.ds(r0, CN), :] = (
                jnp.dot(x_ref[pl.ds(r0, CN), :], w1_ref[...],
                        preferred_element_type=jnp.float32) * inter)

    # TODO(synk): F.dropout on `edge` is identity in eval mode; training-mode dropout
    # is not applied.
    _gather_rows_batched(seq_ref, nor_ref, xp_scr, edge_scr,
                         i * t_rows, K1, t_rows, F, relu=True)

    e1_ref[...] = jnp.dot(edge_scr[...].astype(MXU_DTYPE), w2_ref[...],
                          preferred_element_type=jnp.float32)


# --------------------------------------------------------------------------- #
# Node stage: node tile = gather(e1, useq, unor).                              #
# --------------------------------------------------------------------------- #
def node_kernel(K2, useq_ref, unor_ref, e1_ref, node_ref):
    i = pl.program_id(0)
    t_rows, F = node_ref.shape
    _gather_rows_batched(useq_ref, unor_ref, e1_ref, node_ref,
                         i * t_rows, K2, t_rows, F, relu=False)
    # TODO(synk): final F.dropout skipped (eval-mode identity).


def hgnn_layer_forward(x, seq, useq, text_vector, w1, w2, w3):
    """Pallas equivalent of HGNN_layer.forward (eval mode).

    `text_vector` is accepted for signature parity but ignored, exactly as in
    the PyTorch forward (it is overwritten by weight3[0]).
    """
    del text_vector
    f32 = jnp.float32
    N, Fin = x.shape
    Fout = w1.shape[1]
    E, K1 = seq.shape
    N2, K2 = useq.shape

    # Lane-dense feature padding and row tiles (multiples of 8, >=2 grid steps).
    F_pad = _round_up(Fout, LANE)
    CN = min(512, _round_up(N, SUBLANE))           # xp row-chunk inside edge kernel
    N_pad = _round_up(N, CN)
    t_e = _row_tile(E, 512);   E_pad = _round_up(E, t_e)
    t_n2 = _row_tile(N2, 512); N2_pad = _round_up(N2, t_n2)

    # inter_nw = mean cosine similarity of W3 rows vs W3[0] (tiny; plain XLA).
    w3f = w3.astype(f32)
    tv = w3f[0]
    cosine = (w3f @ tv) / (jnp.linalg.norm(tv) * jnp.linalg.norm(w3f, axis=1))
    inter = jnp.mean(cosine).reshape(1, 1).astype(f32)

    # Softmax weights precomputed in the wrapper (exactly the reference formula).
    nor = jax.nn.softmax(jnp.where(seq > 0, 1.0, NEG_BIG).astype(f32), axis=1)
    unor = jax.nn.softmax(jnp.where(useq > 0, 1.0, NEG_BIG).astype(f32), axis=1)

    # Padded operands: x directly in bf16, zero weights on padded rows.
    x_p = jnp.zeros((N_pad, Fin), MXU_DTYPE).at[:N, :].set(x.astype(MXU_DTYPE))
    w1_p = jnp.zeros((Fin, F_pad), MXU_DTYPE).at[:, :Fout].set(w1.astype(MXU_DTYPE))
    w2_p = jnp.zeros((F_pad, F_pad), MXU_DTYPE).at[:Fout, :Fout].set(w2.astype(MXU_DTYPE))
    nor_p = jnp.zeros((E_pad, K1), f32).at[:E, :].set(nor)
    unor_p = jnp.zeros((N2_pad, K2), f32).at[:N2, :].set(unor)
    seq_p = jnp.zeros((E_pad, K1), jnp.int32).at[:E, :].set(seq.astype(jnp.int32)).reshape(-1)
    useq_p = jnp.zeros((N2_pad, K2), jnp.int32).at[:N2, :].set(useq.astype(jnp.int32)).reshape(-1)

    smem = pl.BlockSpec(memory_space=pltpu.MemorySpace.SMEM)

    def resident(shape):   # grid-invariant input: single-buffered, no re-DMA
        return pl.BlockSpec(shape, lambda i: (0, 0), pipeline_mode=pl.Buffered(1))

    vmem_limit = _vmem_limit_bytes()

    # Stage 1 (fused xp + edge): per hyperedge-row tile.
    # TODO(synk): for graphs where xp/e1 no longer fit VMEM, switch to HBM-resident
    # tables (memory_space=pl.ANY) with a manual make_async_copy gather pipeline.
    e1 = pl.pallas_call(
        functools.partial(edge_kernel, K1, CN),
        out_shape=jax.ShapeDtypeStruct((E_pad, F_pad), f32),
        grid=(E_pad // t_e,),
        in_specs=[smem,                                        # seq indices (flat, SMEM)
                  smem,                                        # inter_nw scalar (SMEM)
                  resident((N_pad, Fin)),                      # x (bf16, resident)
                  resident((Fin, F_pad)),                      # W1 (bf16, resident)
                  pl.BlockSpec((t_e, K1), lambda i: (i, 0)),   # nor weight tile
                  resident((F_pad, F_pad))],                   # W2 (bf16, resident)
        out_specs=pl.BlockSpec((t_e, F_pad), lambda i: (i, 0)),
        scratch_shapes=[pltpu.VMEM((N_pad, F_pad), f32),       # xp (persists across grid)
                        pltpu.VMEM((t_e, F_pad), f32)],        # edge tile
        compiler_params=pltpu.CompilerParams(
            dimension_semantics=("arbitrary",),                # step-0 xp init ordering
            vmem_limit_bytes=vmem_limit),
    )(seq_p, inter, x_p, w1_p, nor_p, w2_p)

    # Stage 2 (node): per node-row tile; e1 stays VMEM-resident, single-buffered.
    node_full = pl.pallas_call(
        functools.partial(node_kernel, K2),
        out_shape=jax.ShapeDtypeStruct((N2_pad, F_pad), f32),
        grid=(N2_pad // t_n2,),
        in_specs=[smem,                                        # useq indices (flat, SMEM)
                  pl.BlockSpec((t_n2, K2), lambda i: (i, 0)),  # unor weight tile
                  resident((E_pad, F_pad))],                   # e1 (f32, resident)
        out_specs=pl.BlockSpec((t_n2, F_pad), lambda i: (i, 0)),
        compiler_params=pltpu.CompilerParams(
            dimension_semantics=("parallel",),
            vmem_limit_bytes=vmem_limit),
    )(useq_p, unor_p, e1)

    return node_full[:N2, :Fout]


def hgnn_reference(x, seq, useq, w1, w2, w3):
    """Pure-JAX reference of the PyTorch forward (eval mode), for validation."""
    tv = w3[0]
    cos = (w3 @ tv) / (jnp.linalg.norm(tv) * jnp.linalg.norm(w3, axis=1))
    inter = jnp.mean(cos)
    xp = (x @ w1) * inter
    nor = jax.nn.softmax(jnp.where(seq > 0, 1.0, NEG_BIG).astype(jnp.float32), axis=1)
    edge = jnp.einsum('abc,ab->ac', xp[seq], nor)
    edge = jax.nn.relu(edge)
    e1 = edge @ w2
    unor = jax.nn.softmax(jnp.where(useq > 0, 1.0, NEG_BIG).astype(jnp.float32), axis=1)
    return jnp.einsum('abc,ab->ac', e1[useq], unor)


if __name__ == "__main__":
    # Small, module-consistent shapes.
    N, Fin, Fout, T = 16, 32, 64, 16   # nodes, input_size, output_size, TextVector_size
    E, K1 = 12, 8                      # hyperedges, nodes-per-edge
    K2 = 8                             # edges-per-node

    key = jax.random.PRNGKey(0)
    k_x, k_seq, k_useq, k_w1, k_w2, k_w3, k_tv = jax.random.split(key, 7)

    x = jax.random.normal(k_x, (N, Fin), jnp.float32)
    seq = jax.random.randint(k_seq, (E, K1), 0, N).astype(jnp.int32)
    useq = jax.random.randint(k_useq, (N, K2), 0, E).astype(jnp.int32)
    text_vector = jax.random.normal(k_tv, (T,), jnp.float32)  # ignored by forward

    # reset_parameters(): U(-stdv, stdv), stdv = 1/sqrt(in_features).
    stdv = 1.0 / math.sqrt(Fin)
    w1 = jax.random.uniform(k_w1, (Fin, Fout), jnp.float32, -stdv, stdv)
    w2 = jax.random.uniform(k_w2, (Fout, Fout), jnp.float32, -stdv, stdv)
    w3 = jax.random.uniform(k_w3, (T, T), jnp.float32, -stdv, stdv)

    node = jax.jit(hgnn_layer_forward)(x, seq, useq, text_vector, w1, w2, w3)
    jax.block_until_ready(node)
    assert node.shape == (N, Fout) and node.dtype == jnp.float32

    ref = hgnn_reference(x, seq, useq, w1, w2, w3)
    rel_err = float(jnp.linalg.norm(node - ref) / jnp.maximum(jnp.linalg.norm(ref), 1e-6))
    assert rel_err < 5e-2, f"relative error too large: {rel_err}"
    print("KERNEL_OK")
</pallas_src>

<mosaic_0001>
module attributes {stable_mosaic.version = 11 : i64} {
  func.func @node_kernel(%arg0: i32, %arg1: memref<128xi32, #tpu.memory_space<smem>>, %arg2: memref<8x8xf32, #tpu.memory_space<vmem>>, %arg3: memref<16x128xf32, #tpu.memory_space<vmem>>, %arg4: memref<8x128xf32, #tpu.memory_space<vmem>>) attributes {dimension_semantics = [#tpu.dimension_semantics<parallel>], iteration_bounds = array<i64: 2>, scalar_prefetch = 0 : i64, scratch_operands = 0 : i64, tpu.core_type = #tpu.core_type<tc>, window_params = [{transform_indices = @transform_0, window_bounds = array<i64: 128>}, {transform_indices = @transform_1, window_bounds = array<i64: 8, 8>}, {pipeline_mode = #tpu.pipeline_mode<synchronous>, transform_indices = @transform_2, window_bounds = array<i64: 16, 128>}, {transform_indices = @transform_3, window_bounds = array<i64: 8, 128>}]} {
    %c8_i32 = arith.constant 8 : i32
    %0 = arith.muli %arg0, %c8_i32 : i32
    %c0_i32 = arith.constant 0 : i32
    %c1_i32 = arith.constant 1 : i32
    %1 = arith.muli %c0_i32, %c1_i32 : i32
    %c0_i32_0 = arith.constant 0 : i32
    %2 = arith.addi %c0_i32_0, %1 : i32
    %c8_i32_1 = arith.constant 8 : i32
    %3 = arith.muli %2, %c8_i32_1 : i32
    %4 = tpu.assume_multiple %3, 8 : i32
    %5 = arith.index_cast %4 : i32 to index
    %c0 = arith.constant 0 : index
    %6 = vector.load %arg2[%5, %c0] : memref<8x8xf32, #tpu.memory_space<vmem>>, vector<8x8xf32>
    %cst = arith.constant 0.000000e+00 : f32
    %7 = vector.broadcast %cst : f32 to vector<8x128xf32>
    %8 = arith.addi %0, %4 : i32
    %c0_i32_2 = arith.constant 0 : i32
    %9 = arith.addi %8, %c0_i32_2 : i32
    %c8_i32_3 = arith.constant 8 : i32
    %10 = arith.muli %9, %c8_i32_3 : i32
    %c0_i32_4 = arith.constant 0 : i32
    %11 = arith.addi %10, %c0_i32_4 : i32
    %12 = arith.index_cast %11 : i32 to index
    %13 = memref.load %arg1[%12] : memref<128xi32, #tpu.memory_space<smem>>
    %14 = arith.index_cast %13 : i32 to index
    %c0_5 = arith.constant 0 : index
    %15 = vector.load %arg3[%14, %c0_5] : memref<16x128xf32, #tpu.memory_space<vmem>>, vector<1x128xf32>
    %16 = arith.addi %0, %4 : i32
    %c1_i32_6 = arith.constant 1 : i32
    %17 = arith.addi %16, %c1_i32_6 : i32
    %c8_i32_7 = arith.constant 8 : i32
    %18 = arith.muli %17, %c8_i32_7 : i32
    %c0_i32_8 = arith.constant 0 : i32
    %19 = arith.addi %18, %c0_i32_8 : i32
    %20 = arith.index_cast %19 : i32 to index
    %21 = memref.load %arg1[%20] : memref<128xi32, #tpu.memory_space<smem>>
    %22 = arith.index_cast %21 : i32 to index
    %c0_9 = arith.constant 0 : index
    %23 = vector.load %arg3[%22, %c0_9] : memref<16x128xf32, #tpu.memory_space<vmem>>, vector<1x128xf32>
    %24 = arith.addi %0, %4 : i32
    %c2_i32 = arith.constant 2 : i32
    %25 = arith.addi %24, %c2_i32 : i32
    %c8_i32_10 = arith.constant 8 : i32
    %26 = arith.muli %25, %c8_i32_10 : i32
    %c0_i32_11 = arith.constant 0 : i32
    %27 = arith.addi %26, %c0_i32_11 : i32
    %28 = arith.index_cast %27 : i32 to index
    %29 = memref.load %arg1[%28] : memref<128xi32, #tpu.memory_space<smem>>
    %30 = arith.index_cast %29 : i32 to index
    %c0_12 = arith.constant 0 : index
    %31 = vector.load %arg3[%30, %c0_12] : memref<16x128xf32, #tpu.memory_space<vmem>>, vector<1x128xf32>
    %32 = arith.addi %0, %4 : i32
    %c3_i32 = arith.constant 3 : i32
    %33 = arith.addi %32, %c3_i32 : i32
    %c8_i32_13 = arith.constant 8 : i32
    %34 = arith.muli %33, %c8_i32_13 : i32
    %c0_i32_14 = arith.constant 0 : i32
    %35 = arith.addi %34, %c0_i32_14 : i32
    %36 = arith.index_cast %35 : i32 to index
    %37 = memref.load %arg1[%36] : memref<128xi32, #tpu.memory_space<smem>>
    %38 = arith.index_cast %37 : i32 to index
    %c0_15 = arith.constant 0 : index
    %39 = vector.load %arg3[%38, %c0_15] : memref<16x128xf32, #tpu.memory_space<vmem>>, vector<1x128xf32>
    %40 = arith.addi %0, %4 : i32
    %c4_i32 = arith.constant 4 : i32
    %41 = arith.addi %40, %c4_i32 : i32
    %c8_i32_16 = arith.constant 8 : i32
    %42 = arith.muli %41, %c8_i32_16 : i32
    %c0_i32_17 = arith.constant 0 : i32
    %43 = arith.addi %42, %c0_i32_17 : i32
    %44 = arith.index_cast %43 : i32 to index
    %45 = memref.load %arg1[%44] : memref<128xi32, #tpu.memory_space<smem>>
    %46 = arith.index_cast %45 : i32 to index
    %c0_18 = arith.constant 0 : index
    %47 = vector.load %arg3[%46, %c0_18] : memref<16x128xf32, #tpu.memory_space<vmem>>, vector<1x128xf32>
    %48 = arith.addi %0, %4 : i32
    %c5_i32 = arith.constant 5 : i32
    %49 = arith.addi %48, %c5_i32 : i32
    %c8_i32_19 = arith.constant 8 : i32
    %50 = arith.muli %49, %c8_i32_19 : i32
    %c0_i32_20 = arith.constant 0 : i32
    %51 = arith.addi %50, %c0_i32_20 : i32
    %52 = arith.index_cast %51 : i32 to index
    %53 = memref.load %arg1[%52] : memref<128xi32, #tpu.memory_space<smem>>
    %54 = arith.index_cast %53 : i32 to index
    %c0_21 = arith.constant 0 : index
    %55 = vector.load %arg3[%54, %c0_21] : memref<16x128xf32, #tpu.memory_space<vmem>>, vector<1x128xf32>
    %56 = arith.addi %0, %4 : i32
    %c6_i32 = arith.constant 6 : i32
    %57 = arith.addi %56, %c6_i32 : i32
    %c8_i32_22 = arith.constant 8 : i32
    %58 = arith.muli %57, %c8_i32_22 : i32
    %c0_i32_23 = arith.constant 0 : i32
    %59 = arith.addi %58, %c0_i32_23 : i32
    %60 = arith.index_cast %59 : i32 to index
    %61 = memref.load %arg1[%60] : memref<128xi32, #tpu.memory_space<smem>>
    %62 = arith.index_cast %61 : i32 to index
    %c0_24 = arith.constant 0 : index
    %63 = vector.load %arg3[%62, %c0_24] : memref<16x128xf32, #tpu.memory_space<vmem>>, vector<1x128xf32>
    %64 = arith.addi %0, %4 : i32
    %c7_i32 = arith.constant 7 : i32
    %65 = arith.addi %64, %c7_i32 : i32
    %c8_i32_25 = arith.constant 8 : i32
    %66 = arith.muli %65, %c8_i32_25 : i32
    %c0_i32_26 = arith.constant 0 : i32
    %67 = arith.addi %66, %c0_i32_26 : i32
    %68 = arith.index_cast %67 : i32 to index
    %69 = memref.load %arg1[%68] : memref<128xi32, #tpu.memory_space<smem>>
    %70 = arith.index_cast %69 : i32 to index
    %c0_27 = arith.constant 0 : index
    %71 = vector.load %arg3[%70, %c0_27] : memref<16x128xf32, #tpu.memory_space<vmem>>, vector<1x128xf32>
    %72 = tpu.concatenate %15, %23, %31, %39, %47, %55, %63, %71 in 0 : vector<1x128xf32>, vector<1x128xf32>, vector<1x128xf32>, vector<1x128xf32>, vector<1x128xf32>, vector<1x128xf32>, vector<1x128xf32>, vector<1x128xf32> -> vector<8x128xf32>
    %73 = vector.extract_strided_slice %6 {offsets = [0, 0], sizes = [8, 1], strides = [1, 1]} : vector<8x8xf32> to vector<8x1xf32>
    %74 = vector.broadcast %73 : vector<8x1xf32> to vector<8x128xf32>
    %75 = arith.mulf %74, %72 : vector<8x128xf32>
    %76 = arith.addf %7, %75 : vector<8x128xf32>
    %77 = arith.addi %0, %4 : i32
    %c0_i32_28 = arith.constant 0 : i32
    %78 = arith.addi %77, %c0_i32_28 : i32
    %c8_i32_29 = arith.constant 8 : i32
    %79 = arith.muli %78, %c8_i32_29 : i32
    %c1_i32_30 = arith.constant 1 : i32
    %80 = arith.addi %79, %c1_i32_30 : i32
    %81 = arith.index_cast %80 : i32 to index
    %82 = memref.load %arg1[%81] : memref<128xi32, #tpu.memory_space<smem>>
    %83 = arith.index_cast %82 : i32 to index
    %c0_31 = arith.constant 0 : index
    %84 = vector.load %arg3[%83, %c0_31] : memref<16x128xf32, #tpu.memory_space<vmem>>, vector<1x128xf32>
    %85 = arith.addi %0, %4 : i32
    %c1_i32_32 = arith.constant 1 : i32
    %86 = arith.addi %85, %c1_i32_32 : i32
    %c8_i32_33 = arith.constant 8 : i32
    %87 = arith.muli %86, %c8_i32_33 : i32
    %c1_i32_34 = arith.constant 1 : i32
    %88 = arith.addi %87, %c1_i32_34 : i32
    %89 = arith.index_cast %88 : i32 to index
    %90 = memref.load %arg1[%89] : memref<128xi32, #tpu.memory_space<smem>>
    %91 = arith.index_cast %90 : i32 to index
    %c0_35 = arith.constant 0 : index
    %92 = vector.load %arg3[%91, %c0_35] : memref<16x128xf32, #tpu.memory_space<vmem>>, vector<1x128xf32>
    %93 = arith.addi %0, %4 : i32
    %c2_i32_36 = arith.constant 2 : i32
    %94 = arith.addi %93, %c2_i32_36 : i32
    %c8_i32_37 = arith.constant 8 : i32
    %95 = arith.muli %94, %c8_i32_37 : i32
    %c1_i32_38 = arith.constant 1 : i32
    %96 = arith.addi %95, %c1_i32_38 : i32
    %97 = arith.index_cast %96 : i32 to index
    %98 = memref.load %arg1[%97] : memref<128xi32, #tpu.memory_space<smem>>
    %99 = arith.index_cast %98 : i32 to index
    %c0_39 = arith.constant 0 : index
    %100 = vector.load %arg3[%99, %c0_39] : memref<16x128xf32, #tpu.memory_space<vmem>>, vector<1x128xf32>
    %101 = arith.addi %0, %4 : i32
    %c3_i32_40 = arith.constant 3 : i32
    %102 = arith.addi %101, %c3_i32_40 : i32
    %c8_i32_41 = arith.constant 8 : i32
    %103 = arith.muli %102, %c8_i32_41 : i32
    %c1_i32_42 = arith.constant 1 : i32
    %104 = arith.addi %103, %c1_i32_42 : i32
    %105 = arith.index_cast %104 : i32 to index
    %106 = memref.load %arg1[%105] : memref<128xi32, #tpu.memory_space<smem>>
    %107 = arith.index_cast %106 : i32 to index
    %c0_43 = arith.constant 0 : index
    %108 = vector.load %arg3[%107, %c0_43] : memref<16x128xf32, #tpu.memory_space<vmem>>, vector<1x128xf32>
    %109 = arith.addi %0, %4 : i32
    %c4_i32_44 = arith.constant 4 : i32
    %110 = arith.addi %109, %c4_i32_44 : i32
    %c8_i32_45 = arith.constant 8 : i32
    %111 = arith.muli %110, %c8_i32_45 : i32
    %c1_i32_46 = arith.constant 1 : i32
    %112 = arith.addi %111, %c1_i32_46 : i32
    %113 = arith.index_cast %112 : i32 to index
    %114 = memref.load %arg1[%113] : memref<128xi32, #tpu.memory_space<smem>>
    %115 = arith.index_cast %114 : i32 to index
    %c0_47 = arith.constant 0 : index
    %116 = vector.load %arg3[%115, %c0_47] : memref<16x128xf32, #tpu.memory_space<vmem>>, vector<1x128xf32>
    %117 = arith.addi %0, %4 : i32
    %c5_i32_48 = arith.constant 5 : i32
    %118 = arith.addi %117, %c5_i32_48 : i32
    %c8_i32_49 = arith.constant 8 : i32
    %119 = arith.muli %118, %c8_i32_49 : i32
    %c1_i32_50 = arith.constant 1 : i32
    %120 = arith.addi %119, %c1_i32_50 : i32
    %121 = arith.index_cast %120 : i32 to index
    %122 = memref.load %arg1[%121] : memref<128xi32, #tpu.memory_space<smem>>
    %123 = arith.index_cast %122 : i32 to index
    %c0_51 = arith.constant 0 : index
    %124 = vector.load %arg3[%123, %c0_51] : memref<16x128xf32, #tpu.memory_space<vmem>>, vector<1x128xf32>
    %125 = arith.addi %0, %4 : i32
    %c6_i32_52 = arith.constant 6 : i32
    %126 = arith.addi %125, %c6_i32_52 : i32
    %c8_i32_53 = arith.constant 8 : i32
    %127 = arith.muli %126, %c8_i32_53 : i32
    %c1_i32_54 = arith.constant 1 : i32
    %128 = arith.addi %127, %c1_i32_54 : i32
    %129 = arith.index_cast %128 : i32 to index
    %130 = memref.load %arg1[%129] : memref<128xi32, #tpu.memory_space<smem>>
    %131 = arith.index_cast %130 : i32 to index
    %c0_55 = arith.constant 0 : index
    %132 = vector.load %arg3[%131, %c0_55] : memref<16x128xf32, #tpu.memory_space<vmem>>, vector<1x128xf32>
    %133 = arith.addi %0, %4 : i32
    %c7_i32_56 = arith.constant 7 : i32
    %134 = arith.addi %133, %c7_i32_56 : i32
    %c8_i32_57 = arith.constant 8 : i32
    %135 = arith.muli %134, %c8_i32_57 : i32
    %c1_i32_58 = arith.constant 1 : i32
    %136 = arith.addi %135, %c1_i32_58 : i32
    %137 = arith.index_cast %136 : i32 to index
    %138 = memref.load %arg1[%137] : memref<128xi32, #tpu.memory_space<smem>>
    %139 = arith.index_cast %138 : i32 to index
    %c0_59 = arith.constant 0 : index
    %140 = vector.load %arg3[%139, %c0_59] : memref<16x128xf32, #tpu.memory_space<vmem>>, vector<1x128xf32>
    %141 = tpu.concatenate %84, %92, %100, %108, %116, %124, %132, %140 in 0 : vector<1x128xf32>, vector<1x128xf32>, vector<1x128xf32>, vector<1x128xf32>, vector<1x128xf32>, vector<1x128xf32>, vector<1x128xf32>, vector<1x128xf32> -> vector<8x128xf32>
    %142 = vector.extract_strided_slice %6 {offsets = [0, 1], sizes = [8, 1], strides = [1, 1]} : vector<8x8xf32> to vector<8x1xf32>
    %143 = vector.broadcast %142 : vector<8x1xf32> to vector<8x128xf32>
    %144 = arith.mulf %143, %141 : vector<8x128xf32>
    %145 = arith.addf %76, %144 : vector<8x128xf32>
    %146 = arith.addi %0, %4 : i32
    %c0_i32_60 = arith.constant 0 : i32
    %147 = arith.addi %146, %c0_i32_60 : i32
    %c8_i32_61 = arith.constant 8 : i32
    %148 = arith.muli %147, %c8_i32_61 : i32
    %c2_i32_62 = arith.constant 2 : i32
    %149 = arith.addi %148, %c2_i32_62 : i32
    %150 = arith.index_cast %149 : i32 to index
    %151 = memref.load %arg1[%150] : memref<128xi32, #tpu.memory_space<smem>>
    %152 = arith.index_cast %151 : i32 to index
    %c0_63 = arith.constant 0 : index
    %153 = vector.load %arg3[%152, %c0_63] : memref<16x128xf32, #tpu.memory_space<vmem>>, vector<1x128xf32>
    %154 = arith.addi %0, %4 : i32
    %c1_i32_64 = arith.constant 1 : i32
    %155 = arith.addi %154, %c1_i32_64 : i32
    %c8_i32_65 = arith.constant 8 : i32
    %156 = arith.muli %155, %c8_i32_65 : i32
    %c2_i32_66 = arith.constant 2 : i32
    %157 = arith.addi %156, %c2_i32_66 : i32
    %158 = arith.index_cast %157 : i32 to index
    %159 = memref.load %arg1[%158] : memref<128xi32, #tpu.memory_space<smem>>
    %160 = arith.index_cast %159 : i32 to index
    %c0_67 = arith.constant 0 : index
    %161 = vector.load %arg3[%160, %c0_67] : memref<16x128xf32, #tpu.memory_space<vmem>>, vector<1x128xf32>
    %162 = arith.addi %0, %4 : i32
    %c2_i32_68 = arith.constant 2 : i32
    %163 = arith.addi %162, %c2_i32_68 : i32
    %c8_i32_69 = arith.constant 8 : i32
    %164 = arith.muli %163, %c8_i32_69 : i32
    %c2_i32_70 = arith.constant 2 : i32
    %165 = arith.addi %164, %c2_i32_70 : i32
    %166 = arith.index_cast %165 : i32 to index
    %167 = memref.load %arg1[%166] : memref<128xi32, #tpu.memory_space<smem>>
    %168 = arith.index_cast %167 : i32 to index
    %c0_71 = arith.constant 0 : index
    %169 = vector.load %arg3[%168, %c0_71] : memref<16x128xf32, #tpu.memory_space<vmem>>, vector<1x128xf32>
    %170 = arith.addi %0, %4 : i32
    %c3_i32_72 = arith.constant 3 : i32
    %171 = arith.addi %170, %c3_i32_72 : i32
    %c8_i32_73 = arith.constant 8 : i32
    %172 = arith.muli %171, %c8_i32_73 : i32
    %c2_i32_74 = arith.constant 2 : i32
    %173 = arith.addi %172, %c2_i32_74 : i32
    %174 = arith.index_cast %173 : i32 to index
    %175 = memref.load %arg1[%174] : memref<128xi32, #tpu.memory_space<smem>>
    %176 = arith.index_cast %175 : i32 to index
    %c0_75 = arith.constant 0 : index
    %177 = vector.load %arg3[%176, %c0_75] : memref<16x128xf32, #tpu.memory_space<vmem>>, vector<1x128xf32>
    %178 = arith.addi %0, %4 : i32
    %c4_i32_76 = arith.constant 4 : i32
    %179 = arith.addi %178, %c4_i32_76 : i32
    %c8_i32_77 = arith.constant 8 : i32
    %180 = arith.muli %179, %c8_i32_77 : i32
    %c2_i32_78 = arith.constant 2 : i32
    %181 = arith.addi %180, %c2_i32_78 : i32
    %182 = arith.index_cast %181 : i32 to index
    %183 = memref.load %arg1[%182] : memref<128xi32, #tpu.memory_space<smem>>
    %184 = arith.index_cast %183 : i32 to index
    %c0_79 = arith.constant 0 : index
    %185 = vector.load %arg3[%184, %c0_79] : memref<16x128xf32, #tpu.memory_space<vmem>>, vector<1x128xf32>
    %186 = arith.addi %0, %4 : i32
    %c5_i32_80 = arith.constant 5 : i32
    %187 = arith.addi %186, %c5_i32_80 : i32
    %c8_i32_81 = arith.constant 8 : i32
    %188 = arith.muli %187, %c8_i32_81 : i32
    %c2_i32_82 = arith.constant 2 : i32
    %189 = arith.addi %188, %c2_i32_82 : i32
    %190 = arith.index_cast %189 : i32 to index
    %191 = memref.load %arg1[%190] : memref<128xi32, #tpu.memory_space<smem>>
    %192 = arith.index_cast %191 : i32 to index
    %c0_83 = arith.constant 0 : index
    %193 = vector.load %arg3[%192, %c0_83] : memref<16x128xf32, #tpu.memory_space<vmem>>, vector<1x128xf32>
    %194 = arith.addi %0, %4 : i32
    %c6_i32_84 = arith.constant 6 : i32
    %195 = arith.addi %194, %c6_i32_84 : i32
    %c8_i32_85 = arith.constant 8 : i32
    %196 = arith.muli %195, %c8_i32_85 : i32
    %c2_i32_86 = arith.constant 2 : i32
    %197 = arith.addi %196, %c2_i32_86 : i32
    %198 = arith.index_cast %197 : i32 to index
    %199 = memref.load %arg1[%198] : memref<128xi32, #tpu.memory_space<smem>>
    %200 = arith.index_cast %199 : i32 to index
    %c0_87 = arith.constant 0 : index
    %201 = vector.load %arg3[%200, %c0_87] : memref<16x128xf32, #tpu.memory_space<vmem>>, vector<1x128xf32>
    %202 = arith.addi %0, %4 : i32
    %c7_i32_88 = arith.constant 7 : i32
    %203 = arith.addi %202, %c7_i32_88 : i32
    %c8_i32_89 = arith.constant 8 : i32
    %204 = arith.muli %203, %c8_i32_89 : i32
    %c2_i32_90 = arith.constant 2 : i32
    %205 = arith.addi %204, %c2_i32_90 : i32
    %206 = arith.index_cast %205 : i32 to index
    %207 = memref.load %arg1[%206] : memref<128xi32, #tpu.memory_space<smem>>
    %208 = arith.index_cast %207 : i32 to index
    %c0_91 = arith.constant 0 : index
    %209 = vector.load %arg3[%208, %c0_91] : memref<16x128xf32, #tpu.memory_space<vmem>>, vector<1x128xf32>
    %210 = tpu.concatenate %153, %161, %169, %177, %185, %193, %201, %209 in 0 : vector<1x128xf32>, vector<1x128xf32>, vector<1x128xf32>, vector<1x128xf32>, vector<1x128xf32>, vector<1x128xf32>, vector<1x128xf32>, vector<1x128xf32> -> vector<8x128xf32>
    %211 = vector.extract_strided_slice %6 {offsets = [0, 2], sizes = [8, 1], strides = [1, 1]} : vector<8x8xf32> to vector<8x1xf32>
    %212 = vector.broadcast %211 : vector<8x1xf32> to vector<8x128xf32>
    %213 = arith.mulf %212, %210 : vector<8x128xf32>
    %214 = arith.addf %145, %213 : vector<8x128xf32>
    %215 = arith.addi %0, %4 : i32
    %c0_i32_92 = arith.constant 0 : i32
    %216 = arith.addi %215, %c0_i32_92 : i32
    %c8_i32_93 = arith.constant 8 : i32
    %217 = arith.muli %216, %c8_i32_93 : i32
    %c3_i32_94 = arith.constant 3 : i32
    %218 = arith.addi %217, %c3_i32_94 : i32
    %219 = arith.index_cast %218 : i32 to index
    %220 = memref.load %arg1[%219] : memref<128xi32, #tpu.memory_space<smem>>
    %221 = arith.index_cast %220 : i32 to index
    %c0_95 = arith.constant 0 : index
    %222 = vector.load %arg3[%221, %c0_95] : memref<16x128xf32, #tpu.memory_space<vmem>>, vector<1x128xf32>
    %223 = arith.addi %0, %4 : i32
    %c1_i32_96 = arith.constant 1 : i32
    %224 = arith.addi %223, %c1_i32_96 : i32
    %c8_i32_97 = arith.constant 8 : i32
    %225 = arith.muli %224, %c8_i32_97 : i32
    %c3_i32_98 = arith.constant 3 : i32
    %226 = arith.addi %225, %c3_i32_98 : i32
    %227 = arith.index_cast %226 : i32 to index
    %228 = memref.load %arg1[%227] : memref<128xi32, #tpu.memory_space<smem>>
    %229 = arith.index_cast %228 : i32 to index
    %c0_99 = arith.constant 0 : index
    %230 = vector.load %arg3[%229, %c0_99] : memref<16x128xf32, #tpu.memory_space<vmem>>, vector<1x128xf32>
    %231 = arith.addi %0, %4 : i32
    %c2_i32_100 = arith.constant 2 : i32
    %232 = arith.addi %231, %c2_i32_100 : i32
    %c8_i32_101 = arith.constant 8 : i32
    %233 = arith.muli %232, %c8_i32_101 : i32
    %c3_i32_102 = arith.constant 3 : i32
    %234 = arith.addi %233, %c3_i32_102 : i32
    %235 = arith.index_cast %234 : i32 to index
    %236 = memref.load %arg1[%235] : memref<128xi32, #tpu.memory_space<smem>>
    %237 = arith.index_cast %236 : i32 to index
    %c0_103 = arith.constant 0 : index
    %238 = vector.load %arg3[%237, %c0_103] : memref<16x128xf32, #tpu.memory_space<vmem>>, vector<1x128xf32>
    %239 = arith.addi %0, %4 : i32
    %c3_i32_104 = arith.constant 3 : i32
    %240 = arith.addi %239, %c3_i32_104 : i32
    %c8_i32_105 = arith.constant 8 : i32
    %241 = arith.muli %240, %c8_i32_105 : i32
    %c3_i32_106 = arith.constant 3 : i32
    %242 = arith.addi %241, %c3_i32_106 : i32
    %243 = arith.index_cast %242 : i32 to index
    %244 = memref.load %arg1[%243] : memref<128xi32, #tpu.memory_space<smem>>
    %245 = arith.index_cast %244 : i32 to index
    %c0_107 = arith.constant 0 : index
    %246 = vector.load %arg3[%245, %c0_107] : memref<16x128xf32, #tpu.memory_space<vmem>>, vector<1x128xf32>
    %247 = arith.addi %0, %4 : i32
    %c4_i32_108 = arith.constant 4 : i32
    %248 = arith.addi %247, %c4_i32_108 : i32
    %c8_i32_109 = arith.constant 8 : i32
    %249 = arith.muli %248, %c8_i32_109 : i32
    %c3_i32_110 = arith.constant 3 : i32
    %250 = arith.addi %249, %c3_i32_110 : i32
    %251 = arith.index_cast %250 : i32 to index
    %252 = memref.load %arg1[%251] : memref<128xi32, #tpu.memory_space<smem>>
    %253 = arith.index_cast %252 : i32 to index
    %c0_111 = arith.constant 0 : index
    %254 = vector.load %arg3[%253, %c0_111] : memref<16x128xf32, #tpu.memory_space<vmem>>, vector<1x128xf32>
    %255 = arith.addi %0, %4 : i32
    %c5_i32_112 = arith.constant 5 : i32
    %256 = arith.addi %255, %c5_i32_112 : i32
    %c8_i32_113 = arith.constant 8 : i32
    %257 = arith.muli %256, %c8_i32_113 : i32
    %c3_i32_114 = arith.constant 3 : i32
    %258 = arith.addi %257, %c3_i32_114 : i32
    %259 = arith.index_cast %258 : i32 to index
    %260 = memref.load %arg1[%259] : memref<128xi32, #tpu.memory_space<smem>>
    %261 = arith.index_cast %260 : i32 to index
    %c0_115 = arith.constant 0 : index
    %262 = vector.load %arg3[%261, %c0_115] : memref<16x128xf32, #tpu.memory_space<vmem>>, vector<1x128xf32>
    %263 = arith.addi %0, %4 : i32
    %c6_i32_116 = arith.constant 6 : i32
    %264 = arith.addi %263, %c6_i32_116 : i32
    %c8_i32_117 = arith.constant 8 : i32
    %265 = arith.muli %264, %c8_i32_117 : i32
    %c3_i32_118 = arith.constant 3 : i32
    %266 = arith.addi %265, %c3_i32_118 : i32
    %267 = arith.index_cast %266 : i32 to index
    %268 = memref.load %arg1[%267] : memref<128xi32, #tpu.memory_space<smem>>
    %269 = arith.index_cast %268 : i32 to index
    %c0_119 = arith.constant 0 : index
    %270 = vector.load %arg3[%269, %c0_119] : memref<16x128xf32, #tpu.memory_space<vmem>>, vector<1x128xf32>
    %271 = arith.addi %0, %4 : i32
    %c7_i32_120 = arith.constant 7 : i32
    %272 = arith.addi %271, %c7_i32_120 : i32
    %c8_i32_121 = arith.constant 8 : i32
    %273 = arith.muli %272, %c8_i32_121 : i32
    %c3_i32_122 = arith.constant 3 : i32
    %274 = arith.addi %273, %c3_i32_122 : i32
    %275 = arith.index_cast %274 : i32 to index
    %276 = memref.load %arg1[%275] : memref<128xi32, #tpu.memory_space<smem>>
    %277 = arith.index_cast %276 : i32 to index
    %c0_123 = arith.constant 0 : index
    %278 = vector.load %arg3[%277, %c0_123] : memref<16x128xf32, #tpu.memory_space<vmem>>, vector<1x128xf32>
    %279 = tpu.concatenate %222, %230, %238, %246, %254, %262, %270, %278 in 0 : vector<1x128xf32>, vector<1x128xf32>, vector<1x128xf32>, vector<1x128xf32>, vector<1x128xf32>, vector<1x128xf32>, vector<1x128xf32>, vector<1x128xf32> -> vector<8x128xf32>
    %280 = vector.extract_strided_slice %6 {offsets = [0, 3], sizes = [8, 1], strides = [1, 1]} : vector<8x8xf32> to vector<8x1xf32>
    %281 = vector.broadcast %280 : vector<8x1xf32> to vector<8x128xf32>
    %282 = arith.mulf %281, %279 : vector<8x128xf32>
    %283 = arith.addf %214, %282 : vector<8x128xf32>
    %284 = arith.addi %0, %4 : i32
    %c0_i32_124 = arith.constant 0 : i32
    %285 = arith.addi %284, %c0_i32_124 : i32
    %c8_i32_125 = arith.constant 8 : i32
    %286 = arith.muli %285, %c8_i32_125 : i32
    %c4_i32_126 = arith.constant 4 : i32
    %287 = arith.addi %286, %c4_i32_126 : i32
    %288 = arith.index_cast %287 : i32 to index
    %289 = memref.load %arg1[%288] : memref<128xi32, #tpu.memory_space<smem>>
    %290 = arith.index_cast %289 : i32 to index
    %c0_127 = arith.constant 0 : index
    %291 = vector.load %arg3[%290, %c0_127] : memref<16x128xf32, #tpu.memory_space<vmem>>, vector<1x128xf32>
    %292 = arith.addi %0, %4 : i32
    %c1_i32_128 = arith.constant 1 : i32
    %293 = arith.addi %292, %c1_i32_128 : i32
    %c8_i32_129 = arith.constant 8 : i32
    %294 = arith.muli %293, %c8_i32_129 : i32
    %c4_i32_130 = arith.constant 4 : i32
    %295 = arith.addi %294, %c4_i32_130 : i32
    %296 = arith.index_cast %295 : i32 to index
    %297 = memref.load %arg1[%296] : memref<128xi32, #tpu.memory_space<smem>>
    %298 = arith.index_cast %297 : i32 to index
    %c0_131 = arith.constant 0 : index
    %299 = vector.load %arg3[%298, %c0_131] : memref<16x128xf32, #tpu.memory_space<vmem>>, vector<1x128xf32>
    %300 = arith.addi %0, %4 : i32
    %c2_i32_132 = arith.constant 2 : i32
    %301 = arith.addi %300, %c2_i32_132 : i32
    %c8_i32_133 = arith.constant 8 : i32
    %302 = arith.muli %301, %c8_i32_133 : i32
    %c4_i32_134 = arith.constant 4 : i32
    %303 = arith.addi %302, %c4_i32_134 : i32
    %304 = arith.index_cast %303 : i32 to index
    %305 = memref.load %arg1[%304] : memref<128xi32, #tpu.memory_space<smem>>
    %306 = arith.index_cast %305 : i32 to index
    %c0_135 = arith.constant 0 : index
    %307 = vector.load %arg3[%306, %c0_135] : memref<16x128xf32, #tpu.memory_space<vmem>>, vector<1x128xf32>
    %308 = arith.addi %0, %4 : i32
    %c3_i32_136 = arith.constant 3 : i32
    %309 = arith.addi %308, %c3_i32_136 : i32
    %c8_i32_137 = arith.constant 8 : i32
    %310 = arith.muli %309, %c8_i32_137 : i32
    %c4_i32_138 = arith.constant 4 : i32
    %311 = arith.addi %310, %c4_i32_138 : i32
    %312 = arith.index_cast %311 : i32 to index
    %313 = memref.load %arg1[%312] : memref<128xi32, #tpu.memory_space<smem>>
    %314 = arith.index_cast %313 : i32 to index
    %c0_139 = arith.constant 0 : index
    %315 = vector.load %arg3[%314, %c0_139] : memref<16x128xf32, #tpu.memory_space<vmem>>, vector<1x128xf32>
    %316 = arith.addi %0, %4 : i32
    %c4_i32_140 = arith.constant 4 : i32
    %317 = arith.addi %316, %c4_i32_140 : i32
    %c8_i32_141 = arith.constant 8 : i32
    %318 = arith.muli %317, %c8_i32_141 : i32
    %c4_i32_142 = arith.constant 4 : i32
    %319 = arith.addi %318, %c4_i32_142 : i32
    %320 = arith.index_cast %319 : i32 to index
    %321 = memref.load %arg1[%320] : memref<128xi32, #tpu.memory_space<smem>>
    %322 = arith.index_cast %321 : i32 to index
    %c0_143 = arith.constant 0 : index
    %323 = vector.load %arg3[%322, %c0_143] : memref<16x128xf32, #tpu.memory_space<vmem>>, vector<1x128xf32>
    %324 = arith.addi %0, %4 : i32
    %c5_i32_144 = arith.constant 5 : i32
    %325 = arith.addi %324, %c5_i32_144 : i32
    %c8_i32_145 = arith.constant 8 : i32
    %326 = arith.muli %325, %c8_i32_145 : i32
    %c4_i32_146 = arith.constant 4 : i32
    %327 = arith.addi %326, %c4_i32_146 : i32
    %328 = arith.index_cast %327 : i32 to index
    %329 = memref.load %arg1[%328] : memref<128xi32, #tpu.memory_space<smem>>
    %330 = arith.index_cast %329 : i32 to index
    %c0_147 = arith.constant 0 : index
    %331 = vector.load %arg3[%330, %c0_147] : memref<16x128xf32, #tpu.memory_space<vmem>>, vector<1x128xf32>
    %332 = arith.addi %0, %4 : i32
    %c6_i32_148 = arith.constant 6 : i32
    %333 = arith.addi %332, %c6_i32_148 : i32
    %c8_i32_149 = arith.constant 8 : i32
    %334 = arith.muli %333, %c8_i32_149 : i32
    %c4_i32_150 = arith.constant 4 : i32
    %335 = arith.addi %334, %c4_i32_150 : i32
    %336 = arith.index_cast %335 : i32 to index
    %337 = memref.load %arg1[%336] : memref<128xi32, #tpu.memory_space<smem>>
    %338 = arith.index_cast %337 : i32 to index
    %c0_151 = arith.constant 0 : index
    %339 = vector.load %arg3[%338, %c0_151] : memref<16x128xf32, #tpu.memory_space<vmem>>, vector<1x128xf32>
    %340 = arith.addi %0, %4 : i32
    %c7_i32_152 = arith.constant 7 : i32
    %341 = arith.addi %340, %c7_i32_152 : i32
    %c8_i32_153 = arith.constant 8 : i32
    %342 = arith.muli %341, %c8_i32_153 : i32
    %c4_i32_154 = arith.constant 4 : i32
    %343 = arith.addi %342, %c4_i32_154 : i32
    %344 = arith.index_cast %343 : i32 to index
    %345 = memref.load %arg1[%344] : memref<128xi32, #tpu.memory_space<smem>>
    %346 = arith.index_cast %345 : i32 to index
    %c0_155 = arith.constant 0 : index
    %347 = vector.load %arg3[%346, %c0_155] : memref<16x128xf32, #tpu.memory_space<vmem>>, vector<1x128xf32>
    %348 = tpu.concatenate %291, %299, %307, %315, %323, %331, %339, %347 in 0 : vector<1x128xf32>, vector<1x128xf32>, vector<1x128xf32>, vector<1x128xf32>, vector<1x128xf32>, vector<1x128xf32>, vector<1x128xf32>, vector<1x128xf32> -> vector<8x128xf32>
    %349 = vector.extract_strided_slice %6 {offsets = [0, 4], sizes = [8, 1], strides = [1, 1]} : vector<8x8xf32> to vector<8x1xf32>
    %350 = vector.broadcast %349 : vector<8x1xf32> to vector<8x128xf32>
    %351 = arith.mulf %350, %348 : vector<8x128xf32>
    %352 = arith.addf %283, %351 : vector<8x128xf32>
    %353 = arith.addi %0, %4 : i32
    %c0_i32_156 = arith.constant 0 : i32
    %354 = arith.addi %353, %c0_i32_156 : i32
    %c8_i32_157 = arith.constant 8 : i32
    %355 = arith.muli %354, %c8_i32_157 : i32
    %c5_i32_158 = arith.constant 5 : i32
    %356 = arith.addi %355, %c5_i32_158 : i32
    %357 = arith.index_cast %356 : i32 to index
    %358 = memref.load %arg1[%357] : memref<128xi32, #tpu.memory_space<smem>>
    %359 = arith.index_cast %358 : i32 to index
    %c0_159 = arith.constant 0 : index
    %360 = vector.load %arg3[%359, %c0_159] : memref<16x128xf32, #tpu.memory_space<vmem>>, vector<1x128xf32>
    %361 = arith.addi %0, %4 : i32
    %c1_i32_160 = arith.constant 1 : i32
    %362 = arith.addi %361, %c1_i32_160 : i32
    %c8_i32_161 = arith.constant 8 : i32
    %363 = arith.muli %362, %c8_i32_161 : i32
    %c5_i32_162 = arith.constant 5 : i32
    %364 = arith.addi %363, %c5_i32_162 : i32
    %365 = arith.index_cast %364 : i32 to index
    %366 = memref.load %arg1[%365] : memref<128xi32, #tpu.memory_space<smem>>
    %367 = arith.index_cast %366 : i32 to index
    %c0_163 = arith.constant 0 : index
    %368 = vector.load %arg3[%367, %c0_163] : memref<16x128xf32, #tpu.memory_space<vmem>>, vector<1x128xf32>
    %369 = arith.addi %0, %4 : i32
    %c2_i32_164 = arith.constant 2 : i32
    %370 = arith.addi %369, %c2_i32_164 : i32
    %c8_i32_165 = arith.constant 8 : i32
    %371 = arith.muli %370, %c8_i32_165 : i32
    %c5_i32_166 = arith.constant 5 : i32
    %372 = arith.addi %371, %c5_i32_166 : i32
    %373 = arith.index_cast %372 : i32 to index
    %374 = memref.load %arg1[%373] : memref<128xi32, #tpu.memory_space<smem>>
    %375 = arith.index_cast %374 : i32 to index
    %c0_167 = arith.constant 0 : index
    %376 = vector.load %arg3[%375, %c0_167] : memref<16x128xf32, #tpu.memory_space<vmem>>, vector<1x128xf32>
    %377 = arith.addi %0, %4 : i32
    %c3_i32_168 = arith.constant 3 : i32
    %378 = arith.addi %377, %c3_i32_168 : i32
    %c8_i32_169 = arith.constant 8 : i32
    %379 = arith.muli %378, %c8_i32_169 : i32
    %c5_i32_170 = arith.constant 5 : i32
    %380 = arith.addi %379, %c5_i32_170 : i32
    %381 = arith.index_cast %380 : i32 to index
    %382 = memref.load %arg1[%381] : memref<128xi32, #tpu.memory_space<smem>>
    %383 = arith.index_cast %382 : i32 to index
    %c0_171 = arith.constant 0 : index
    %384 = vector.load %arg3[%383, %c0_171] : memref<16x128xf32, #tpu.memory_space<vmem>>, vector<1x128xf32>
    %385 = arith.addi %0, %4 : i32
    %c4_i32_172 = arith.constant 4 : i32
    %386 = arith.addi %385, %c4_i32_172 : i32
    %c8_i32_173 = arith.constant 8 : i32
    %387 = arith.muli %386, %c8_i32_173 : i32
    %c5_i32_174 = arith.constant 5 : i32
    %388 = arith.addi %387, %c5_i32_174 : i32
    %389 = arith.index_cast %388 : i32 to index
    %390 = memref.load %arg1[%389] : memref<128xi32, #tpu.memory_space<smem>>
    %391 = arith.index_cast %390 : i32 to index
    %c0_175 = arith.constant 0 : index
    %392 = vector.load %arg3[%391, %c0_175] : memref<16x128xf32, #tpu.memory_space<vmem>>, vector<1x128xf32>
    %393 = arith.addi %0, %4 : i32
    %c5_i32_176 = arith.constant 5 : i32
    %394 = arith.addi %393, %c5_i32_176 : i32
    %c8_i32_177 = arith.constant 8 : i32
    %395 = arith.muli %394, %c8_i32_177 : i32
    %c5_i32_178 = arith.constant 5 : i32
    %396 = arith.addi %395, %c5_i32_178 : i32
    %397 = arith.index_cast %396 : i32 to index
    %398 = memref.load %arg1[%397] : memref<128xi32, #tpu.memory_space<smem>>
    %399 = arith.index_cast %398 : i32 to index
    %c0_179 = arith.constant 0 : index
    %400 = vector.load %arg3[%399, %c0_179] : memref<16x128xf32, #tpu.memory_space<vmem>>, vector<1x128xf32>
    %401 = arith.addi %0, %4 : i32
    %c6_i32_180 = arith.constant 6 : i32
    %402 = arith.addi %401, %c6_i32_180 : i32
    %c8_i32_181 = arith.constant 8 : i32
    %403 = arith.muli %402, %c8_i32_181 : i32
    %c5_i32_182 = arith.constant 5 : i32
    %404 = arith.addi %403, %c5_i32_182 : i32
    %405 = arith.index_cast %404 : i32 to index
    %406 = memref.load %arg1[%405] : memref<128xi32, #tpu.memory_space<smem>>
    %407 = arith.index_cast %406 : i32 to index
    %c0_183 = arith.constant 0 : index
    %408 = vector.load %arg3[%407, %c0_183] : memref<16x128xf32, #tpu.memory_space<vmem>>, vector<1x128xf32>
    %409 = arith.addi %0, %4 : i32
    %c7_i32_184 = arith.constant 7 : i32
    %410 = arith.addi %409, %c7_i32_184 : i32
    %c8_i32_185 = arith.constant 8 : i32
    %411 = arith.muli %410, %c8_i32_185 : i32
    %c5_i32_186 = arith.constant 5 : i32
    %412 = arith.addi %411, %c5_i32_186 : i32
    %413 = arith.index_cast %412 : i32 to index
    %414 = memref.load %arg1[%413] : memref<128xi32, #tpu.memory_space<smem>>
    %415 = arith.index_cast %414 : i32 to index
    %c0_187 = arith.constant 0 : index
    %416 = vector.load %arg3[%415, %c0_187] : memref<16x128xf32, #tpu.memory_space<vmem>>, vector<1x128xf32>
    %417 = tpu.concatenate %360, %368, %376, %384, %392, %400, %408, %416 in 0 : vector<1x128xf32>, vector<1x128xf32>, vector<1x128xf32>, vector<1x128xf32>, vector<1x128xf32>, vector<1x128xf32>, vector<1x128xf32>, vector<1x128xf32> -> vector<8x128xf32>
    %418 = vector.extract_strided_slice %6 {offsets = [0, 5], sizes = [8, 1], strides = [1, 1]} : vector<8x8xf32> to vector<8x1xf32>
    %419 = vector.broadcast %418 : vector<8x1xf32> to vector<8x128xf32>
    %420 = arith.mulf %419, %417 : vector<8x128xf32>
    %421 = arith.addf %352, %420 : vector<8x128xf32>
    %422 = arith.addi %0, %4 : i32
    %c0_i32_188 = arith.constant 0 : i32
    %423 = arith.addi %422, %c0_i32_188 : i32
    %c8_i32_189 = arith.constant 8 : i32
    %424 = arith.muli %423, %c8_i32_189 : i32
    %c6_i32_190 = arith.constant 6 : i32
    %425 = arith.addi %424, %c6_i32_190 : i32
    %426 = arith.index_cast %425 : i32 to index
    %427 = memref.load %arg1[%426] : memref<128xi32, #tpu.memory_space<smem>>
    %428 = arith.index_cast %427 : i32 to index
    %c0_191 = arith.constant 0 : index
    %429 = vector.load %arg3[%428, %c0_191] : memref<16x128xf32, #tpu.memory_space<vmem>>, vector<1x128xf32>
    %430 = arith.addi %0, %4 : i32
    %c1_i32_192 = arith.constant 1 : i32
    %431 = arith.addi %430, %c1_i32_192 : i32
    %c8_i32_193 = arith.constant 8 : i32
    %432 = arith.muli %431, %c8_i32_193 : i32
    %c6_i32_194 = arith.constant 6 : i32
    %433 = arith.addi %432, %c6_i32_194 : i32
    %434 = arith.index_cast %433 : i32 to index
    %435 = memref.load %arg1[%434] : memref<128xi32, #tpu.memory_space<smem>>
    %436 = arith.index_cast %435 : i32 to index
    %c0_195 = arith.constant 0 : index
    %437 = vector.load %arg3[%436, %c0_195] : memref<16x128xf32, #tpu.memory_space<vmem>>, vector<1x128xf32>
    %438 = arith.addi %0, %4 : i32
    %c2_i32_196 = arith.constant 2 : i32
    %439 = arith.addi %438, %c2_i32_196 : i32
    %c8_i32_197 = arith.constant 8 : i32
    %440 = arith.muli %439, %c8_i32_197 : i32
    %c6_i32_198 = arith.constant 6 : i32
    %441 = arith.addi %440, %c6_i32_198 : i32
    %442 = arith.index_cast %441 : i32 to index
    %443 = memref.load %arg1[%442] : memref<128xi32, #tpu.memory_space<smem>>
    %444 = arith.index_cast %443 : i32 to index
    %c0_199 = arith.constant 0 : index
    %445 = vector.load %arg3[%444, %c0_199] : memref<16x128xf32, #tpu.memory_space<vmem>>, vector<1x128xf32>
    %446 = arith.addi %0, %4 : i32
    %c3_i32_200 = arith.constant 3 : i32
    %447 = arith.addi %446, %c3_i32_200 : i32
    %c8_i32_201 = arith.constant 8 : i32
    %448 = arith.muli %447, %c8_i32_201 : i32
    %c6_i32_202 = arith.constant 6 : i32
    %449 = arith.addi %448, %c6_i32_202 : i32
    %450 = arith.index_cast %449 : i32 to index
    %451 = memref.load %arg1[%450] : memref<128xi32, #tpu.memory_space<smem>>
    %452 = arith.index_cast %451 : i32 to index
    %c0_203 = arith.constant 0 : index
    %453 = vector.load %arg3[%452, %c0_203] : memref<16x128xf32, #tpu.memory_space<vmem>>, vector<1x128xf32>
    %454 = arith.addi %0, %4 : i32
    %c4_i32_204 = arith.constant 4 : i32
    %455 = arith.addi %454, %c4_i32_204 : i32
    %c8_i32_205 = arith.constant 8 : i32
    %456 = arith.muli %455, %c8_i32_205 : i32
    %c6_i32_206 = arith.constant 6 : i32
    %457 = arith.addi %456, %c6_i32_206 : i32
    %458 = arith.index_cast %457 : i32 to index
    %459 = memref.load %arg1[%458] : memref<128xi32, #tpu.memory_space<smem>>
    %460 = arith.index_cast %459 : i32 to index
    %c0_207 = arith.constant 0 : index
    %461 = vector.load %arg3[%460, %c0_207] : memref<16x128xf32, #tpu.memory_space<vmem>>, vector<1x128xf32>
    %462 = arith.addi %0, %4 : i32
    %c5_i32_208 = arith.constant 5 : i32
    %463 = arith.addi %462, %c5_i32_208 : i32
    %c8_i32_209 = arith.constant 8 : i32
    %464 = arith.muli %463, %c8_i32_209 : i32
    %c6_i32_210 = arith.constant 6 : i32
    %465 = arith.addi %464, %c6_i32_210 : i32
    %466 = arith.index_cast %465 : i32 to index
    %467 = memref.load %arg1[%466] : memref<128xi32, #tpu.memory_space<smem>>
    %468 = arith.index_cast %467 : i32 to index
    %c0_211 = arith.constant 0 : index
    %469 = vector.load %arg3[%468, %c0_211] : memref<16x128xf32, #tpu.memory_space<vmem>>, vector<1x128xf32>
    %470 = arith.addi %0, %4 : i32
    %c6_i32_212 = arith.constant 6 : i32
    %471 = arith.addi %470, %c6_i32_212 : i32
    %c8_i32_213 = arith.constant 8 : i32
    %472 = arith.muli %471, %c8_i32_213 : i32
    %c6_i32_214 = arith.constant 6 : i32
    %473 = arith.addi %472, %c6_i32_214 : i32
    %474 = arith.index_cast %473 : i32 to index
    %475 = memref.load %arg1[%474] : memref<128xi32, #tpu.memory_space<smem>>
    %476 = arith.index_cast %475 : i32 to index
    %c0_215 = arith.constant 0 : index
    %477 = vector.load %arg3[%476, %c0_215] : memref<16x128xf32, #tpu.memory_space<vmem>>, vector<1x128xf32>
    %478 = arith.addi %0, %4 : i32
    %c7_i32_216 = arith.constant 7 : i32
    %479 = arith.addi %478, %c7_i32_216 : i32
    %c8_i32_217 = arith.constant 8 : i32
    %480 = arith.muli %479, %c8_i32_217 : i32
    %c6_i32_218 = arith.constant 6 : i32
    %481 = arith.addi %480, %c6_i32_218 : i32
    %482 = arith.index_cast %481 : i32 to index
    %483 = memref.load %arg1[%482] : memref<128xi32, #tpu.memory_space<smem>>
    %484 = arith.index_cast %483 : i32 to index
    %c0_219 = arith.constant 0 : index
    %485 = vector.load %arg3[%484, %c0_219] : memref<16x128xf32, #tpu.memory_space<vmem>>, vector<1x128xf32>
    %486 = tpu.concatenate %429, %437, %445, %453, %461, %469, %477, %485 in 0 : vector<1x128xf32>, vector<1x128xf32>, vector<1x128xf32>, vector<1x128xf32>, vector<1x128xf32>, vector<1x128xf32>, vector<1x128xf32>, vector<1x128xf32> -> vector<8x128xf32>
    %487 = vector.extract_strided_slice %6 {offsets = [0, 6], sizes = [8, 1], strides = [1, 1]} : vector<8x8xf32> to vector<8x1xf32>
    %488 = vector.broadcast %487 : vector<8x1xf32> to vector<8x128xf32>
    %489 = arith.mulf %488, %486 : vector<8x128xf32>
    %490 = arith.addf %421, %489 : vector<8x128xf32>
    %491 = arith.addi %0, %4 : i32
    %c0_i32_220 = arith.constant 0 : i32
    %492 = arith.addi %491, %c0_i32_220 : i32
    %c8_i32_221 = arith.constant 8 : i32
    %493 = arith.muli %492, %c8_i32_221 : i32
    %c7_i32_222 = arith.constant 7 : i32
    %494 = arith.addi %493, %c7_i32_222 : i32
    %495 = arith.index_cast %494 : i32 to index
    %496 = memref.load %arg1[%495] : memref<128xi32, #tpu.memory_space<smem>>
    %497 = arith.index_cast %496 : i32 to index
    %c0_223 = arith.constant 0 : index
    %498 = vector.load %arg3[%497, %c0_223] : memref<16x128xf32, #tpu.memory_space<vmem>>, vector<1x128xf32>
    %499 = arith.addi %0, %4 : i32
    %c1_i32_224 = arith.constant 1 : i32
    %500 = arith.addi %499, %c1_i32_224 : i32
    %c8_i32_225 = arith.constant 8 : i32
    %501 = arith.muli %500, %c8_i32_225 : i32
    %c7_i32_226 = arith.constant 7 : i32
    %502 = arith.addi %501, %c7_i32_226 : i32
    %503 = arith.index_cast %502 : i32 to index
    %504 = memref.load %arg1[%503] : memref<128xi32, #tpu.memory_space<smem>>
    %505 = arith.index_cast %504 : i32 to index
    %c0_227 = arith.constant 0 : index
    %506 = vector.load %arg3[%505, %c0_227] : memref<16x128xf32, #tpu.memory_space<vmem>>, vector<1x128xf32>
    %507 = arith.addi %0, %4 : i32
    %c2_i32_228 = arith.constant 2 : i32
    %508 = arith.addi %507, %c2_i32_228 : i32
    %c8_i32_229 = arith.constant 8 : i32
    %509 = arith.muli %508, %c8_i32_229 : i32
    %c7_i32_230 = arith.constant 7 : i32
    %510 = arith.addi %509, %c7_i32_230 : i32
    %511 = arith.index_cast %510 : i32 to index
    %512 = memref.load %arg1[%511] : memref<128xi32, #tpu.memory_space<smem>>
    %513 = arith.index_cast %512 : i32 to index
    %c0_231 = arith.constant 0 : index
    %514 = vector.load %arg3[%513, %c0_231] : memref<16x128xf32, #tpu.memory_space<vmem>>, vector<1x128xf32>
    %515 = arith.addi %0, %4 : i32
    %c3_i32_232 = arith.constant 3 : i32
    %516 = arith.addi %515, %c3_i32_232 : i32
    %c8_i32_233 = arith.constant 8 : i32
    %517 = arith.muli %516, %c8_i32_233 : i32
    %c7_i32_234 = arith.constant 7 : i32
    %518 = arith.addi %517, %c7_i32_234 : i32
    %519 = arith.index_cast %518 : i32 to index
    %520 = memref.load %arg1[%519] : memref<128xi32, #tpu.memory_space<smem>>
    %521 = arith.index_cast %520 : i32 to index
    %c0_235 = arith.constant 0 : index
    %522 = vector.load %arg3[%521, %c0_235] : memref<16x128xf32, #tpu.memory_space<vmem>>, vector<1x128xf32>
    %523 = arith.addi %0, %4 : i32
    %c4_i32_236 = arith.constant 4 : i32
    %524 = arith.addi %523, %c4_i32_236 : i32
    %c8_i32_237 = arith.constant 8 : i32
    %525 = arith.muli %524, %c8_i32_237 : i32
    %c7_i32_238 = arith.constant 7 : i32
    %526 = arith.addi %525, %c7_i32_238 : i32
    %527 = arith.index_cast %526 : i32 to index
    %528 = memref.load %arg1[%527] : memref<128xi32, #tpu.memory_space<smem>>
    %529 = arith.index_cast %528 : i32 to index
    %c0_239 = arith.constant 0 : index
    %530 = vector.load %arg3[%529, %c0_239] : memref<16x128xf32, #tpu.memory_space<vmem>>, vector<1x128xf32>
    %531 = arith.addi %0, %4 : i32
    %c5_i32_240 = arith.constant 5 : i32
    %532 = arith.addi %531, %c5_i32_240 : i32
    %c8_i32_241 = arith.constant 8 : i32
    %533 = arith.muli %532, %c8_i32_241 : i32
    %c7_i32_242 = arith.constant 7 : i32
    %534 = arith.addi %533, %c7_i32_242 : i32
    %535 = arith.index_cast %534 : i32 to index
    %536 = memref.load %arg1[%535] : memref<128xi32, #tpu.memory_space<smem>>
    %537 = arith.index_cast %536 : i32 to index
    %c0_243 = arith.constant 0 : index
    %538 = vector.load %arg3[%537, %c0_243] : memref<16x128xf32, #tpu.memory_space<vmem>>, vector<1x128xf32>
    %539 = arith.addi %0, %4 : i32
    %c6_i32_244 = arith.constant 6 : i32
    %540 = arith.addi %539, %c6_i32_244 : i32
    %c8_i32_245 = arith.constant 8 : i32
    %541 = arith.muli %540, %c8_i32_245 : i32
    %c7_i32_246 = arith.constant 7 : i32
    %542 = arith.addi %541, %c7_i32_246 : i32
    %543 = arith.index_cast %542 : i32 to index
    %544 = memref.load %arg1[%543] : memref<128xi32, #tpu.memory_space<smem>>
    %545 = arith.index_cast %544 : i32 to index
    %c0_247 = arith.constant 0 : index
    %546 = vector.load %arg3[%545, %c0_247] : memref<16x128xf32, #tpu.memory_space<vmem>>, vector<1x128xf32>
    %547 = arith.addi %0, %4 : i32
    %c7_i32_248 = arith.constant 7 : i32
    %548 = arith.addi %547, %c7_i32_248 : i32
    %c8_i32_249 = arith.constant 8 : i32
    %549 = arith.muli %548, %c8_i32_249 : i32
    %c7_i32_250 = arith.constant 7 : i32
    %550 = arith.addi %549, %c7_i32_250 : i32
    %551 = arith.index_cast %550 : i32 to index
    %552 = memref.load %arg1[%551] : memref<128xi32, #tpu.memory_space<smem>>
    %553 = arith.index_cast %552 : i32 to index
    %c0_251 = arith.constant 0 : index
    %554 = vector.load %arg3[%553, %c0_251] : memref<16x128xf32, #tpu.memory_space<vmem>>, vector<1x128xf32>
    %555 = tpu.concatenate %498, %506, %514, %522, %530, %538, %546, %554 in 0 : vector<1x128xf32>, vector<1x128xf32>, vector<1x128xf32>, vector<1x128xf32>, vector<1x128xf32>, vector<1x128xf32>, vector<1x128xf32>, vector<1x128xf32> -> vector<8x128xf32>
    %556 = vector.extract_strided_slice %6 {offsets = [0, 7], sizes = [8, 1], strides = [1, 1]} : vector<8x8xf32> to vector<8x1xf32>
    %557 = vector.broadcast %556 : vector<8x1xf32> to vector<8x128xf32>
    %558 = arith.mulf %557, %555 : vector<8x128xf32>
    %559 = arith.addf %490, %558 : vector<8x128xf32>
    %560 = arith.index_cast %4 : i32 to index
    %c0_252 = arith.constant 0 : index
    %561 = vector.load %arg4[%560, %c0_252] : memref<8x128xf32, #tpu.memory_space<vmem>>, vector<8x128xf32>
    tpu.vector_store %arg4[%560, %c0_252], %559 {strides = array<i32>} : memref<8x128xf32, #tpu.memory_space<vmem>>, vector<8x128xf32>,
    %c1_i32_253 = arith.constant 1 : i32
    return
  }
  func.func @transform_0(%arg0: i32) -> i32 {
    %c0_i32 = arith.constant 0 : i32
    %c0_i32_0 = arith.constant 0 : i32
    return %c0_i32 : i32
  }
  func.func @transform_1(%arg0: i32) -> (i32, i32) {
    %c0_i32 = arith.constant 0 : i32
    %c0_i32_0 = arith.constant 0 : i32
    return %arg0, %c0_i32 : i32, i32
  }
  func.func @transform_2(%arg0: i32) -> (i32, i32) {
    %c0_i32 = arith.constant 0 : i32
    %c0_i32_0 = arith.constant 0 : i32
    %c0_i32_1 = arith.constant 0 : i32
    return %c0_i32, %c0_i32_0 : i32, i32
  }
  func.func @transform_3(%arg0: i32) -> (i32, i32) {
    %c0_i32 = arith.constant 0 : i32
    %c0_i32_0 = arith.constant 0 : i32
    return %arg0, %c0_i32 : i32, i32
  }
}

module attributes {stable_mosaic.version = 11 : i64} {
  func.func @edge_kernel(%arg0: i32, %arg1: memref<128xi32, #tpu.memory_space<smem>>, %arg2: memref<1x1xf32, #tpu.memory_space<smem>>, %arg3: memref<16x32xbf16, #tpu.memory_space<vmem>>, %arg4: memref<32x128xbf16, #tpu.memory_space<vmem>>, %arg5: memref<8x8xf32, #tpu.memory_space<vmem>>, %arg6: memref<128x128xbf16, #tpu.memory_space<vmem>>, %arg7: memref<8x128xf32, #tpu.memory_space<vmem>>, %arg8: memref<16x128xf32, #tpu.memory_space<vmem>>, %arg9: memref<8x128xf32, #tpu.memory_space<vmem>>) attributes {dimension_semantics = [#tpu.dimension_semantics<arbitrary>], iteration_bounds = array<i64: 2>, scalar_prefetch = 0 : i64, scratch_operands = 2 : i64, tpu.core_type = #tpu.core_type<tc>, window_params = [{transform_indices = @transform_0, window_bounds = array<i64: 128>}, {transform_indices = @transform_1, window_bounds = array<i64: 1, 1>}, {pipeline_mode = #tpu.pipeline_mode<synchronous>, transform_indices = @transform_2, window_bounds = array<i64: 16, 32>}, {pipeline_mode = #tpu.pipeline_mode<synchronous>, transform_indices = @transform_3, window_bounds = array<i64: 32, 128>}, {transform_indices = @transform_4, window_bounds = array<i64: 8, 8>}, {pipeline_mode = #tpu.pipeline_mode<synchronous>, transform_indices = @transform_5, window_bounds = array<i64: 128, 128>}, {transform_indices = @transform_6, window_bounds = array<i64: 8, 128>}]} {
    %c0_i32 = arith.constant 0 : i32
    %0 = arith.cmpi eq, %arg0, %c0_i32 : i32
    %1 = arith.extui %0 : i1 to i32
    %c0_i32_0 = arith.constant 0 : i32
    %2 = arith.cmpi ne, %1, %c0_i32_0 : i32
    scf.if %2 {
      %c0_264 = arith.constant 0 : index
      %c0_265 = arith.constant 0 : index
      %572 = memref.load %arg2[%c0_264, %c0_265] : memref<1x1xf32, #tpu.memory_space<smem>>
      %c0_i32_266 = arith.constant 0 : i32
      %c1_i32_267 = arith.constant 1 : i32
      %573 = arith.muli %c0_i32_266, %c1_i32_267 : i32
      %c0_i32_268 = arith.constant 0 : i32
      %574 = arith.addi %c0_i32_268, %573 : i32
      %c16_i32 = arith.constant 16 : i32
      %575 = arith.muli %574, %c16_i32 : i32
      %576 = tpu.assume_multiple %575, 16 : i32
      %577 = arith.index_cast %576 : i32 to index
      %c0_269 = arith.constant 0 : index
      %578 = vector.load %arg3[%577, %c0_269] : memref<16x32xbf16, #tpu.memory_space<vmem>>, vector<16x32xbf16>
      %c0_270 = arith.constant 0 : index
      %c0_271 = arith.constant 0 : index
      %579 = vector.load %arg4[%c0_270, %c0_271] : memref<32x128xbf16, #tpu.memory_space<vmem>>, vector<32x128xbf16>
      %cst_272 = arith.constant dense<0.000000e+00> : vector<16x128xf32>
      %580 = tpu.matmul %578, %579, %cst_272 {dimension_numbers = #tpu.dot_dimension_numbers<[1], [0], [0], [1], [0, 0, 1, 1], [], []>} : vector<16x32xbf16>, vector<32x128xbf16>, vector<16x128xf32> -> vector<16x128xf32>
      %581 = vector.broadcast %572 : f32 to vector<16x128xf32>
      %582 = arith.mulf %580, %581 : vector<16x128xf32>
      %583 = arith.index_cast %576 : i32 to index
      %c0_273 = arith.constant 0 : index
      %584 = vector.load %arg8[%583, %c0_273] : memref<16x128xf32, #tpu.memory_space<vmem>>, vector<16x128xf32>
      tpu.vector_store %arg8[%583, %c0_273], %582 {strides = array<i32>} : memref<16x128xf32, #tpu.memory_space<vmem>>, vector<16x128xf32>,
      %c1_i32_274 = arith.constant 1 : i32
    } else {
    }
    %c8_i32 = arith.constant 8 : i32
    %3 = arith.muli %arg0, %c8_i32 : i32
    %c0_i32_1 = arith.constant 0 : i32
    %c1_i32 = arith.constant 1 : i32
    %4 = arith.muli %c0_i32_1, %c1_i32 : i32
    %c0_i32_2 = arith.constant 0 : i32
    %5 = arith.addi %c0_i32_2, %4 : i32
    %c8_i32_3 = arith.constant 8 : i32
    %6 = arith.muli %5, %c8_i32_3 : i32
    %7 = tpu.assume_multiple %6, 8 : i32
    %8 = arith.index_cast %7 : i32 to index
    %c0 = arith.constant 0 : index
    %9 = vector.load %arg5[%8, %c0] : memref<8x8xf32, #tpu.memory_space<vmem>>, vector<8x8xf32>
    %cst = arith.constant 0.000000e+00 : f32
    %10 = vector.broadcast %cst : f32 to vector<8x128xf32>
    %11 = arith.addi %3, %7 : i32
    %c0_i32_4 = arith.constant 0 : i32
    %12 = arith.addi %11, %c0_i32_4 : i32
    %c8_i32_5 = arith.constant 8 : i32
    %13 = arith.muli %12, %c8_i32_5 : i32
    %c0_i32_6 = arith.constant 0 : i32
    %14 = arith.addi %13, %c0_i32_6 : i32
    %15 = arith.index_cast %14 : i32 to index
    %16 = memref.load %arg1[%15] : memref<128xi32, #tpu.memory_space<smem>>
    %17 = arith.index_cast %16 : i32 to index
    %c0_7 = arith.constant 0 : index
    %18 = vector.load %arg8[%17, %c0_7] : memref<16x128xf32, #tpu.memory_space<vmem>>, vector<1x128xf32>
    %19 = arith.addi %3, %7 : i32
    %c1_i32_8 = arith.constant 1 : i32
    %20 = arith.addi %19, %c1_i32_8 : i32
    %c8_i32_9 = arith.constant 8 : i32
    %21 = arith.muli %20, %c8_i32_9 : i32
    %c0_i32_10 = arith.constant 0 : i32
    %22 = arith.addi %21, %c0_i32_10 : i32
    %23 = arith.index_cast %22 : i32 to index
    %24 = memref.load %arg1[%23] : memref<128xi32, #tpu.memory_space<smem>>
    %25 = arith.index_cast %24 : i32 to index
    %c0_11 = arith.constant 0 : index
    %26 = vector.load %arg8[%25, %c0_11] : memref<16x128xf32, #tpu.memory_space<vmem>>, vector<1x128xf32>
    %27 = arith.addi %3, %7 : i32
    %c2_i32 = arith.constant 2 : i32
    %28 = arith.addi %27, %c2_i32 : i32
    %c8_i32_12 = arith.constant 8 : i32
    %29 = arith.muli %28, %c8_i32_12 : i32
    %c0_i32_13 = arith.constant 0 : i32
    %30 = arith.addi %29, %c0_i32_13 : i32
    %31 = arith.index_cast %30 : i32 to index
    %32 = memref.load %arg1[%31] : memref<128xi32, #tpu.memory_space<smem>>
    %33 = arith.index_cast %32 : i32 to index
    %c0_14 = arith.constant 0 : index
    %34 = vector.load %arg8[%33, %c0_14] : memref<16x128xf32, #tpu.memory_space<vmem>>, vector<1x128xf32>
    %35 = arith.addi %3, %7 : i32
    %c3_i32 = arith.constant 3 : i32
    %36 = arith.addi %35, %c3_i32 : i32
    %c8_i32_15 = arith.constant 8 : i32
    %37 = arith.muli %36, %c8_i32_15 : i32
    %c0_i32_16 = arith.constant 0 : i32
    %38 = arith.addi %37, %c0_i32_16 : i32
    %39 = arith.index_cast %38 : i32 to index
    %40 = memref.load %arg1[%39] : memref<128xi32, #tpu.memory_space<smem>>
    %41 = arith.index_cast %40 : i32 to index
    %c0_17 = arith.constant 0 : index
    %42 = vector.load %arg8[%41, %c0_17] : memref<16x128xf32, #tpu.memory_space<vmem>>, vector<1x128xf32>
    %43 = arith.addi %3, %7 : i32
    %c4_i32 = arith.constant 4 : i32
    %44 = arith.addi %43, %c4_i32 : i32
    %c8_i32_18 = arith.constant 8 : i32
    %45 = arith.muli %44, %c8_i32_18 : i32
    %c0_i32_19 = arith.constant 0 : i32
    %46 = arith.addi %45, %c0_i32_19 : i32
    %47 = arith.index_cast %46 : i32 to index
    %48 = memref.load %arg1[%47] : memref<128xi32, #tpu.memory_space<smem>>
    %49 = arith.index_cast %48 : i32 to index
    %c0_20 = arith.constant 0 : index
    %50 = vector.load %arg8[%49, %c0_20] : memref<16x128xf32, #tpu.memory_space<vmem>>, vector<1x128xf32>
    %51 = arith.addi %3, %7 : i32
    %c5_i32 = arith.constant 5 : i32
    %52 = arith.addi %51, %c5_i32 : i32
    %c8_i32_21 = arith.constant 8 : i32
    %53 = arith.muli %52, %c8_i32_21 : i32
    %c0_i32_22 = arith.constant 0 : i32
    %54 = arith.addi %53, %c0_i32_22 : i32
    %55 = arith.index_cast %54 : i32 to index
    %56 = memref.load %arg1[%55] : memref<128xi32, #tpu.memory_space<smem>>
    %57 = arith.index_cast %56 : i32 to index
    %c0_23 = arith.constant 0 : index
    %58 = vector.load %arg8[%57, %c0_23] : memref<16x128xf32, #tpu.memory_space<vmem>>, vector<1x128xf32>
    %59 = arith.addi %3, %7 : i32
    %c6_i32 = arith.constant 6 : i32
    %60 = arith.addi %59, %c6_i32 : i32
    %c8_i32_24 = arith.constant 8 : i32
    %61 = arith.muli %60, %c8_i32_24 : i32
    %c0_i32_25 = arith.constant 0 : i32
    %62 = arith.addi %61, %c0_i32_25 : i32
    %63 = arith.index_cast %62 : i32 to index
    %64 = memref.load %arg1[%63] : memref<128xi32, #tpu.memory_space<smem>>
    %65 = arith.index_cast %64 : i32 to index
    %c0_26 = arith.constant 0 : index
    %66 = vector.load %arg8[%65, %c0_26] : memref<16x128xf32, #tpu.memory_space<vmem>>, vector<1x128xf32>
    %67 = arith.addi %3, %7 : i32
    %c7_i32 = arith.constant 7 : i32
    %68 = arith.addi %67, %c7_i32 : i32
    %c8_i32_27 = arith.constant 8 : i32
    %69 = arith.muli %68, %c8_i32_27 : i32
    %c0_i32_28 = arith.constant 0 : i32
    %70 = arith.addi %69, %c0_i32_28 : i32
    %71 = arith.index_cast %70 : i32 to index
    %72 = memref.load %arg1[%71] : memref<128xi32, #tpu.memory_space<smem>>
    %73 = arith.index_cast %72 : i32 to index
    %c0_29 = arith.constant 0 : index
    %74 = vector.load %arg8[%73, %c0_29] : memref<16x128xf32, #tpu.memory_space<vmem>>, vector<1x128xf32>
    %75 = tpu.concatenate %18, %26, %34, %42, %50, %58, %66, %74 in 0 : vector<1x128xf32>, vector<1x128xf32>, vector<1x128xf32>, vector<1x128xf32>, vector<1x128xf32>, vector<1x128xf32>, vector<1x128xf32>, vector<1x128xf32> -> vector<8x128xf32>
    %76 = vector.extract_strided_slice %9 {offsets = [0, 0], sizes = [8, 1], strides = [1, 1]} : vector<8x8xf32> to vector<8x1xf32>
    %77 = vector.broadcast %76 : vector<8x1xf32> to vector<8x128xf32>
    %78 = arith.mulf %77, %75 : vector<8x128xf32>
    %79 = arith.addf %10, %78 : vector<8x128xf32>
    %80 = arith.addi %3, %7 : i32
    %c0_i32_30 = arith.constant 0 : i32
    %81 = arith.addi %80, %c0_i32_30 : i32
    %c8_i32_31 = arith.constant 8 : i32
    %82 = arith.muli %81, %c8_i32_31 : i32
    %c1_i32_32 = arith.constant 1 : i32
    %83 = arith.addi %82, %c1_i32_32 : i32
    %84 = arith.index_cast %83 : i32 to index
    %85 = memref.load %arg1[%84] : memref<128xi32, #tpu.memory_space<smem>>
    %86 = arith.index_cast %85 : i32 to index
    %c0_33 = arith.constant 0 : index
    %87 = vector.load %arg8[%86, %c0_33] : memref<16x128xf32, #tpu.memory_space<vmem>>, vector<1x128xf32>
    %88 = arith.addi %3, %7 : i32
    %c1_i32_34 = arith.constant 1 : i32
    %89 = arith.addi %88, %c1_i32_34 : i32
    %c8_i32_35 = arith.constant 8 : i32
    %90 = arith.muli %89, %c8_i32_35 : i32
    %c1_i32_36 = arith.constant 1 : i32
    %91 = arith.addi %90, %c1_i32_36 : i32
    %92 = arith.index_cast %91 : i32 to index
    %93 = memref.load %arg1[%92] : memref<128xi32, #tpu.memory_space<smem>>
    %94 = arith.index_cast %93 : i32 to index
    %c0_37 = arith.constant 0 : index
    %95 = vector.load %arg8[%94, %c0_37] : memref<16x128xf32, #tpu.memory_space<vmem>>, vector<1x128xf32>
    %96 = arith.addi %3, %7 : i32
    %c2_i32_38 = arith.constant 2 : i32
    %97 = arith.addi %96, %c2_i32_38 : i32
    %c8_i32_39 = arith.constant 8 : i32
    %98 = arith.muli %97, %c8_i32_39 : i32
    %c1_i32_40 = arith.constant 1 : i32
    %99 = arith.addi %98, %c1_i32_40 : i32
    %100 = arith.index_cast %99 : i32 to index
    %101 = memref.load %arg1[%100] : memref<128xi32, #tpu.memory_space<smem>>
    %102 = arith.index_cast %101 : i32 to index
    %c0_41 = arith.constant 0 : index
    %103 = vector.load %arg8[%102, %c0_41] : memref<16x128xf32, #tpu.memory_space<vmem>>, vector<1x128xf32>
    %104 = arith.addi %3, %7 : i32
    %c3_i32_42 = arith.constant 3 : i32
    %105 = arith.addi %104, %c3_i32_42 : i32
    %c8_i32_43 = arith.constant 8 : i32
    %106 = arith.muli %105, %c8_i32_43 : i32
    %c1_i32_44 = arith.constant 1 : i32
    %107 = arith.addi %106, %c1_i32_44 : i32
    %108 = arith.index_cast %107 : i32 to index
    %109 = memref.load %arg1[%108] : memref<128xi32, #tpu.memory_space<smem>>
    %110 = arith.index_cast %109 : i32 to index
    %c0_45 = arith.constant 0 : index
    %111 = vector.load %arg8[%110, %c0_45] : memref<16x128xf32, #tpu.memory_space<vmem>>, vector<1x128xf32>
    %112 = arith.addi %3, %7 : i32
    %c4_i32_46 = arith.constant 4 : i32
    %113 = arith.addi %112, %c4_i32_46 : i32
    %c8_i32_47 = arith.constant 8 : i32
    %114 = arith.muli %113, %c8_i32_47 : i32
    %c1_i32_48 = arith.constant 1 : i32
    %115 = arith.addi %114, %c1_i32_48 : i32
    %116 = arith.index_cast %115 : i32 to index
    %117 = memref.load %arg1[%116] : memref<128xi32, #tpu.memory_space<smem>>
    %118 = arith.index_cast %117 : i32 to index
    %c0_49 = arith.constant 0 : index
    %119 = vector.load %arg8[%118, %c0_49] : memref<16x128xf32, #tpu.memory_space<vmem>>, vector<1x128xf32>
    %120 = arith.addi %3, %7 : i32
    %c5_i32_50 = arith.constant 5 : i32
    %121 = arith.addi %120, %c5_i32_50 : i32
    %c8_i32_51 = arith.constant 8 : i32
    %122 = arith.muli %121, %c8_i32_51 : i32
    %c1_i32_52 = arith.constant 1 : i32
    %123 = arith.addi %122, %c1_i32_52 : i32
    %124 = arith.index_cast %123 : i32 to index
    %125 = memref.load %arg1[%124] : memref<128xi32, #tpu.memory_space<smem>>
    %126 = arith.index_cast %125 : i32 to index
    %c0_53 = arith.constant 0 : index
    %127 = vector.load %arg8[%126, %c0_53] : memref<16x128xf32, #tpu.memory_space<vmem>>, vector<1x128xf32>
    %128 = arith.addi %3, %7 : i32
    %c6_i32_54 = arith.constant 6 : i32
    %129 = arith.addi %128, %c6_i32_54 : i32
    %c8_i32_55 = arith.constant 8 : i32
    %130 = arith.muli %129, %c8_i32_55 : i32
    %c1_i32_56 = arith.constant 1 : i32
    %131 = arith.addi %130, %c1_i32_56 : i32
    %132 = arith.index_cast %131 : i32 to index
    %133 = memref.load %arg1[%132] : memref<128xi32, #tpu.memory_space<smem>>
    %134 = arith.index_cast %133 : i32 to index
    %c0_57 = arith.constant 0 : index
    %135 = vector.load %arg8[%134, %c0_57] : memref<16x128xf32, #tpu.memory_space<vmem>>, vector<1x128xf32>
    %136 = arith.addi %3, %7 : i32
    %c7_i32_58 = arith.constant 7 : i32
    %137 = arith.addi %136, %c7_i32_58 : i32
    %c8_i32_59 = arith.constant 8 : i32
    %138 = arith.muli %137, %c8_i32_59 : i32
    %c1_i32_60 = arith.constant 1 : i32
    %139 = arith.addi %138, %c1_i32_60 : i32
    %140 = arith.index_cast %139 : i32 to index
    %141 = memref.load %arg1[%140] : memref<128xi32, #tpu.memory_space<smem>>
    %142 = arith.index_cast %141 : i32 to index
    %c0_61 = arith.constant 0 : index
    %143 = vector.load %arg8[%142, %c0_61] : memref<16x128xf32, #tpu.memory_space<vmem>>, vector<1x128xf32>
    %144 = tpu.concatenate %87, %95, %103, %111, %119, %127, %135, %143 in 0 : vector<1x128xf32>, vector<1x128xf32>, vector<1x128xf32>, vector<1x128xf32>, vector<1x128xf32>, vector<1x128xf32>, vector<1x128xf32>, vector<1x128xf32> -> vector<8x128xf32>
    %145 = vector.extract_strided_slice %9 {offsets = [0, 1], sizes = [8, 1], strides = [1, 1]} : vector<8x8xf32> to vector<8x1xf32>
    %146 = vector.broadcast %145 : vector<8x1xf32> to vector<8x128xf32>
    %147 = arith.mulf %146, %144 : vector<8x128xf32>
    %148 = arith.addf %79, %147 : vector<8x128xf32>
    %149 = arith.addi %3, %7 : i32
    %c0_i32_62 = arith.constant 0 : i32
    %150 = arith.addi %149, %c0_i32_62 : i32
    %c8_i32_63 = arith.constant 8 : i32
    %151 = arith.muli %150, %c8_i32_63 : i32
    %c2_i32_64 = arith.constant 2 : i32
    %152 = arith.addi %151, %c2_i32_64 : i32
    %153 = arith.index_cast %152 : i32 to index
    %154 = memref.load %arg1[%153] : memref<128xi32, #tpu.memory_space<smem>>
    %155 = arith.index_cast %154 : i32 to index
    %c0_65 = arith.constant 0 : index
    %156 = vector.load %arg8[%155, %c0_65] : memref<16x128xf32, #tpu.memory_space<vmem>>, vector<1x128xf32>
    %157 = arith.addi %3, %7 : i32
    %c1_i32_66 = arith.constant 1 : i32
    %158 = arith.addi %157, %c1_i32_66 : i32
    %c8_i32_67 = arith.constant 8 : i32
    %159 = arith.muli %158, %c8_i32_67 : i32
    %c2_i32_68 = arith.constant 2 : i32
    %160 = arith.addi %159, %c2_i32_68 : i32
    %161 = arith.index_cast %160 : i32 to index
    %162 = memref.load %arg1[%161] : memref<128xi32, #tpu.memory_space<smem>>
    %163 = arith.index_cast %162 : i32 to index
    %c0_69 = arith.constant 0 : index
    %164 = vector.load %arg8[%163, %c0_69] : memref<16x128xf32, #tpu.memory_space<vmem>>, vector<1x128xf32>
    %165 = arith.addi %3, %7 : i32
    %c2_i32_70 = arith.constant 2 : i32
    %166 = arith.addi %165, %c2_i32_70 : i32
    %c8_i32_71 = arith.constant 8 : i32
    %167 = arith.muli %166, %c8_i32_71 : i32
    %c2_i32_72 = arith.constant 2 : i32
    %168 = arith.addi %167, %c2_i32_72 : i32
    %169 = arith.index_cast %168 : i32 to index
    %170 = memref.load %arg1[%169] : memref<128xi32, #tpu.memory_space<smem>>
    %171 = arith.index_cast %170 : i32 to index
    %c0_73 = arith.constant 0 : index
    %172 = vector.load %arg8[%171, %c0_73] : memref<16x128xf32, #tpu.memory_space<vmem>>, vector<1x128xf32>
    %173 = arith.addi %3, %7 : i32
    %c3_i32_74 = arith.constant 3 : i32
    %174 = arith.addi %173, %c3_i32_74 : i32
    %c8_i32_75 = arith.constant 8 : i32
    %175 = arith.muli %174, %c8_i32_75 : i32
    %c2_i32_76 = arith.constant 2 : i32
    %176 = arith.addi %175, %c2_i32_76 : i32
    %177 = arith.index_cast %176 : i32 to index
    %178 = memref.load %arg1[%177] : memref<128xi32, #tpu.memory_space<smem>>
    %179 = arith.index_cast %178 : i32 to index
    %c0_77 = arith.constant 0 : index
    %180 = vector.load %arg8[%179, %c0_77] : memref<16x128xf32, #tpu.memory_space<vmem>>, vector<1x128xf32>
    %181 = arith.addi %3, %7 : i32
    %c4_i32_78 = arith.constant 4 : i32
    %182 = arith.addi %181, %c4_i32_78 : i32
    %c8_i32_79 = arith.constant 8 : i32
    %183 = arith.muli %182, %c8_i32_79 : i32
    %c2_i32_80 = arith.constant 2 : i32
    %184 = arith.addi %183, %c2_i32_80 : i32
    %185 = arith.index_cast %184 : i32 to index
    %186 = memref.load %arg1[%185] : memref<128xi32, #tpu.memory_space<smem>>
    %187 = arith.index_cast %186 : i32 to index
    %c0_81 = arith.constant 0 : index
    %188 = vector.load %arg8[%187, %c0_81] : memref<16x128xf32, #tpu.memory_space<vmem>>, vector<1x128xf32>
    %189 = arith.addi %3, %7 : i32
    %c5_i32_82 = arith.constant 5 : i32
    %190 = arith.addi %189, %c5_i32_82 : i32
    %c8_i32_83 = arith.constant 8 : i32
    %191 = arith.muli %190, %c8_i32_83 : i32
    %c2_i32_84 = arith.constant 2 : i32
    %192 = arith.addi %191, %c2_i32_84 : i32
    %193 = arith.index_cast %192 : i32 to index
    %194 = memref.load %arg1[%193] : memref<128xi32, #tpu.memory_space<smem>>
    %195 = arith.index_cast %194 : i32 to index
    %c0_85 = arith.constant 0 : index
    %196 = vector.load %arg8[%195, %c0_85] : memref<16x128xf32, #tpu.memory_space<vmem>>, vector<1x128xf32>
    %197 = arith.addi %3, %7 : i32
    %c6_i32_86 = arith.constant 6 : i32
    %198 = arith.addi %197, %c6_i32_86 : i32
    %c8_i32_87 = arith.constant 8 : i32
    %199 = arith.muli %198, %c8_i32_87 : i32
    %c2_i32_88 = arith.constant 2 : i32
    %200 = arith.addi %199, %c2_i32_88 : i32
    %201 = arith.index_cast %200 : i32 to index
    %202 = memref.load %arg1[%201] : memref<128xi32, #tpu.memory_space<smem>>
    %203 = arith.index_cast %202 : i32 to index
    %c0_89 = arith.constant 0 : index
    %204 = vector.load %arg8[%203, %c0_89] : memref<16x128xf32, #tpu.memory_space<vmem>>, vector<1x128xf32>
    %205 = arith.addi %3, %7 : i32
    %c7_i32_90 = arith.constant 7 : i32
    %206 = arith.addi %205, %c7_i32_90 : i32
    %c8_i32_91 = arith.constant 8 : i32
    %207 = arith.muli %206, %c8_i32_91 : i32
    %c2_i32_92 = arith.constant 2 : i32
    %208 = arith.addi %207, %c2_i32_92 : i32
    %209 = arith.index_cast %208 : i32 to index
    %210 = memref.load %arg1[%209] : memref<128xi32, #tpu.memory_space<smem>>
    %211 = arith.index_cast %210 : i32 to index
    %c0_93 = arith.constant 0 : index
    %212 = vector.load %arg8[%211, %c0_93] : memref<16x128xf32, #tpu.memory_space<vmem>>, vector<1x128xf32>
    %213 = tpu.concatenate %156, %164, %172, %180, %188, %196, %204, %212 in 0 : vector<1x128xf32>, vector<1x128xf32>, vector<1x128xf32>, vector<1x128xf32>, vector<1x128xf32>, vector<1x128xf32>, vector<1x128xf32>, vector<1x128xf32> -> vector<8x128xf32>
    %214 = vector.extract_strided_slice %9 {offsets = [0, 2], sizes = [8, 1], strides = [1, 1]} : vector<8x8xf32> to vector<8x1xf32>
    %215 = vector.broadcast %214 : vector<8x1xf32> to vector<8x128xf32>
    %216 = arith.mulf %215, %213 : vector<8x128xf32>
    %217 = arith.addf %148, %216 : vector<8x128xf32>
    %218 = arith.addi %3, %7 : i32
    %c0_i32_94 = arith.constant 0 : i32
    %219 = arith.addi %218, %c0_i32_94 : i32
    %c8_i32_95 = arith.constant 8 : i32
    %220 = arith.muli %219, %c8_i32_95 : i32
    %c3_i32_96 = arith.constant 3 : i32
    %221 = arith.addi %220, %c3_i32_96 : i32
    %222 = arith.index_cast %221 : i32 to index
    %223 = memref.load %arg1[%222] : memref<128xi32, #tpu.memory_space<smem>>
    %224 = arith.index_cast %223 : i32 to index
    %c0_97 = arith.constant 0 : index
    %225 = vector.load %arg8[%224, %c0_97] : memref<16x128xf32, #tpu.memory_space<vmem>>, vector<1x128xf32>
    %226 = arith.addi %3, %7 : i32
    %c1_i32_98 = arith.constant 1 : i32
    %227 = arith.addi %226, %c1_i32_98 : i32
    %c8_i32_99 = arith.constant 8 : i32
    %228 = arith.muli %227, %c8_i32_99 : i32
    %c3_i32_100 = arith.constant 3 : i32
    %229 = arith.addi %228, %c3_i32_100 : i32
    %230 = arith.index_cast %229 : i32 to index
    %231 = memref.load %arg1[%230] : memref<128xi32, #tpu.memory_space<smem>>
    %232 = arith.index_cast %231 : i32 to index
    %c0_101 = arith.constant 0 : index
    %233 = vector.load %arg8[%232, %c0_101] : memref<16x128xf32, #tpu.memory_space<vmem>>, vector<1x128xf32>
    %234 = arith.addi %3, %7 : i32
    %c2_i32_102 = arith.constant 2 : i32
    %235 = arith.addi %234, %c2_i32_102 : i32
    %c8_i32_103 = arith.constant 8 : i32
    %236 = arith.muli %235, %c8_i32_103 : i32
    %c3_i32_104 = arith.constant 3 : i32
    %237 = arith.addi %236, %c3_i32_104 : i32
    %238 = arith.index_cast %237 : i32 to index
    %239 = memref.load %arg1[%238] : memref<128xi32, #tpu.memory_space<smem>>
    %240 = arith.index_cast %239 : i32 to index
    %c0_105 = arith.constant 0 : index
    %241 = vector.load %arg8[%240, %c0_105] : memref<16x128xf32, #tpu.memory_space<vmem>>, vector<1x128xf32>
    %242 = arith.addi %3, %7 : i32
    %c3_i32_106 = arith.constant 3 : i32
    %243 = arith.addi %242, %c3_i32_106 : i32
    %c8_i32_107 = arith.constant 8 : i32
    %244 = arith.muli %243, %c8_i32_107 : i32
    %c3_i32_108 = arith.constant 3 : i32
    %245 = arith.addi %244, %c3_i32_108 : i32
    %246 = arith.index_cast %245 : i32 to index
    %247 = memref.load %arg1[%246] : memref<128xi32, #tpu.memory_space<smem>>
    %248 = arith.index_cast %247 : i32 to index
    %c0_109 = arith.constant 0 : index
    %249 = vector.load %arg8[%248, %c0_109] : memref<16x128xf32, #tpu.memory_space<vmem>>, vector<1x128xf32>
    %250 = arith.addi %3, %7 : i32
    %c4_i32_110 = arith.constant 4 : i32
    %251 = arith.addi %250, %c4_i32_110 : i32
    %c8_i32_111 = arith.constant 8 : i32
    %252 = arith.muli %251, %c8_i32_111 : i32
    %c3_i32_112 = arith.constant 3 : i32
    %253 = arith.addi %252, %c3_i32_112 : i32
    %254 = arith.index_cast %253 : i32 to index
    %255 = memref.load %arg1[%254] : memref<128xi32, #tpu.memory_space<smem>>
    %256 = arith.index_cast %255 : i32 to index
    %c0_113 = arith.constant 0 : index
    %257 = vector.load %arg8[%256, %c0_113] : memref<16x128xf32, #tpu.memory_space<vmem>>, vector<1x128xf32>
    %258 = arith.addi %3, %7 : i32
    %c5_i32_114 = arith.constant 5 : i32
    %259 = arith.addi %258, %c5_i32_114 : i32
    %c8_i32_115 = arith.constant 8 : i32
    %260 = arith.muli %259, %c8_i32_115 : i32
    %c3_i32_116 = arith.constant 3 : i32
    %261 = arith.addi %260, %c3_i32_116 : i32
    %262 = arith.index_cast %261 : i32 to index
    %263 = memref.load %arg1[%262] : memref<128xi32, #tpu.memory_space<smem>>
    %264 = arith.index_cast %263 : i32 to index
    %c0_117 = arith.constant 0 : index
    %265 = vector.load %arg8[%264, %c0_117] : memref<16x128xf32, #tpu.memory_space<vmem>>, vector<1x128xf32>
    %266 = arith.addi %3, %7 : i32
    %c6_i32_118 = arith.constant 6 : i32
    %267 = arith.addi %266, %c6_i32_118 : i32
    %c8_i32_119 = arith.constant 8 : i32
    %268 = arith.muli %267, %c8_i32_119 : i32
    %c3_i32_120 = arith.constant 3 : i32
    %269 = arith.addi %268, %c3_i32_120 : i32
    %270 = arith.index_cast %269 : i32 to index
    %271 = memref.load %arg1[%270] : memref<128xi32, #tpu.memory_space<smem>>
    %272 = arith.index_cast %271 : i32 to index
    %c0_121 = arith.constant 0 : index
    %273 = vector.load %arg8[%272, %c0_121] : memref<16x128xf32, #tpu.memory_space<vmem>>, vector<1x128xf32>
    %274 = arith.addi %3, %7 : i32
    %c7_i32_122 = arith.constant 7 : i32
    %275 = arith.addi %274, %c7_i32_122 : i32
    %c8_i32_123 = arith.constant 8 : i32
    %276 = arith.muli %275, %c8_i32_123 : i32
    %c3_i32_124 = arith.constant 3 : i32
    %277 = arith.addi %276, %c3_i32_124 : i32
    %278 = arith.index_cast %277 : i32 to index
    %279 = memref.load %arg1[%278] : memref<128xi32, #tpu.memory_space<smem>>
    %280 = arith.index_cast %279 : i32 to index
    %c0_125 = arith.constant 0 : index
    %281 = vector.load %arg8[%280, %c0_125] : memref<16x128xf32, #tpu.memory_space<vmem>>, vector<1x128xf32>
    %282 = tpu.concatenate %225, %233, %241, %249, %257, %265, %273, %281 in 0 : vector<1x128xf32>, vector<1x128xf32>, vector<1x128xf32>, vector<1x128xf32>, vector<1x128xf32>, vector<1x128xf32>, vector<1x128xf32>, vector<1x128xf32> -> vector<8x128xf32>
    %283 = vector.extract_strided_slice %9 {offsets = [0, 3], sizes = [8, 1], strides = [1, 1]} : vector<8x8xf32> to vector<8x1xf32>
    %284 = vector.broadcast %283 : vector<8x1xf32> to vector<8x128xf32>
    %285 = arith.mulf %284, %282 : vector<8x128xf32>
    %286 = arith.addf %217, %285 : vector<8x128xf32>
    %287 = arith.addi %3, %7 : i32
    %c0_i32_126 = arith.constant 0 : i32
    %288 = arith.addi %287, %c0_i32_126 : i32
    %c8_i32_127 = arith.constant 8 : i32
    %289 = arith.muli %288, %c8_i32_127 : i32
    %c4_i32_128 = arith.constant 4 : i32
    %290 = arith.addi %289, %c4_i32_128 : i32
    %291 = arith.index_cast %290 : i32 to index
    %292 = memref.load %arg1[%291] : memref<128xi32, #tpu.memory_space<smem>>
    %293 = arith.index_cast %292 : i32 to index
    %c0_129 = arith.constant 0 : index
    %294 = vector.load %arg8[%293, %c0_129] : memref<16x128xf32, #tpu.memory_space<vmem>>, vector<1x128xf32>
    %295 = arith.addi %3, %7 : i32
    %c1_i32_130 = arith.constant 1 : i32
    %296 = arith.addi %295, %c1_i32_130 : i32
    %c8_i32_131 = arith.constant 8 : i32
    %297 = arith.muli %296, %c8_i32_131 : i32
    %c4_i32_132 = arith.constant 4 : i32
    %298 = arith.addi %297, %c4_i32_132 : i32
    %299 = arith.index_cast %298 : i32 to index
    %300 = memref.load %arg1[%299] : memref<128xi32, #tpu.memory_space<smem>>
    %301 = arith.index_cast %300 : i32 to index
    %c0_133 = arith.constant 0 : index
    %302 = vector.load %arg8[%301, %c0_133] : memref<16x128xf32, #tpu.memory_space<vmem>>, vector<1x128xf32>
    %303 = arith.addi %3, %7 : i32
    %c2_i32_134 = arith.constant 2 : i32
    %304 = arith.addi %303, %c2_i32_134 : i32
    %c8_i32_135 = arith.constant 8 : i32
    %305 = arith.muli %304, %c8_i32_135 : i32
    %c4_i32_136 = arith.constant 4 : i32
    %306 = arith.addi %305, %c4_i32_136 : i32
    %307 = arith.index_cast %306 : i32 to index
    %308 = memref.load %arg1[%307] : memref<128xi32, #tpu.memory_space<smem>>
    %309 = arith.index_cast %308 : i32 to index
    %c0_137 = arith.constant 0 : index
    %310 = vector.load %arg8[%309, %c0_137] : memref<16x128xf32, #tpu.memory_space<vmem>>, vector<1x128xf32>
    %311 = arith.addi %3, %7 : i32
    %c3_i32_138 = arith.constant 3 : i32
    %312 = arith.addi %311, %c3_i32_138 : i32
    %c8_i32_139 = arith.constant 8 : i32
    %313 = arith.muli %312, %c8_i32_139 : i32
    %c4_i32_140 = arith.constant 4 : i32
    %314 = arith.addi %313, %c4_i32_140 : i32
    %315 = arith.index_cast %314 : i32 to index
    %316 = memref.load %arg1[%315] : memref<128xi32, #tpu.memory_space<smem>>
    %317 = arith.index_cast %316 : i32 to index
    %c0_141 = arith.constant 0 : index
    %318 = vector.load %arg8[%317, %c0_141] : memref<16x128xf32, #tpu.memory_space<vmem>>, vector<1x128xf32>
    %319 = arith.addi %3, %7 : i32
    %c4_i32_142 = arith.constant 4 : i32
    %320 = arith.addi %319, %c4_i32_142 : i32
    %c8_i32_143 = arith.constant 8 : i32
    %321 = arith.muli %320, %c8_i32_143 : i32
    %c4_i32_144 = arith.constant 4 : i32
    %322 = arith.addi %321, %c4_i32_144 : i32
    %323 = arith.index_cast %322 : i32 to index
    %324 = memref.load %arg1[%323] : memref<128xi32, #tpu.memory_space<smem>>
    %325 = arith.index_cast %324 : i32 to index
    %c0_145 = arith.constant 0 : index
    %326 = vector.load %arg8[%325, %c0_145] : memref<16x128xf32, #tpu.memory_space<vmem>>, vector<1x128xf32>
    %327 = arith.addi %3, %7 : i32
    %c5_i32_146 = arith.constant 5 : i32
    %328 = arith.addi %327, %c5_i32_146 : i32
    %c8_i32_147 = arith.constant 8 : i32
    %329 = arith.muli %328, %c8_i32_147 : i32
    %c4_i32_148 = arith.constant 4 : i32
    %330 = arith.addi %329, %c4_i32_148 : i32
    %331 = arith.index_cast %330 : i32 to index
    %332 = memref.load %arg1[%331] : memref<128xi32, #tpu.memory_space<smem>>
    %333 = arith.index_cast %332 : i32 to index
    %c0_149 = arith.constant 0 : index
    %334 = vector.load %arg8[%333, %c0_149] : memref<16x128xf32, #tpu.memory_space<vmem>>, vector<1x128xf32>
    %335 = arith.addi %3, %7 : i32
    %c6_i32_150 = arith.constant 6 : i32
    %336 = arith.addi %335, %c6_i32_150 : i32
    %c8_i32_151 = arith.constant 8 : i32
    %337 = arith.muli %336, %c8_i32_151 : i32
    %c4_i32_152 = arith.constant 4 : i32
    %338 = arith.addi %337, %c4_i32_152 : i32
    %339 = arith.index_cast %338 : i32 to index
    %340 = memref.load %arg1[%339] : memref<128xi32, #tpu.memory_space<smem>>
    %341 = arith.index_cast %340 : i32 to index
    %c0_153 = arith.constant 0 : index
    %342 = vector.load %arg8[%341, %c0_153] : memref<16x128xf32, #tpu.memory_space<vmem>>, vector<1x128xf32>
    %343 = arith.addi %3, %7 : i32
    %c7_i32_154 = arith.constant 7 : i32
    %344 = arith.addi %343, %c7_i32_154 : i32
    %c8_i32_155 = arith.constant 8 : i32
    %345 = arith.muli %344, %c8_i32_155 : i32
    %c4_i32_156 = arith.constant 4 : i32
    %346 = arith.addi %345, %c4_i32_156 : i32
    %347 = arith.index_cast %346 : i32 to index
    %348 = memref.load %arg1[%347] : memref<128xi32, #tpu.memory_space<smem>>
    %349 = arith.index_cast %348 : i32 to index
    %c0_157 = arith.constant 0 : index
    %350 = vector.load %arg8[%349, %c0_157] : memref<16x128xf32, #tpu.memory_space<vmem>>, vector<1x128xf32>
    %351 = tpu.concatenate %294, %302, %310, %318, %326, %334, %342, %350 in 0 : vector<1x128xf32>, vector<1x128xf32>, vector<1x128xf32>, vector<1x128xf32>, vector<1x128xf32>, vector<1x128xf32>, vector<1x128xf32>, vector<1x128xf32> -> vector<8x128xf32>
    %352 = vector.extract_strided_slice %9 {offsets = [0, 4], sizes = [8, 1], strides = [1, 1]} : vector<8x8xf32> to vector<8x1xf32>
    %353 = vector.broadcast %352 : vector<8x1xf32> to vector<8x128xf32>
    %354 = arith.mulf %353, %351 : vector<8x128xf32>
    %355 = arith.addf %286, %354 : vector<8x128xf32>
    %356 = arith.addi %3, %7 : i32
    %c0_i32_158 = arith.constant 0 : i32
    %357 = arith.addi %356, %c0_i32_158 : i32
    %c8_i32_159 = arith.constant 8 : i32
    %358 = arith.muli %357, %c8_i32_159 : i32
    %c5_i32_160 = arith.constant 5 : i32
    %359 = arith.addi %358, %c5_i32_160 : i32
    %360 = arith.index_cast %359 : i32 to index
    %361 = memref.load %arg1[%360] : memref<128xi32, #tpu.memory_space<smem>>
    %362 = arith.index_cast %361 : i32 to index
    %c0_161 = arith.constant 0 : index
    %363 = vector.load %arg8[%362, %c0_161] : memref<16x128xf32, #tpu.memory_space<vmem>>, vector<1x128xf32>
    %364 = arith.addi %3, %7 : i32
    %c1_i32_162 = arith.constant 1 : i32
    %365 = arith.addi %364, %c1_i32_162 : i32
    %c8_i32_163 = arith.constant 8 : i32
    %366 = arith.muli %365, %c8_i32_163 : i32
    %c5_i32_164 = arith.constant 5 : i32
    %367 = arith.addi %366, %c5_i32_164 : i32
    %368 = arith.index_cast %367 : i32 to index
    %369 = memref.load %arg1[%368] : memref<128xi32, #tpu.memory_space<smem>>
    %370 = arith.index_cast %369 : i32 to index
    %c0_165 = arith.constant 0 : index
    %371 = vector.load %arg8[%370, %c0_165] : memref<16x128xf32, #tpu.memory_space<vmem>>, vector<1x128xf32>
    %372 = arith.addi %3, %7 : i32
    %c2_i32_166 = arith.constant 2 : i32
    %373 = arith.addi %372, %c2_i32_166 : i32
    %c8_i32_167 = arith.constant 8 : i32
    %374 = arith.muli %373, %c8_i32_167 : i32
    %c5_i32_168 = arith.constant 5 : i32
    %375 = arith.addi %374, %c5_i32_168 : i32
    %376 = arith.index_cast %375 : i32 to index
    %377 = memref.load %arg1[%376] : memref<128xi32, #tpu.memory_space<smem>>
    %378 = arith.index_cast %377 : i32 to index
    %c0_169 = arith.constant 0 : index
    %379 = vector.load %arg8[%378, %c0_169] : memref<16x128xf32, #tpu.memory_space<vmem>>, vector<1x128xf32>
    %380 = arith.addi %3, %7 : i32
    %c3_i32_170 = arith.constant 3 : i32
    %381 = arith.addi %380, %c3_i32_170 : i32
    %c8_i32_171 = arith.constant 8 : i32
    %382 = arith.muli %381, %c8_i32_171 : i32
    %c5_i32_172 = arith.constant 5 : i32
    %383 = arith.addi %382, %c5_i32_172 : i32
    %384 = arith.index_cast %383 : i32 to index
    %385 = memref.load %arg1[%384] : memref<128xi32, #tpu.memory_space<smem>>
    %386 = arith.index_cast %385 : i32 to index
    %c0_173 = arith.constant 0 : index
    %387 = vector.load %arg8[%386, %c0_173] : memref<16x128xf32, #tpu.memory_space<vmem>>, vector<1x128xf32>
    %388 = arith.addi %3, %7 : i32
    %c4_i32_174 = arith.constant 4 : i32
    %389 = arith.addi %388, %c4_i32_174 : i32
    %c8_i32_175 = arith.constant 8 : i32
    %390 = arith.muli %389, %c8_i32_175 : i32
    %c5_i32_176 = arith.constant 5 : i32
    %391 = arith.addi %390, %c5_i32_176 : i32
    %392 = arith.index_cast %391 : i32 to index
    %393 = memref.load %arg1[%392] : memref<128xi32, #tpu.memory_space<smem>>
    %394 = arith.index_cast %393 : i32 to index
    %c0_177 = arith.constant 0 : index
    %395 = vector.load %arg8[%394, %c0_177] : memref<16x128xf32, #tpu.memory_space<vmem>>, vector<1x128xf32>
    %396 = arith.addi %3, %7 : i32
    %c5_i32_178 = arith.constant 5 : i32
    %397 = arith.addi %396, %c5_i32_178 : i32
    %c8_i32_179 = arith.constant 8 : i32
    %398 = arith.muli %397, %c8_i32_179 : i32
    %c5_i32_180 = arith.constant 5 : i32
    %399 = arith.addi %398, %c5_i32_180 : i32
    %400 = arith.index_cast %399 : i32 to index
    %401 = memref.load %arg1[%400] : memref<128xi32, #tpu.memory_space<smem>>
    %402 = arith.index_cast %401 : i32 to index
    %c0_181 = arith.constant 0 : index
    %403 = vector.load %arg8[%402, %c0_181] : memref<16x128xf32, #tpu.memory_space<vmem>>, vector<1x128xf32>
    %404 = arith.addi %3, %7 : i32
    %c6_i32_182 = arith.constant 6 : i32
    %405 = arith.addi %404, %c6_i32_182 : i32
    %c8_i32_183 = arith.constant 8 : i32
    %406 = arith.muli %405, %c8_i32_183 : i32
    %c5_i32_184 = arith.constant 5 : i32
    %407 = arith.addi %406, %c5_i32_184 : i32
    %408 = arith.index_cast %407 : i32 to index
    %409 = memref.load %arg1[%408] : memref<128xi32, #tpu.memory_space<smem>>
    %410 = arith.index_cast %409 : i32 to index
    %c0_185 = arith.constant 0 : index
    %411 = vector.load %arg8[%410, %c0_185] : memref<16x128xf32, #tpu.memory_space<vmem>>, vector<1x128xf32>
    %412 = arith.addi %3, %7 : i32
    %c7_i32_186 = arith.constant 7 : i32
    %413 = arith.addi %412, %c7_i32_186 : i32
    %c8_i32_187 = arith.constant 8 : i32
    %414 = arith.muli %413, %c8_i32_187 : i32
    %c5_i32_188 = arith.constant 5 : i32
    %415 = arith.addi %414, %c5_i32_188 : i32
    %416 = arith.index_cast %415 : i32 to index
    %417 = memref.load %arg1[%416] : memref<128xi32, #tpu.memory_space<smem>>
    %418 = arith.index_cast %417 : i32 to index
    %c0_189 = arith.constant 0 : index
    %419 = vector.load %arg8[%418, %c0_189] : memref<16x128xf32, #tpu.memory_space<vmem>>, vector<1x128xf32>
    %420 = tpu.concatenate %363, %371, %379, %387, %395, %403, %411, %419 in 0 : vector<1x128xf32>, vector<1x128xf32>, vector<1x128xf32>, vector<1x128xf32>, vector<1x128xf32>, vector<1x128xf32>, vector<1x128xf32>, vector<1x128xf32> -> vector<8x128xf32>
    %421 = vector.extract_strided_slice %9 {offsets = [0, 5], sizes = [8, 1], strides = [1, 1]} : vector<8x8xf32> to vector<8x1xf32>
    %422 = vector.broadcast %421 : vector<8x1xf32> to vector<8x128xf32>
    %423 = arith.mulf %422, %420 : vector<8x128xf32>
    %424 = arith.addf %355, %423 : vector<8x128xf32>
    %425 = arith.addi %3, %7 : i32
    %c0_i32_190 = arith.constant 0 : i32
    %426 = arith.addi %425, %c0_i32_190 : i32
    %c8_i32_191 = arith.constant 8 : i32
    %427 = arith.muli %426, %c8_i32_191 : i32
    %c6_i32_192 = arith.constant 6 : i32
    %428 = arith.addi %427, %c6_i32_192 : i32
    %429 = arith.index_cast %428 : i32 to index
    %430 = memref.load %arg1[%429] : memref<128xi32, #tpu.memory_space<smem>>
    %431 = arith.index_cast %430 : i32 to index
    %c0_193 = arith.constant 0 : index
    %432 = vector.load %arg8[%431, %c0_193] : memref<16x128xf32, #tpu.memory_space<vmem>>, vector<1x128xf32>
    %433 = arith.addi %3, %7 : i32
    %c1_i32_194 = arith.constant 1 : i32
    %434 = arith.addi %433, %c1_i32_194 : i32
    %c8_i32_195 = arith.constant 8 : i32
    %435 = arith.muli %434, %c8_i32_195 : i32
    %c6_i32_196 = arith.constant 6 : i32
    %436 = arith.addi %435, %c6_i32_196 : i32
    %437 = arith.index_cast %436 : i32 to index
    %438 = memref.load %arg1[%437] : memref<128xi32, #tpu.memory_space<smem>>
    %439 = arith.index_cast %438 : i32 to index
    %c0_197 = arith.constant 0 : index
    %440 = vector.load %arg8[%439, %c0_197] : memref<16x128xf32, #tpu.memory_space<vmem>>, vector<1x128xf32>
    %441 = arith.addi %3, %7 : i32
    %c2_i32_198 = arith.constant 2 : i32
    %442 = arith.addi %441, %c2_i32_198 : i32
    %c8_i32_199 = arith.constant 8 : i32
    %443 = arith.muli %442, %c8_i32_199 : i32
    %c6_i32_200 = arith.constant 6 : i32
    %444 = arith.addi %443, %c6_i32_200 : i32
    %445 = arith.index_cast %444 : i32 to index
    %446 = memref.load %arg1[%445] : memref<128xi32, #tpu.memory_space<smem>>
    %447 = arith.index_cast %446 : i32 to index
    %c0_201 = arith.constant 0 : index
    %448 = vector.load %arg8[%447, %c0_201] : memref<16x128xf32, #tpu.memory_space<vmem>>, vector<1x128xf32>
    %449 = arith.addi %3, %7 : i32
    %c3_i32_202 = arith.constant 3 : i32
    %450 = arith.addi %449, %c3_i32_202 : i32
    %c8_i32_203 = arith.constant 8 : i32
    %451 = arith.muli %450, %c8_i32_203 : i32
    %c6_i32_204 = arith.constant 6 : i32
    %452 = arith.addi %451, %c6_i32_204 : i32
    %453 = arith.index_cast %452 : i32 to index
    %454 = memref.load %arg1[%453] : memref<128xi32, #tpu.memory_space<smem>>
    %455 = arith.index_cast %454 : i32 to index
    %c0_205 = arith.constant 0 : index
    %456 = vector.load %arg8[%455, %c0_205] : memref<16x128xf32, #tpu.memory_space<vmem>>, vector<1x128xf32>
    %457 = arith.addi %3, %7 : i32
    %c4_i32_206 = arith.constant 4 : i32
    %458 = arith.addi %457, %c4_i32_206 : i32
    %c8_i32_207 = arith.constant 8 : i32
    %459 = arith.muli %458, %c8_i32_207 : i32
    %c6_i32_208 = arith.constant 6 : i32
    %460 = arith.addi %459, %c6_i32_208 : i32
    %461 = arith.index_cast %460 : i32 to index
    %462 = memref.load %arg1[%461] : memref<128xi32, #tpu.memory_space<smem>>
    %463 = arith.index_cast %462 : i32 to index
    %c0_209 = arith.constant 0 : index
    %464 = vector.load %arg8[%463, %c0_209] : memref<16x128xf32, #tpu.memory_space<vmem>>, vector<1x128xf32>
    %465 = arith.addi %3, %7 : i32
    %c5_i32_210 = arith.constant 5 : i32
    %466 = arith.addi %465, %c5_i32_210 : i32
    %c8_i32_211 = arith.constant 8 : i32
    %467 = arith.muli %466, %c8_i32_211 : i32
    %c6_i32_212 = arith.constant 6 : i32
    %468 = arith.addi %467, %c6_i32_212 : i32
    %469 = arith.index_cast %468 : i32 to index
    %470 = memref.load %arg1[%469] : memref<128xi32, #tpu.memory_space<smem>>
    %471 = arith.index_cast %470 : i32 to index
    %c0_213 = arith.constant 0 : index
    %472 = vector.load %arg8[%471, %c0_213] : memref<16x128xf32, #tpu.memory_space<vmem>>, vector<1x128xf32>
    %473 = arith.addi %3, %7 : i32
    %c6_i32_214 = arith.constant 6 : i32
    %474 = arith.addi %473, %c6_i32_214 : i32
    %c8_i32_215 = arith.constant 8 : i32
    %475 = arith.muli %474, %c8_i32_215 : i32
    %c6_i32_216 = arith.constant 6 : i32
    %476 = arith.addi %475, %c6_i32_216 : i32
    %477 = arith.index_cast %476 : i32 to index
    %478 = memref.load %arg1[%477] : memref<128xi32, #tpu.memory_space<smem>>
    %479 = arith.index_cast %478 : i32 to index
    %c0_217 = arith.constant 0 : index
    %480 = vector.load %arg8[%479, %c0_217] : memref<16x128xf32, #tpu.memory_space<vmem>>, vector<1x128xf32>
    %481 = arith.addi %3, %7 : i32
    %c7_i32_218 = arith.constant 7 : i32
    %482 = arith.addi %481, %c7_i32_218 : i32
    %c8_i32_219 = arith.constant 8 : i32
    %483 = arith.muli %482, %c8_i32_219 : i32
    %c6_i32_220 = arith.constant 6 : i32
    %484 = arith.addi %483, %c6_i32_220 : i32
    %485 = arith.index_cast %484 : i32 to index
    %486 = memref.load %arg1[%485] : memref<128xi32, #tpu.memory_space<smem>>
    %487 = arith.index_cast %486 : i32 to index
    %c0_221 = arith.constant 0 : index
    %488 = vector.load %arg8[%487, %c0_221] : memref<16x128xf32, #tpu.memory_space<vmem>>, vector<1x128xf32>
    %489 = tpu.concatenate %432, %440, %448, %456, %464, %472, %480, %488 in 0 : vector<1x128xf32>, vector<1x128xf32>, vector<1x128xf32>, vector<1x128xf32>, vector<1x128xf32>, vector<1x128xf32>, vector<1x128xf32>, vector<1x128xf32> -> vector<8x128xf32>
    %490 = vector.extract_strided_slice %9 {offsets = [0, 6], sizes = [8, 1], strides = [1, 1]} : vector<8x8xf32> to vector<8x1xf32>
    %491 = vector.broadcast %490 : vector<8x1xf32> to vector<8x128xf32>
    %492 = arith.mulf %491, %489 : vector<8x128xf32>
    %493 = arith.addf %424, %492 : vector<8x128xf32>
    %494 = arith.addi %3, %7 : i32
    %c0_i32_222 = arith.constant 0 : i32
    %495 = arith.addi %494, %c0_i32_222 : i32
    %c8_i32_223 = arith.constant 8 : i32
    %496 = arith.muli %495, %c8_i32_223 : i32
    %c7_i32_224 = arith.constant 7 : i32
    %497 = arith.addi %496, %c7_i32_224 : i32
    %498 = arith.index_cast %497 : i32 to index
    %499 = memref.load %arg1[%498] : memref<128xi32, #tpu.memory_space<smem>>
    %500 = arith.index_cast %499 : i32 to index
    %c0_225 = arith.constant 0 : index
    %501 = vector.load %arg8[%500, %c0_225] : memref<16x128xf32, #tpu.memory_space<vmem>>, vector<1x128xf32>
    %502 = arith.addi %3, %7 : i32
    %c1_i32_226 = arith.constant 1 : i32
    %503 = arith.addi %502, %c1_i32_226 : i32
    %c8_i32_227 = arith.constant 8 : i32
    %504 = arith.muli %503, %c8_i32_227 : i32
    %c7_i32_228 = arith.constant 7 : i32
    %505 = arith.addi %504, %c7_i32_228 : i32
    %506 = arith.index_cast %505 : i32 to index
    %507 = memref.load %arg1[%506] : memref<128xi32, #tpu.memory_space<smem>>
    %508 = arith.index_cast %507 : i32 to index
    %c0_229 = arith.constant 0 : index
    %509 = vector.load %arg8[%508, %c0_229] : memref<16x128xf32, #tpu.memory_space<vmem>>, vector<1x128xf32>
    %510 = arith.addi %3, %7 : i32
    %c2_i32_230 = arith.constant 2 : i32
    %511 = arith.addi %510, %c2_i32_230 : i32
    %c8_i32_231 = arith.constant 8 : i32
    %512 = arith.muli %511, %c8_i32_231 : i32
    %c7_i32_232 = arith.constant 7 : i32
    %513 = arith.addi %512, %c7_i32_232 : i32
    %514 = arith.index_cast %513 : i32 to index
    %515 = memref.load %arg1[%514] : memref<128xi32, #tpu.memory_space<smem>>
    %516 = arith.index_cast %515 : i32 to index
    %c0_233 = arith.constant 0 : index
    %517 = vector.load %arg8[%516, %c0_233] : memref<16x128xf32, #tpu.memory_space<vmem>>, vector<1x128xf32>
    %518 = arith.addi %3, %7 : i32
    %c3_i32_234 = arith.constant 3 : i32
    %519 = arith.addi %518, %c3_i32_234 : i32
    %c8_i32_235 = arith.constant 8 : i32
    %520 = arith.muli %519, %c8_i32_235 : i32
    %c7_i32_236 = arith.constant 7 : i32
    %521 = arith.addi %520, %c7_i32_236 : i32
    %522 = arith.index_cast %521 : i32 to index
    %523 = memref.load %arg1[%522] : memref<128xi32, #tpu.memory_space<smem>>
    %524 = arith.index_cast %523 : i32 to index
    %c0_237 = arith.constant 0 : index
    %525 = vector.load %arg8[%524, %c0_237] : memref<16x128xf32, #tpu.memory_space<vmem>>, vector<1x128xf32>
    %526 = arith.addi %3, %7 : i32
    %c4_i32_238 = arith.constant 4 : i32
    %527 = arith.addi %526, %c4_i32_238 : i32
    %c8_i32_239 = arith.constant 8 : i32
    %528 = arith.muli %527, %c8_i32_239 : i32
    %c7_i32_240 = arith.constant 7 : i32
    %529 = arith.addi %528, %c7_i32_240 : i32
    %530 = arith.index_cast %529 : i32 to index
    %531 = memref.load %arg1[%530] : memref<128xi32, #tpu.memory_space<smem>>
    %532 = arith.index_cast %531 : i32 to index
    %c0_241 = arith.constant 0 : index
    %533 = vector.load %arg8[%532, %c0_241] : memref<16x128xf32, #tpu.memory_space<vmem>>, vector<1x128xf32>
    %534 = arith.addi %3, %7 : i32
    %c5_i32_242 = arith.constant 5 : i32
    %535 = arith.addi %534, %c5_i32_242 : i32
    %c8_i32_243 = arith.constant 8 : i32
    %536 = arith.muli %535, %c8_i32_243 : i32
    %c7_i32_244 = arith.constant 7 : i32
    %537 = arith.addi %536, %c7_i32_244 : i32
    %538 = arith.index_cast %537 : i32 to index
    %539 = memref.load %arg1[%538] : memref<128xi32, #tpu.memory_space<smem>>
    %540 = arith.index_cast %539 : i32 to index
    %c0_245 = arith.constant 0 : index
    %541 = vector.load %arg8[%540, %c0_245] : memref<16x128xf32, #tpu.memory_space<vmem>>, vector<1x128xf32>
    %542 = arith.addi %3, %7 : i32
    %c6_i32_246 = arith.constant 6 : i32
    %543 = arith.addi %542, %c6_i32_246 : i32
    %c8_i32_247 = arith.constant 8 : i32
    %544 = arith.muli %543, %c8_i32_247 : i32
    %c7_i32_248 = arith.constant 7 : i32
    %545 = arith.addi %544, %c7_i32_248 : i32
    %546 = arith.index_cast %545 : i32 to index
    %547 = memref.load %arg1[%546] : memref<128xi32, #tpu.memory_space<smem>>
    %548 = arith.index_cast %547 : i32 to index
    %c0_249 = arith.constant 0 : index
    %549 = vector.load %arg8[%548, %c0_249] : memref<16x128xf32, #tpu.memory_space<vmem>>, vector<1x128xf32>
    %550 = arith.addi %3, %7 : i32
    %c7_i32_250 = arith.constant 7 : i32
    %551 = arith.addi %550, %c7_i32_250 : i32
    %c8_i32_251 = arith.constant 8 : i32
    %552 = arith.muli %551, %c8_i32_251 : i32
    %c7_i32_252 = arith.constant 7 : i32
    %553 = arith.addi %552, %c7_i32_252 : i32
    %554 = arith.index_cast %553 : i32 to index
    %555 = memref.load %arg1[%554] : memref<128xi32, #tpu.memory_space<smem>>
    %556 = arith.index_cast %555 : i32 to index
    %c0_253 = arith.constant 0 : index
    %557 = vector.load %arg8[%556, %c0_253] : memref<16x128xf32, #tpu.memory_space<vmem>>, vector<1x128xf32>
    %558 = tpu.concatenate %501, %509, %517, %525, %533, %541, %549, %557 in 0 : vector<1x128xf32>, vector<1x128xf32>, vector<1x128xf32>, vector<1x128xf32>, vector<1x128xf32>, vector<1x128xf32>, vector<1x128xf32>, vector<1x128xf32> -> vector<8x128xf32>
    %559 = vector.extract_strided_slice %9 {offsets = [0, 7], sizes = [8, 1], strides = [1, 1]} : vector<8x8xf32> to vector<8x1xf32>
    %560 = vector.broadcast %559 : vector<8x1xf32> to vector<8x128xf32>
    %561 = arith.mulf %560, %558 : vector<8x128xf32>
    %562 = arith.addf %493, %561 : vector<8x128xf32>
    %cst_254 = arith.constant 0.000000e+00 : f32
    %563 = vector.broadcast %cst_254 : f32 to vector<8x128xf32>
    %564 = arith.maximumf %562, %563 : vector<8x128xf32>
    %565 = arith.index_cast %7 : i32 to index
    %c0_255 = arith.constant 0 : index
    %566 = vector.load %arg9[%565, %c0_255] : memref<8x128xf32, #tpu.memory_space<vmem>>, vector<8x128xf32>
    tpu.vector_store %arg9[%565, %c0_255], %564 {strides = array<i32>} : memref<8x128xf32, #tpu.memory_space<vmem>>, vector<8x128xf32>,
    %c1_i32_256 = arith.constant 1 : i32
    %c0_257 = arith.constant 0 : index
    %c0_258 = arith.constant 0 : index
    %567 = vector.load %arg9[%c0_257, %c0_258] : memref<8x128xf32, #tpu.memory_space<vmem>>, vector<8x128xf32>
    %568 = arith.truncf %567 : vector<8x128xf32> to vector<8x128xbf16>
    %c0_259 = arith.constant 0 : index
    %c0_260 = arith.constant 0 : index
    %569 = vector.load %arg6[%c0_259, %c0_260] : memref<128x128xbf16, #tpu.memory_space<vmem>>, vector<128x128xbf16>
    %cst_261 = arith.constant dense<0.000000e+00> : vector<8x128xf32>
    %570 = tpu.matmul %568, %569, %cst_261 {dimension_numbers = #tpu.dot_dimension_numbers<[1], [0], [0], [1], [0, 0, 1, 1], [], []>} : vector<8x128xbf16>, vector<128x128xbf16>, vector<8x128xf32> -> vector<8x128xf32>
    %c0_262 = arith.constant 0 : index
    %c0_263 = arith.constant 0 : index
    %571 = vector.load %arg7[%c0_262, %c0_263] : memref<8x128xf32, #tpu.memory_space<vmem>>, vector<8x128xf32>
    tpu.vector_store %arg7[%c0_262, %c0_263], %570 {strides = array<i32>} : memref<8x128xf32, #tpu.memory_space<vmem>>, vector<8x128xf32>,
    return
  }
  func.func @transform_0(%arg0: i32) -> i32 {
    %c0_i32 = arith.constant 0 : i32
    %c0_i32_0 = arith.constant 0 : i32
    return %c0_i32 : i32
  }
  func.func @transform_1(%arg0: i32) -> (i32, i32) {
    %c0_i32 = arith.constant 0 : i32
    %c0_i32_0 = arith.constant 0 : i32
    %c0_i32_1 = arith.constant 0 : i32
    return %c0_i32, %c0_i32_0 : i32, i32
  }
  func.func @transform_2(%arg0: i32) -> (i32, i32) {
    %c0_i32 = arith.constant 0 : i32
    %c0_i32_0 = arith.constant 0 : i32
    %c0_i32_1 = arith.constant 0 : i32
    return %c0_i32, %c0_i32_0 : i32, i32
  }
  func.func @transform_3(%arg0: i32) -> (i32, i32) {
    %c0_i32 = arith.constant 0 : i32
    %c0_i32_0 = arith.constant 0 : i32
    %c0_i32_1 = arith.constant 0 : i32
    return %c0_i32, %c0_i32_0 : i32, i32
  }
  func.func @transform_4(%arg0: i32) -> (i32, i32) {
    %c0_i32 = arith.constant 0 : i32
    %c0_i32_0 = arith.constant 0 : i32
    return %arg0, %c0_i32 : i32, i32
  }
  func.func @transform_5(%arg0: i32) -> (i32, i32) {
    %c0_i32 = arith.constant 0 : i32
    %c0_i32_0 = arith.constant 0 : i32
    %c0_i32_1 = arith.constant 0 : i32
    return %c0_i32, %c0_i32_0 : i32, i32
  }
  func.func @transform_6(%arg0: i32) -> (i32, i32) {
    %c0_i32 = arith.constant 0 : i32
    %c0_i32_0 = arith.constant 0 : i32
    return %arg0, %c0_i32 : i32, i32
  }
}

</mosaic_0001>

<llo_original>
// kernel: hgnn_layer_forward.3
$region0: #{hgnn_layer_forward.3}
  #allocation0 [shape = 'u32[]', space=smem, size = 0x4, offset = 0x4, fixed_abs, tag = 'smem constant byte address 0x4 - core index']
  #allocation1 [shape = 'u32[144,128]{1,0:T(1,128)}', space=vmem, size = 0x12000, scoped, tag = 'internal scratch']
  %s0 = inlined_call_operand.vmem [shape: s32[128], index: 0, kind: input, shape index: {}]
  %s1 = inlined_call_operand.vmem [shape: f32[16,8], index: 1, kind: input, shape index: {}]
  %s2 = inlined_call_operand.vmem [shape: f32[16,128], index: 2, kind: input, shape index: {}]
  %s3 = inlined_call_operand.hbm [shape: f32[16,128], index: 3, kind: output, shape index: {}]
  %s4 = sld [smem:[#allocation0]]
  $region49: #{hgnn_layer_forward.3} parent=0
    _
  %s6 = ssub.s32 1, %s4
  %s7 = scalar_select 0, %s6, %s4
  $region1: #{hgnn_layer_forward.3} parent=0
    #allocation2 [shape = 'u8[512]{0}', space=smem, size = 0x200, scoped, tag = 'input window, operand 0, single buffered']
    #allocation3 [shape = 's32[2]{0}', space=sflag, size = 0x8, scoped, tag = 'scoped memory for hgnn_layer_forward.3']
    #allocation4 [shape = 's32[2]{0}', space=sflag, size = 0x8, scoped, tag = 'scoped memory for hgnn_layer_forward.3']
    #allocation5 [shape = 'u8[8192]{0}', space=vmem, size = 0x2000, scoped, tag = 'output window, operand 0']
    %8 = vsyncpa [#allocation4], 0
    %9 = vsyncpa [#allocation3], 0
    %s10 = scalar_lea.sflag [#allocation3], 1
    %11 = vsyncpa %s10, 0
    loop: start=0, step=1, limit=4
    $region2: #{hgnn_layer_forward.3} parent=1 // loop_pre_header
      _
    $region3: #{hgnn_layer_forward.3} parent=1 // loop_header
      %s13 = sphi 0, %s17
      %p14 = scmp.ge.s32.totalorder %s13, 4
      %s21 = sphi 0, %s21
      %s23 = sphi 0, %s21
      %s24 = sphi 0, %s23
      %s38 = sphi 0, %s24
      %s44 = sphi 0, %s46
      %s47 = sphi 0, %s44
      %s48 = sphi 0, %s47
      %s64 = sphi 0, %s48
      %s68 = sphi 0, %s68
      %s70 = sphi 0, %s68
      %s71 = sphi 0, %s70
      %s85 = sphi 0, %s71
      %s91 = sphi 0, %s93
      %s94 = sphi 0, %s91
      %s95 = sphi 0, %s94
      %s111 = sphi 0, %s95
    $region4: #{hgnn_layer_forward.3} parent=1 // loop_header_branch
      %16 = sbr.rel (%p14) target = $region8
    $region5: #{hgnn_layer_forward.3} parent=1 // loop_body
      %s18 = ssub.s32 %s13, 1
      %s19 = ssub.s32 %s13, 2
      %s20 = sadd.s32 %s13, 1
      %s22 = sadd.s32 %s21, 1
      %p25 = scmp.eq.s32.totalorder %s13, 1
      %p26 = scmp.ne.s32.totalorder %s21, %s23
      %p27 = scmp.eq.s32.totalorder %s13, 0
      %p28 = por %p26, %p27
      %p29 = scmp.ne.s32.totalorder %s21, %s23
      %p30 = scmp.eq.s32.totalorder %s18, 1
      %p31 = por %p29, %p30
      %p32 = scmp.ne.s32.totalorder %s23, %s24
      %p33 = scmp.eq.s32.totalorder %s18, 0
      %p34 = por %p32, %p33
      %p35 = scmp.ne.s32.totalorder %s23, %s24
      %p36 = scmp.eq.s32.totalorder %s19, 1
      %p37 = por %p35, %p36
      %p39 = scmp.ne.s32.totalorder %s24, %s38
      %p40 = scmp.eq.s32.totalorder %s19, 0
      %p41 = por %p39, %p40
      %s42 = ssub.s32 %s13, %s20
      %p43 = scmp.eq.s32.totalorder %s42, 0
      %s45 = sadd.s32 %s44, 1
      %s46 = scalar_select %p43, %s44, %s45
      %p49 = pneg %p43
      %p50 = scmp.eq.s32.totalorder %s13, 1
      %p51 = por %p49, %p50
      %p52 = scmp.ne.s32.totalorder %s44, %s47
      %p53 = scmp.eq.s32.totalorder %s13, 0
      %p54 = por %p52, %p53
      %p55 = scmp.ne.s32.totalorder %s44, %s47
      %p56 = scmp.eq.s32.totalorder %s18, 1
      %p57 = por %p55, %p56
      %p58 = scmp.ne.s32.totalorder %s47, %s48
      %p59 = scmp.eq.s32.totalorder %s18, 0
      %p60 = por %p58, %p59
      %p61 = scmp.ne.s32.totalorder %s47, %s48
      %p62 = scmp.eq.s32.totalorder %s19, 1
      %p63 = por %p61, %p62
      %p65 = scmp.ne.s32.totalorder %s48, %s64
      %p66 = scmp.eq.s32.totalorder %s19, 0
      %p67 = por %p65, %p66
      %s69 = sadd.s32 %s68, 1
      %p72 = scmp.eq.s32.totalorder %s13, 1
      %p73 = scmp.ne.s32.totalorder %s68, %s70
      %p74 = scmp.eq.s32.totalorder %s13, 0
      %p75 = por %p73, %p74
      %p76 = scmp.ne.s32.totalorder %s68, %s70
      %p77 = scmp.eq.s32.totalorder %s18, 1
      %p78 = por %p76, %p77
      %p79 = scmp.ne.s32.totalorder %s70, %s71
      %p80 = scmp.eq.s32.totalorder %s18, 0
      %p81 = por %p79, %p80
      %p82 = scmp.ne.s32.totalorder %s70, %s71
      %p83 = scmp.eq.s32.totalorder %s19, 1
      %p84 = por %p82, %p83
      %p86 = scmp.ne.s32.totalorder %s71, %s85
      %p87 = scmp.eq.s32.totalorder %s19, 0
      %p88 = por %p86, %p87
      %s89 = ssub.s32 %s13, %s20
      %p90 = scmp.eq.s32.totalorder %s89, 0
      %s92 = sadd.s32 %s91, 1
      %s93 = scalar_select %p90, %s91, %s92
      %p96 = pneg %p90
      %p97 = scmp.eq.s32.totalorder %s13, 1
      %p98 = por %p96, %p97
      %p99 = scmp.ne.s32.totalorder %s91, %s94
      %p100 = scmp.eq.s32.totalorder %s13, 0
      %p101 = por %p99, %p100
      %p102 = scmp.ne.s32.totalorder %s91, %s94
      %p103 = scmp.eq.s32.totalorder %s18, 1
      %p104 = por %p102, %p103
      %p105 = scmp.ne.s32.totalorder %s94, %s95
      %p106 = scmp.eq.s32.totalorder %s18, 0
      %p107 = por %p105, %p106
      %p108 = scmp.ne.s32.totalorder %s94, %s95
      %p109 = scmp.eq.s32.totalorder %s19, 1
      %p110 = por %p108, %p109
      %p112 = scmp.ne.s32.totalorder %s95, %s111
      %p113 = scmp.eq.s32.totalorder %s19, 0
      %p114 = por %p112, %p113
      %p115 = scmp.le.s32.totalorder 1, %s13
      %p116 = scmp.lt.s32.totalorder %s13, 3
      %p117 = pnand %p115, %p116
      %p118 = pneg %p117
      // Predicated region
      $region9: #{hgnn_layer_forward.3} parent=5 // pred_check
        _
      $region10: #{hgnn_layer_forward.3} parent=5 // pred_check_branch
        %120 = sbr.rel (%p117) target = $region12
      $region11: #{hgnn_layer_forward.3} parent=5 // pred_region
        %s121 = ssub.s32 %s13, 1
        // Predicated region
        $region13: #{hgnn_layer_forward.3} parent=11 // pred_check
          %p122 = pneg %p34
        $region14: #{hgnn_layer_forward.3} parent=11 // pred_check_branch
          %124 = sbr.rel (%p122) target = $region16
        $region15: #{hgnn_layer_forward.3} parent=11 // pred_region
          %s126 = ssub.s32 16, 16
          %127 = vsyncadd [#allocation4], %s126
          %s129 = sshll.u32 %s0, 4
          %s130 = int_to_ptr.vmem [resolvable:$true] %s129
          %132 = dma.vmem_to_smem %s130, 16, [#allocation2], [#allocation4]
        $region16: #{hgnn_layer_forward.3} parent=11 // pred_fallthru
          _
        // Predicated region
        $region17: #{hgnn_layer_forward.3} parent=11 // pred_check
          %p133 = pneg %p81
        $region18: #{hgnn_layer_forward.3} parent=11 // pred_check_branch
          %135 = sbr.rel (%p133) target = $region20
        $region19: #{hgnn_layer_forward.3} parent=11 // pred_region
          _
        $region20: #{hgnn_layer_forward.3} parent=11 // pred_fallthru
          _
      $region12: #{hgnn_layer_forward.3} parent=5 // pred_fallthru
        _
      %p136 = scmp.lt.s32.totalorder %s13, 2
      // Predicated region
      $region21: #{hgnn_layer_forward.3} parent=5 // pred_check
        %p137 = pneg %p136
      $region22: #{hgnn_layer_forward.3} parent=5 // pred_check_branch
        %139 = sbr.rel (%p137) target = $region24
      $region23: #{hgnn_layer_forward.3} parent=5 // pred_region
        // Predicated region
        $region25: #{hgnn_layer_forward.3} parent=23 // pred_check
          %p140 = pneg %p54
        $region26: #{hgnn_layer_forward.3} parent=23 // pred_check_branch
          %142 = sbr.rel (%p140) target = $region28
        $region27: #{hgnn_layer_forward.3} parent=23 // pred_region
          %p143 = scmp.lt.s32.totalorder %s13, 1
          %s144 = scalar_select %p143, %s13, 1
          %s145 = smul.addr %s144, 8
          %s146 = scalar_lea.vmem %s1, %s145
        $region28: #{hgnn_layer_forward.3} parent=23 // pred_fallthru
          _
      $region24: #{hgnn_layer_forward.3} parent=5 // pred_fallthru
        _
      %p147 = scmp.le.s32.totalorder 1, %s13
      %p148 = scmp.lt.s32.totalorder %s13, 3
      %p149 = pnand %p147, %p148
      %p150 = pneg %p149
      // Predicated region
      $region29: #{hgnn_layer_forward.3} parent=5 // pred_check
        _
      $region30: #{hgnn_layer_forward.3} parent=5 // pred_check_branch
        %152 = sbr.rel (%p149) target = $region32
      $region31: #{hgnn_layer_forward.3} parent=5 // pred_region
        %s153 = ssub.s32 %s13, 1
        // Predicated region
        $region33: #{hgnn_layer_forward.3} parent=31 // pred_check
          %p154 = pneg %p34
        $region34: #{hgnn_layer_forward.3} parent=31 // pred_check_branch
          %156 = sbr.rel (%p154) target = $region36
        $region35: #{hgnn_layer_forward.3} parent=31 // pred_region
          %157 = dma.done [#allocation4], 16
        $region36: #{hgnn_layer_forward.3} parent=31 // pred_fallthru
          _
        %158 = sfence
        %p159 = pneg %p34
        %p160 = pneg %p31
        %p161 = scmp.lt.s32.totalorder %s18, 1
        %s162 = scalar_select %p161, %s18, 1
        %s163 = smul.addr %s162, 8
        %s164 = scalar_lea.vmem %s1, %s163
        %p165 = pneg %p60
        %p166 = pneg %p57
        %p167 = pneg %p81
        %p168 = pneg %p78
        %p169 = pneg %p107
        %p170 = pneg %p104
        %s171 = sand.u32 %s94, 1
        %s172 = scalar_lea.sflag [#allocation3], %s171
        %s173 = sand.u32 %s94, 1
        %s174 = smul.addr %s173, 8
        %s175 = scalar_lea.vmem [#allocation5], %s174
        %p176 = scmp.lt.s32.totalorder %s18, 1
        %s177 = scalar_select %p176, %s18, 1
        %s178 = smul.addr %s177, 8
        %s179 = scalar_lea.vmem %s1, %s178
        %s180 = smul.u32 %s18, 8
        %v181 = vld [vmem:[%s179] sm:$0xff]
        %s182 = sadd.s32 %s180, 0
        %s183 = smul.u32 %s182, 8
        %s184 = sld [smem:[#allocation2 + %s183]]
        %s185 = scalar_lea.vmem %s2, %s184
        %v186 = vld [vmem:[%s185] sm:$0x1]
        %s187 = sadd.s32 %s182, 1
        %s188 = smul.u32 %s187, 8
        %s189 = sld [smem:[#allocation2 + %s188]]
        %s190 = scalar_lea.vmem %s2, %s189
        %v191 = vld [vmem:[%s190] sm:$0x1]
        %s192 = sadd.s32 %s182, 2
        %s193 = smul.u32 %s192, 8
        %s194 = sld [smem:[#allocation2 + %s193]]
        %s195 = scalar_lea.vmem %s2, %s194
        %v196 = vld [vmem:[%s195] sm:$0x1]
        %s197 = sadd.s32 %s182, 3
        %s198 = smul.u32 %s197, 8
        %s199 = sld [smem:[#allocation2 + %s198]]
        %s200 = scalar_lea.vmem %s2, %s199
        %v201 = vld [vmem:[%s200] sm:$0x1]
        %s202 = sadd.s32 %s182, 4
        %s203 = smul.u32 %s202, 8
        %s204 = sld [smem:[#allocation2 + %s203]]
        %s205 = scalar_lea.vmem %s2, %s204
        %v206 = vld [vmem:[%s205] sm:$0x1]
        %s207 = sadd.s32 %s182, 5
        %s208 = smul.u32 %s207, 8
        %s209 = sld [smem:[#allocation2 + %s208]]
        %s210 = scalar_lea.vmem %s2, %s209
        %v211 = vld [vmem:[%s210] sm:$0x1]
        %s212 = sadd.s32 %s182, 6
        %s213 = smul.u32 %s212, 8
        %s214 = sld [smem:[#allocation2 + %s213]]
        %s215 = scalar_lea.vmem %s2, %s214
        %v216 = vld [vmem:[%s215] sm:$0x1]
        %s217 = sadd.s32 %s182, 7
        %s218 = smul.u32 %s217, 8
        %s219 = sld [smem:[#allocation2 + %s218]]
        %s220 = scalar_lea.vmem %s2, %s219
        %v221 = vld [vmem:[%s220] sm:$0x1]
        %v223 = vrot.slane %v191, 7
        %v226 = vrot.slane %v196, 6
        %v229 = vrot.slane %v201, 5
        %v232 = vrot.slane %v206, 4
        %v235 = vrot.slane %v211, 3
        %v238 = vrot.slane %v216, 2
        %v241 = vrot.slane %v221, 1
        %vm243 = vcmask 1040384
        %v244 = vsel %vm243, %v186, %v223
        %vm245 = vcmask 1041408
        %v246 = vsel %vm245, %v244, %v226
        %vm247 = vcmask 1042432
        %v248 = vsel %vm247, %v246, %v229
        %vm249 = vcmask 1043456
        %v250 = vsel %vm249, %v248, %v232
        %vm251 = vcmask 1044480
        %v252 = vsel %vm251, %v250, %v235
        %vm253 = vcmask 1045504
        %v254 = vsel %vm253, %v252, %v238
        %vm255 = vcmask 1046528
        %v256 = vsel %vm255, %v254, %v241
        %258 = vset.pattern.permute.xlu0 0
        %259 = vperm.xlu0 %258, %v181
        %v260 = vpop.permute.xlu0 %259
        %v262 = vmul.f32 %v260, %v256
        %v263 = vadd.f32 %v262, 0.0
        %s264 = sadd.s32 %s183, 1
        %s265 = sld [smem:[#allocation2 + %s264]]
        %s266 = scalar_lea.vmem %s2, %s265
        %v267 = vld [vmem:[%s266] sm:$0x1]
        %s268 = sadd.s32 %s188, 1
        %s269 = sld [smem:[#allocation2 + %s268]]
        %s270 = scalar_lea.vmem %s2, %s269
        %v271 = vld [vmem:[%s270] sm:$0x1]
        %s272 = sadd.s32 %s193, 1
        %s273 = sld [smem:[#allocation2 + %s272]]
        %s274 = scalar_lea.vmem %s2, %s273
        %v275 = vld [vmem:[%s274] sm:$0x1]
        %s276 = sadd.s32 %s198, 1
        %s277 = sld [smem:[#allocation2 + %s276]]
        %s278 = scalar_lea.vmem %s2, %s277
        %v279 = vld [vmem:[%s278] sm:$0x1]
        %s280 = sadd.s32 %s203, 1
        %s281 = sld [smem:[#allocation2 + %s280]]
        %s282 = scalar_lea.vmem %s2, %s281
        %v283 = vld [vmem:[%s282] sm:$0x1]
        %s284 = sadd.s32 %s208, 1
        %s285 = sld [smem:[#allocation2 + %s284]]
        %s286 = scalar_lea.vmem %s2, %s285
        %v287 = vld [vmem:[%s286] sm:$0x1]
        %s288 = sadd.s32 %s213, 1
        %s289 = sld [smem:[#allocation2 + %s288]]
        %s290 = scalar_lea.vmem %s2, %s289
        %v291 = vld [vmem:[%s290] sm:$0x1]
        %s292 = sadd.s32 %s218, 1
        %s293 = sld [smem:[#allocation2 + %s292]]
        %s294 = scalar_lea.vmem %s2, %s293
        %v295 = vld [vmem:[%s294] sm:$0x1]
        %v297 = vrot.slane %v271, 7
        %v300 = vrot.slane %v275, 6
        %v303 = vrot.slane %v279, 5
        %v306 = vrot.slane %v283, 4
        %v309 = vrot.slane %v287, 3
        %v312 = vrot.slane %v291, 2
        %v315 = vrot.slane %v295, 1
        %v317 = vsel %vm243, %v267, %v297
        %v318 = vsel %vm245, %v317, %v300
        %v319 = vsel %vm247, %v318, %v303
        %v320 = vsel %vm249, %v319, %v306
        %v321 = vsel %vm251, %v320, %v309
        %v322 = vsel %vm253, %v321, %v312
        %v323 = vsel %vm255, %v322, %v315
        %324 = vset.pattern.permute.xlu0 1
        %325 = vperm.xlu0 %324, %v181
        %v326 = vpop.permute.xlu0 %325
        %v328 = vmul.f32 %v326, %v323
        %v329 = vadd.f32 %v263, %v328
        %s330 = sadd.s32 %s183, 2
        %s331 = sld [smem:[#allocation2 + %s330]]
        %s332 = scalar_lea.vmem %s2, %s331
        %v333 = vld [vmem:[%s332] sm:$0x1]
        %s334 = sadd.s32 %s188, 2
        %s335 = sld [smem:[#allocation2 + %s334]]
        %s336 = scalar_lea.vmem %s2, %s335
        %v337 = vld [vmem:[%s336] sm:$0x1]
        %s338 = sadd.s32 %s193, 2
        %s339 = sld [smem:[#allocation2 + %s338]]
        %s340 = scalar_lea.vmem %s2, %s339
        %v341 = vld [vmem:[%s340] sm:$0x1]
        %s342 = sadd.s32 %s198, 2
        %s343 = sld [smem:[#allocation2 + %s342]]
        %s344 = scalar_lea.vmem %s2, %s343
        %v345 = vld [vmem:[%s344] sm:$0x1]
        %s346 = sadd.s32 %s203, 2
        %s347 = sld [smem:[#allocation2 + %s346]]
        %s348 = scalar_lea.vmem %s2, %s347
        %v349 = vld [vmem:[%s348] sm:$0x1]
        %s350 = sadd.s32 %s208, 2
        %s351 = sld [smem:[#allocation2 + %s350]]
        %s352 = scalar_lea.vmem %s2, %s351
        %v353 = vld [vmem:[%s352] sm:$0x1]
        %s354 = sadd.s32 %s213, 2
        %s355 = sld [smem:[#allocation2 + %s354]]
        %s356 = scalar_lea.vmem %s2, %s355
        %v357 = vld [vmem:[%s356] sm:$0x1]
        %s358 = sadd.s32 %s218, 2
        %s359 = sld [smem:[#allocation2 + %s358]]
        %s360 = scalar_lea.vmem %s2, %s359
        %v361 = vld [vmem:[%s360] sm:$0x1]
        %v363 = vrot.slane %v337, 7
        %v366 = vrot.slane %v341, 6
        %v369 = vrot.slane %v345, 5
        %v372 = vrot.slane %v349, 4
        %v375 = vrot.slane %v353, 3
        %v378 = vrot.slane %v357, 2
        %v381 = vrot.slane %v361, 1
        %v383 = vsel %vm243, %v333, %v363
        %v384 = vsel %vm245, %v383, %v366
        %v385 = vsel %vm247, %v384, %v369
        %v386 = vsel %vm249, %v385, %v372
        %v387 = vsel %vm251, %v386, %v375
        %v388 = vsel %vm253, %v387, %v378
        %v389 = vsel %vm255, %v388, %v381
        %390 = vset.pattern.permute.xlu0 2
        %391 = vperm.xlu0 %390, %v181
        %v392 = vpop.permute.xlu0 %391
        %v394 = vmul.f32 %v392, %v389
        %v395 = vadd.f32 %v329, %v394
        %s396 = sadd.s32 %s183, 3
        %s397 = sld [smem:[#allocation2 + %s396]]
        %s398 = scalar_lea.vmem %s2, %s397
        %v399 = vld [vmem:[%s398] sm:$0x1]
        %s400 = sadd.s32 %s188, 3
        %s401 = sld [smem:[#allocation2 + %s400]]
        %s402 = scalar_lea.vmem %s2, %s401
        %v403 = vld [vmem:[%s402] sm:$0x1]
        %s404 = sadd.s32 %s193, 3
        %s405 = sld [smem:[#allocation2 + %s404]]
        %s406 = scalar_lea.vmem %s2, %s405
        %v407 = vld [vmem:[%s406] sm:$0x1]
        %s408 = sadd.s32 %s198, 3
        %s409 = sld [smem:[#allocation2 + %s408]]
        %s410 = scalar_lea.vmem %s2, %s409
        %v411 = vld [vmem:[%s410] sm:$0x1]
        %s412 = sadd.s32 %s203, 3
        %s413 = sld [smem:[#allocation2 + %s412]]
        %s414 = scalar_lea.vmem %s2, %s413
        %v415 = vld [vmem:[%s414] sm:$0x1]
        %s416 = sadd.s32 %s208, 3
        %s417 = sld [smem:[#allocation2 + %s416]]
        %s418 = scalar_lea.vmem %s2, %s417
        %v419 = vld [vmem:[%s418] sm:$0x1]
        %s420 = sadd.s32 %s213, 3
        %s421 = sld [smem:[#allocation2 + %s420]]
        %s422 = scalar_lea.vmem %s2, %s421
        %v423 = vld [vmem:[%s422] sm:$0x1]
        %s424 = sadd.s32 %s218, 3
        %s425 = sld [smem:[#allocation2 + %s424]]
        %s426 = scalar_lea.vmem %s2, %s425
        %v427 = vld [vmem:[%s426] sm:$0x1]
        %v429 = vrot.slane %v403, 7
        %v432 = vrot.slane %v407, 6
        %v435 = vrot.slane %v411, 5
        %v438 = vrot.slane %v415, 4
        %v441 = vrot.slane %v419, 3
        %v444 = vrot.slane %v423, 2
        %v447 = vrot.slane %v427, 1
        %v449 = vsel %vm243, %v399, %v429
        %v450 = vsel %vm245, %v449, %v432
        %v451 = vsel %vm247, %v450, %v435
        %v452 = vsel %vm249, %v451, %v438
        %v453 = vsel %vm251, %v452, %v441
        %v454 = vsel %vm253, %v453, %v444
        %v455 = vsel %vm255, %v454, %v447
        %456 = vset.pattern.permute.xlu0 3
        %457 = vperm.xlu0 %456, %v181
        %v458 = vpop.permute.xlu0 %457
        %v460 = vmul.f32 %v458, %v455
        %v461 = vadd.f32 %v395, %v460
        %s462 = sadd.s32 %s183, 4
        %s463 = sld [smem:[#allocation2 + %s462]]
        %s464 = scalar_lea.vmem %s2, %s463
        %v465 = vld [vmem:[%s464] sm:$0x1]
        %s466 = sadd.s32 %s188, 4
        %s467 = sld [smem:[#allocation2 + %s466]]
        %s468 = scalar_lea.vmem %s2, %s467
        %v469 = vld [vmem:[%s468] sm:$0x1]
        %s470 = sadd.s32 %s193, 4
        %s471 = sld [smem:[#allocation2 + %s470]]
        %s472 = scalar_lea.vmem %s2, %s471
        %v473 = vld [vmem:[%s472] sm:$0x1]
        %s474 = sadd.s32 %s198, 4
        %s475 = sld [smem:[#allocation2 + %s474]]
        %s476 = scalar_lea.vmem %s2, %s475
        %v477 = vld [vmem:[%s476] sm:$0x1]
        %s478 = sadd.s32 %s203, 4
        %s479 = sld [smem:[#allocation2 + %s478]]
        %s480 = scalar_lea.vmem %s2, %s479
        %v481 = vld [vmem:[%s480] sm:$0x1]
        %s482 = sadd.s32 %s208, 4
        %s483 = sld [smem:[#allocation2 + %s482]]
        %s484 = scalar_lea.vmem %s2, %s483
        %v485 = vld [vmem:[%s484] sm:$0x1]
        %s486 = sadd.s32 %s213, 4
        %s487 = sld [smem:[#allocation2 + %s486]]
        %s488 = scalar_lea.vmem %s2, %s487
        %v489 = vld [vmem:[%s488] sm:$0x1]
        %s490 = sadd.s32 %s218, 4
        %s491 = sld [smem:[#allocation2 + %s490]]
        %s492 = scalar_lea.vmem %s2, %s491
        %v493 = vld [vmem:[%s492] sm:$0x1]
        %v495 = vrot.slane %v469, 7
        %v498 = vrot.slane %v473, 6
        %v501 = vrot.slane %v477, 5
        %v504 = vrot.slane %v481, 4
        %v507 = vrot.slane %v485, 3
        %v510 = vrot.slane %v489, 2
        %v513 = vrot.slane %v493, 1
        %v515 = vsel %vm243, %v465, %v495
        %v516 = vsel %vm245, %v515, %v498
        %v517 = vsel %vm247, %v516, %v501
        %v518 = vsel %vm249, %v517, %v504
        %v519 = vsel %vm251, %v518, %v507
        %v520 = vsel %vm253, %v519, %v510
        %v521 = vsel %vm255, %v520, %v513
        %522 = vset.pattern.permute.xlu0 4
        %523 = vperm.xlu0 %522, %v181
        %v524 = vpop.permute.xlu0 %523
        %v526 = vmul.f32 %v524, %v521
        %v527 = vadd.f32 %v461, %v526
        %s528 = sadd.s32 %s183, 5
        %s529 = sld [smem:[#allocation2 + %s528]]
        %s530 = scalar_lea.vmem %s2, %s529
        %v531 = vld [vmem:[%s530] sm:$0x1]
        %s532 = sadd.s32 %s188, 5
        %s533 = sld [smem:[#allocation2 + %s532]]
        %s534 = scalar_lea.vmem %s2, %s533
        %v535 = vld [vmem:[%s534] sm:$0x1]
        %s536 = sadd.s32 %s193, 5
        %s537 = sld [smem:[#allocation2 + %s536]]
        %s538 = scalar_lea.vmem %s2, %s537
        %v539 = vld [vmem:[%s538] sm:$0x1]
        %s540 = sadd.s32 %s198, 5
        %s541 = sld [smem:[#allocation2 + %s540]]
        %s542 = scalar_lea.vmem %s2, %s541
        %v543 = vld [vmem:[%s542] sm:$0x1]
        %s544 = sadd.s32 %s203, 5
        %s545 = sld [smem:[#allocation2 + %s544]]
        %s546 = scalar_lea.vmem %s2, %s545
        %v547 = vld [vmem:[%s546] sm:$0x1]
        %s548 = sadd.s32 %s208, 5
        %s549 = sld [smem:[#allocation2 + %s548]]
        %s550 = scalar_lea.vmem %s2, %s549
        %v551 = vld [vmem:[%s550] sm:$0x1]
        %s552 = sadd.s32 %s213, 5
        %s553 = sld [smem:[#allocation2 + %s552]]
        %s554 = scalar_lea.vmem %s2, %s553
        %v555 = vld [vmem:[%s554] sm:$0x1]
        %s556 = sadd.s32 %s218, 5
        %s557 = sld [smem:[#allocation2 + %s556]]
        %s558 = scalar_lea.vmem %s2, %s557
        %v559 = vld [vmem:[%s558] sm:$0x1]
        %v561 = vrot.slane %v535, 7
        %v564 = vrot.slane %v539, 6
        %v567 = vrot.slane %v543, 5
        %v570 = vrot.slane %v547, 4
        %v573 = vrot.slane %v551, 3
        %v576 = vrot.slane %v555, 2
        %v579 = vrot.slane %v559, 1
        %v581 = vsel %vm243, %v531, %v561
        %v582 = vsel %vm245, %v581, %v564
        %v583 = vsel %vm247, %v582, %v567
        %v584 = vsel %vm249, %v583, %v570
        %v585 = vsel %vm251, %v584, %v573
        %v586 = vsel %vm253, %v585, %v576
        %v587 = vsel %vm255, %v586, %v579
        %588 = vset.pattern.permute.xlu0 5
        %589 = vperm.xlu0 %588, %v181
        %v590 = vpop.permute.xlu0 %589
        %v592 = vmul.f32 %v590, %v587
        %v593 = vadd.f32 %v527, %v592
        %s594 = sadd.s32 %s183, 6
        %s595 = sld [smem:[#allocation2 + %s594]]
        %s596 = scalar_lea.vmem %s2, %s595
        %v597 = vld [vmem:[%s596] sm:$0x1]
        %s598 = sadd.s32 %s188, 6
        %s599 = sld [smem:[#allocation2 + %s598]]
        %s600 = scalar_lea.vmem %s2, %s599
        %v601 = vld [vmem:[%s600] sm:$0x1]
        %s602 = sadd.s32 %s193, 6
        %s603 = sld [smem:[#allocation2 + %s602]]
        %s604 = scalar_lea.vmem %s2, %s603
        %v605 = vld [vmem:[%s604] sm:$0x1]
        %s606 = sadd.s32 %s198, 6
        %s607 = sld [smem:[#allocation2 + %s606]]
        %s608 = scalar_lea.vmem %s2, %s607
        %v609 = vld [vmem:[%s608] sm:$0x1]
        %s610 = sadd.s32 %s203, 6
        %s611 = sld [smem:[#allocation2 + %s610]]
        %s612 = scalar_lea.vmem %s2, %s611
        %v613 = vld [vmem:[%s612] sm:$0x1]
        %s614 = sadd.s32 %s208, 6
        %s615 = sld [smem:[#allocation2 + %s614]]
        %s616 = scalar_lea.vmem %s2, %s615
        %v617 = vld [vmem:[%s616] sm:$0x1]
        %s618 = sadd.s32 %s213, 6
        %s619 = sld [smem:[#allocation2 + %s618]]
        %s620 = scalar_lea.vmem %s2, %s619
        %v621 = vld [vmem:[%s620] sm:$0x1]
        %s622 = sadd.s32 %s218, 6
        %s623 = sld [smem:[#allocation2 + %s622]]
        %s624 = scalar_lea.vmem %s2, %s623
        %v625 = vld [vmem:[%s624] sm:$0x1]
        %v627 = vrot.slane %v601, 7
        %v630 = vrot.slane %v605, 6
        %v633 = vrot.slane %v609, 5
        %v636 = vrot.slane %v613, 4
        %v639 = vrot.slane %v617, 3
        %v642 = vrot.slane %v621, 2
        %v645 = vrot.slane %v625, 1
        %v647 = vsel %vm243, %v597, %v627
        %v648 = vsel %vm245, %v647, %v630
        %v649 = vsel %vm247, %v648, %v633
        %v650 = vsel %vm249, %v649, %v636
        %v651 = vsel %vm251, %v650, %v639
        %v652 = vsel %vm253, %v651, %v642
        %v653 = vsel %vm255, %v652, %v645
        %654 = vset.pattern.permute.xlu0 6
        %655 = vperm.xlu0 %654, %v181
        %v656 = vpop.permute.xlu0 %655
        %v658 = vmul.f32 %v656, %v653
        %v659 = vadd.f32 %v593, %v658
        %s660 = sadd.s32 %s183, 7
        %s661 = sld [smem:[#allocation2 + %s660]]
        %s662 = scalar_lea.vmem %s2, %s661
        %v663 = vld [vmem:[%s662] sm:$0x1]
        %s664 = sadd.s32 %s188, 7
        %s665 = sld [smem:[#allocation2 + %s664]]
        %s666 = scalar_lea.vmem %s2, %s665
        %v667 = vld [vmem:[%s666] sm:$0x1]
        %s668 = sadd.s32 %s193, 7
        %s669 = sld [smem:[#allocation2 + %s668]]
        %s670 = scalar_lea.vmem %s2, %s669
        %v671 = vld [vmem:[%s670] sm:$0x1]
        %s672 = sadd.s32 %s198, 7
        %s673 = sld [smem:[#allocation2 + %s672]]
        %s674 = scalar_lea.vmem %s2, %s673
        %v675 = vld [vmem:[%s674] sm:$0x1]
        %s676 = sadd.s32 %s203, 7
        %s677 = sld [smem:[#allocation2 + %s676]]
        %s678 = scalar_lea.vmem %s2, %s677
        %v679 = vld [vmem:[%s678] sm:$0x1]
        %s680 = sadd.s32 %s208, 7
        %s681 = sld [smem:[#allocation2 + %s680]]
        %s682 = scalar_lea.vmem %s2, %s681
        %v683 = vld [vmem:[%s682] sm:$0x1]
        %s684 = sadd.s32 %s213, 7
        %s685 = sld [smem:[#allocation2 + %s684]]
        %s686 = scalar_lea.vmem %s2, %s685
        %v687 = vld [vmem:[%s686] sm:$0x1]
        %s688 = sadd.s32 %s218, 7
        %s689 = sld [smem:[#allocation2 + %s688]]
        %s690 = scalar_lea.vmem %s2, %s689
        %v691 = vld [vmem:[%s690] sm:$0x1]
        %v693 = vrot.slane %v667, 7
        %v696 = vrot.slane %v671, 6
        %v699 = vrot.slane %v675, 5
        %v702 = vrot.slane %v679, 4
        %v705 = vrot.slane %v683, 3
        %v708 = vrot.slane %v687, 2
        %v711 = vrot.slane %v691, 1
        %v713 = vsel %vm243, %v663, %v693
        %v714 = vsel %vm245, %v713, %v696
        %v715 = vsel %vm247, %v714, %v699
        %v716 = vsel %vm249, %v715, %v702
        %v717 = vsel %vm251, %v716, %v705
        %v718 = vsel %vm253, %v717, %v708
        %v719 = vsel %vm255, %v718, %v711
        %720 = vset.pattern.permute.xlu0 7
        %721 = vperm.xlu0 %720, %v181
        %v722 = vpop.permute.xlu0 %721
        %v724 = vmul.f32 %v722, %v719
        %v725 = vadd.f32 %v659, %v724
        %726 = vst [vmem:[%s175] sm:$0xff] %v725
        %s727 = sand.u32 %s94, 1
        %s728 = scalar_lea.sflag [#allocation3], %s727
        %s729 = sand.u32 %s94, 1
        %s730 = smul.addr %s729, 8
        %s731 = scalar_lea.vmem [#allocation5], %s730
        // Predicated region
        $region37: #{hgnn_layer_forward.3} parent=31 // pred_check
          %p732 = pneg %p104
        $region38: #{hgnn_layer_forward.3} parent=31 // pred_check_branch
          %734 = sbr.rel (%p732) target = $region40
        $region39: #{hgnn_layer_forward.3} parent=31 // pred_region
          %s736 = ssub.s32 128, 128
          %737 = vsyncadd %s728, %s736
          %s738 = smul.addr %s18, 128
          %s739 = scalar_lea.hbm %s3, %s738
          %s741 = sshll.u32 %s731, 4
          %s742 = int_to_ptr.vmem [resolvable:$true] %s741
          %744 = dma.vmem_to_hbm [thread:$0]  %s742, 128, %s739, %s728
        $region40: #{hgnn_layer_forward.3} parent=31 // pred_fallthru
          _
      $region32: #{hgnn_layer_forward.3} parent=5 // pred_fallthru
        _
      %p745 = scmp.le.s32.totalorder 2, %s13
      // Predicated region
      $region41: #{hgnn_layer_forward.3} parent=5 // pred_check
        %p746 = pneg %p745
      $region42: #{hgnn_layer_forward.3} parent=5 // pred_check_branch
        %748 = sbr.rel (%p746) target = $region44
      $region43: #{hgnn_layer_forward.3} parent=5 // pred_region
        %s749 = ssub.s32 %s13, 2
        // Predicated region
        $region45: #{hgnn_layer_forward.3} parent=43 // pred_check
          %p750 = pneg %p110
        $region46: #{hgnn_layer_forward.3} parent=43 // pred_check_branch
          %752 = sbr.rel (%p750) target = $region48
        $region47: #{hgnn_layer_forward.3} parent=43 // pred_region
          %s753 = sand.u32 %s95, 1
          %s754 = scalar_lea.sflag [#allocation3], %s753
          %s755 = sand.u32 %s95, 1
          %s756 = smul.addr %s755, 8
          %s757 = scalar_lea.vmem [#allocation5], %s756
          %758 = dma.done %s754, 128
        $region48: #{hgnn_layer_forward.3} parent=43 // pred_fallthru
          _
      $region44: #{hgnn_layer_forward.3} parent=5 // pred_fallthru
        _
    $region6: #{hgnn_layer_forward.3} parent=1 // loop_footer
      %s17 = sadd.s32 1, %s13
    $region7: #{hgnn_layer_forward.3} parent=1 // loop_footer_branch
      %12 = sbr.rel target = $region3
    $region8: #{hgnn_layer_forward.3} parent=1 // loop_exit
      _
    %759 = vsyncpa [#allocation3], 1
    %s760 = scalar_lea.sflag [#allocation3], 1
    %761 = vsyncpa %s760, 1
    %762 = vsyncpa [#allocation4], 1
    %s763 = scalar_lea.sflag [#allocation4], 1
    %764 = vsyncpa %s763, 1

// kernel: hgnn_layer_forward.2
$region0: #{hgnn_layer_forward.2}
  #allocation0 [shape = 'u32[]', space=smem, size = 0x4, offset = 0x4, fixed_abs, tag = 'smem constant byte address 0x4 - core index']
  #allocation1 [shape = 'u32[144,128]{1,0:T(1,128)}', space=vmem, size = 0x12000, scoped, tag = 'internal scratch']
  #allocation2 [shape = 'f32[16,128]{1,0:T(8,128)}', space=vmem, size = 0x2000, scoped, tag = 'scratch operand']
  #allocation3 [shape = 'f32[8,128]{1,0:T(8,128)}', space=vmem, size = 0x1000, scoped, tag = 'scratch operand']
  #allocation4 [shape = 'f32[1,1]{1,0:T(1,128)S(6)}', space=smem, size = 0x200, scoped, tag = 'scoped memory for hgnn_layer_forward.2']
  %s0 = inlined_call_operand.vmem [shape: s32[128], index: 0, kind: input, shape index: {}]
  %s1 = inlined_call_operand.<no memory space> [shape: f32[1,1], index: 1, kind: input, shape index: {}]
  %s2 = inlined_call_operand.vmem [shape: bf16[16,32], index: 2, kind: input, shape index: {}]
  %s3 = inlined_call_operand.vmem [shape: bf16[32,128], index: 3, kind: input, shape index: {}]
  %s4 = inlined_call_operand.vmem [shape: f32[16,8], index: 4, kind: input, shape index: {}]
  %s5 = inlined_call_operand.vmem [shape: bf16[128,128], index: 5, kind: input, shape index: {}]
  %s6 = inlined_call_operand.vmem [shape: f32[16,128], index: 6, kind: output, shape index: {}]
  %s7 = sld [smem:[#allocation0]]
  $region65: #{hgnn_layer_forward.2} parent=0
    _
  %s9 = ssub.s32 1, %s7
  %s10 = scalar_select 0, %s9, %s7
  %11 = sst [smem:[#allocation4]] %s1
  $region1: #{hgnn_layer_forward.2} parent=0
    #allocation5 [shape = 'u8[512]{0}', space=smem, size = 0x200, scoped, tag = 'input window, operand 0, single buffered']
    #allocation6 [shape = 's32[2]{0}', space=sflag, size = 0x8, scoped, tag = 'scoped memory for hgnn_layer_forward.2']
    %12 = vsyncpa [#allocation6], 0
    loop: start=0, step=1, limit=4
    $region2: #{hgnn_layer_forward.2} parent=1 // loop_pre_header
      _
    $region3: #{hgnn_layer_forward.2} parent=1 // loop_header
      %s14 = sphi 0, %s18
      %p15 = scmp.ge.s32.totalorder %s14, 4
      %s22 = sphi 0, %s22
      %s24 = sphi 0, %s22
      %s25 = sphi 0, %s24
      %s39 = sphi 0, %s25
      %s43 = sphi 0, %s43
      %s45 = sphi 0, %s43
      %s46 = sphi 0, %s45
      %s60 = sphi 0, %s46
      %s64 = sphi 0, %s64
      %s66 = sphi 0, %s64
      %s67 = sphi 0, %s66
      %s81 = sphi 0, %s67
      %s85 = sphi 0, %s85
      %s87 = sphi 0, %s85
      %s88 = sphi 0, %s87
      %s102 = sphi 0, %s88
      %s108 = sphi 0, %s110
      %s111 = sphi 0, %s108
      %s112 = sphi 0, %s111
      %s128 = sphi 0, %s112
      %s132 = sphi 0, %s132
      %s134 = sphi 0, %s132
      %s135 = sphi 0, %s134
      %s149 = sphi 0, %s135
      %s155 = sphi 0, %s157
      %s158 = sphi 0, %s155
      %s159 = sphi 0, %s158
      %s175 = sphi 0, %s159
    $region4: #{hgnn_layer_forward.2} parent=1 // loop_header_branch
      %17 = sbr.rel (%p15) target = $region8
    $region5: #{hgnn_layer_forward.2} parent=1 // loop_body
      %s19 = ssub.s32 %s14, 1
      %s20 = ssub.s32 %s14, 2
      %s21 = sadd.s32 %s14, 1
      %s23 = sadd.s32 %s22, 1
      %p26 = scmp.eq.s32.totalorder %s14, 1
      %p27 = scmp.ne.s32.totalorder %s22, %s24
      %p28 = scmp.eq.s32.totalorder %s14, 0
      %p29 = por %p27, %p28
      %p30 = scmp.ne.s32.totalorder %s22, %s24
      %p31 = scmp.eq.s32.totalorder %s19, 1
      %p32 = por %p30, %p31
      %p33 = scmp.ne.s32.totalorder %s24, %s25
      %p34 = scmp.eq.s32.totalorder %s19, 0
      %p35 = por %p33, %p34
      %p36 = scmp.ne.s32.totalorder %s24, %s25
      %p37 = scmp.eq.s32.totalorder %s20, 1
      %p38 = por %p36, %p37
      %p40 = scmp.ne.s32.totalorder %s25, %s39
      %p41 = scmp.eq.s32.totalorder %s20, 0
      %p42 = por %p40, %p41
      %s44 = sadd.s32 %s43, 1
      %p47 = scmp.eq.s32.totalorder %s14, 1
      %p48 = scmp.ne.s32.totalorder %s43, %s45
      %p49 = scmp.eq.s32.totalorder %s14, 0
      %p50 = por %p48, %p49
      %p51 = scmp.ne.s32.totalorder %s43, %s45
      %p52 = scmp.eq.s32.totalorder %s19, 1
      %p53 = por %p51, %p52
      %p54 = scmp.ne.s32.totalorder %s45, %s46
      %p55 = scmp.eq.s32.totalorder %s19, 0
      %p56 = por %p54, %p55
      %p57 = scmp.ne.s32.totalorder %s45, %s46
      %p58 = scmp.eq.s32.totalorder %s20, 1
      %p59 = por %p57, %p58
      %p61 = scmp.ne.s32.totalorder %s46, %s60
      %p62 = scmp.eq.s32.totalorder %s20, 0
      %p63 = por %p61, %p62
      %s65 = sadd.s32 %s64, 1
      %p68 = scmp.eq.s32.totalorder %s14, 1
      %p69 = scmp.ne.s32.totalorder %s64, %s66
      %p70 = scmp.eq.s32.totalorder %s14, 0
      %p71 = por %p69, %p70
      %p72 = scmp.ne.s32.totalorder %s64, %s66
      %p73 = scmp.eq.s32.totalorder %s19, 1
      %p74 = por %p72, %p73
      %p75 = scmp.ne.s32.totalorder %s66, %s67
      %p76 = scmp.eq.s32.totalorder %s19, 0
      %p77 = por %p75, %p76
      %p78 = scmp.ne.s32.totalorder %s66, %s67
      %p79 = scmp.eq.s32.totalorder %s20, 1
      %p80 = por %p78, %p79
      %p82 = scmp.ne.s32.totalorder %s67, %s81
      %p83 = scmp.eq.s32.totalorder %s20, 0
      %p84 = por %p82, %p83
      %s86 = sadd.s32 %s85, 1
      %p89 = scmp.eq.s32.totalorder %s14, 1
      %p90 = scmp.ne.s32.totalorder %s85, %s87
      %p91 = scmp.eq.s32.totalorder %s14, 0
      %p92 = por %p90, %p91
      %p93 = scmp.ne.s32.totalorder %s85, %s87
      %p94 = scmp.eq.s32.totalorder %s19, 1
      %p95 = por %p93, %p94
      %p96 = scmp.ne.s32.totalorder %s87, %s88
      %p97 = scmp.eq.s32.totalorder %s19, 0
      %p98 = por %p96, %p97
      %p99 = scmp.ne.s32.totalorder %s87, %s88
      %p100 = scmp.eq.s32.totalorder %s20, 1
      %p101 = por %p99, %p100
      %p103 = scmp.ne.s32.totalorder %s88, %s102
      %p104 = scmp.eq.s32.totalorder %s20, 0
      %p105 = por %p103, %p104
      %s106 = ssub.s32 %s14, %s21
      %p107 = scmp.eq.s32.totalorder %s106, 0
      %s109 = sadd.s32 %s108, 1
      %s110 = scalar_select %p107, %s108, %s109
      %p113 = pneg %p107
      %p114 = scmp.eq.s32.totalorder %s14, 1
      %p115 = por %p113, %p114
      %p116 = scmp.ne.s32.totalorder %s108, %s111
      %p117 = scmp.eq.s32.totalorder %s14, 0
      %p118 = por %p116, %p117
      %p119 = scmp.ne.s32.totalorder %s108, %s111
      %p120 = scmp.eq.s32.totalorder %s19, 1
      %p121 = por %p119, %p120
      %p122 = scmp.ne.s32.totalorder %s111, %s112
      %p123 = scmp.eq.s32.totalorder %s19, 0
      %p124 = por %p122, %p123
      %p125 = scmp.ne.s32.totalorder %s111, %s112
      %p126 = scmp.eq.s32.totalorder %s20, 1
      %p127 = por %p125, %p126
      %p129 = scmp.ne.s32.totalorder %s112, %s128
      %p130 = scmp.eq.s32.totalorder %s20, 0
      %p131 = por %p129, %p130
      %s133 = sadd.s32 %s132, 1
      %p136 = scmp.eq.s32.totalorder %s14, 1
      %p137 = scmp.ne.s32.totalorder %s132, %s134
      %p138 = scmp.eq.s32.totalorder %s14, 0
      %p139 = por %p137, %p138
      %p140 = scmp.ne.s32.totalorder %s132, %s134
      %p141 = scmp.eq.s32.totalorder %s19, 1
      %p142 = por %p140, %p141
      %p143 = scmp.ne.s32.totalorder %s134, %s135
      %p144 = scmp.eq.s32.totalorder %s19, 0
      %p145 = por %p143, %p144
      %p146 = scmp.ne.s32.totalorder %s134, %s135
      %p147 = scmp.eq.s32.totalorder %s20, 1
      %p148 = por %p146, %p147
      %p150 = scmp.ne.s32.totalorder %s135, %s149
      %p151 = scmp.eq.s32.totalorder %s20, 0
      %p152 = por %p150, %p151
      %s153 = ssub.s32 %s14, %s21
      %p154 = scmp.eq.s32.totalorder %s153, 0
      %s156 = sadd.s32 %s155, 1
      %s157 = scalar_select %p154, %s155, %s156
      %p160 = pneg %p154
      %p161 = scmp.eq.s32.totalorder %s14, 1
      %p162 = por %p160, %p161
      %p163 = scmp.ne.s32.totalorder %s155, %s158
      %p164 = scmp.eq.s32.totalorder %s14, 0
      %p165 = por %p163, %p164
      %p166 = scmp.ne.s32.totalorder %s155, %s158
      %p167 = scmp.eq.s32.totalorder %s19, 1
      %p168 = por %p166, %p167
      %p169 = scmp.ne.s32.totalorder %s158, %s159
      %p170 = scmp.eq.s32.totalorder %s19, 0
      %p171 = por %p169, %p170
      %p172 = scmp.ne.s32.totalorder %s158, %s159
      %p173 = scmp.eq.s32.totalorder %s20, 1
      %p174 = por %p172, %p173
      %p176 = scmp.ne.s32.totalorder %s159, %s175
      %p177 = scmp.eq.s32.totalorder %s20, 0
      %p178 = por %p176, %p177
      %p179 = scmp.le.s32.totalorder 1, %s14
      %p180 = scmp.lt.s32.totalorder %s14, 3
      %p181 = pnand %p179, %p180
      %p182 = pneg %p181
      // Predicated region
      $region9: #{hgnn_layer_forward.2} parent=5 // pred_check
        _
      $region10: #{hgnn_layer_forward.2} parent=5 // pred_check_branch
        %184 = sbr.rel (%p181) target = $region12
      $region11: #{hgnn_layer_forward.2} parent=5 // pred_region
        %s185 = ssub.s32 %s14, 1
        // Predicated region
        $region13: #{hgnn_layer_forward.2} parent=11 // pred_check
          %p186 = pneg %p35
        $region14: #{hgnn_layer_forward.2} parent=11 // pred_check_branch
          %188 = sbr.rel (%p186) target = $region16
        $region15: #{hgnn_layer_forward.2} parent=11 // pred_region
          %s190 = ssub.s32 16, 16
          %191 = vsyncadd [#allocation6], %s190
          %s193 = sshll.u32 %s0, 4
          %s194 = int_to_ptr.vmem [resolvable:$true] %s193
          %196 = dma.vmem_to_smem %s194, 16, [#allocation5], [#allocation6]
        $region16: #{hgnn_layer_forward.2} parent=11 // pred_fallthru
          _
        // Predicated region
        $region17: #{hgnn_layer_forward.2} parent=11 // pred_check
          %p197 = pneg %p56
        $region18: #{hgnn_layer_forward.2} parent=11 // pred_check_branch
          %199 = sbr.rel (%p197) target = $region20
        $region19: #{hgnn_layer_forward.2} parent=11 // pred_region
          _
        $region20: #{hgnn_layer_forward.2} parent=11 // pred_fallthru
          _
        // Predicated region
        $region21: #{hgnn_layer_forward.2} parent=11 // pred_check
          %p200 = pneg %p77
        $region22: #{hgnn_layer_forward.2} parent=11 // pred_check_branch
          %202 = sbr.rel (%p200) target = $region24
        $region23: #{hgnn_layer_forward.2} parent=11 // pred_region
          _
        $region24: #{hgnn_layer_forward.2} parent=11 // pred_fallthru
          _
        // Predicated region
        $region25: #{hgnn_layer_forward.2} parent=11 // pred_check
          %p203 = pneg %p98
        $region26: #{hgnn_layer_forward.2} parent=11 // pred_check_branch
          %205 = sbr.rel (%p203) target = $region28
        $region27: #{hgnn_layer_forward.2} parent=11 // pred_region
          _
        $region28: #{hgnn_layer_forward.2} parent=11 // pred_fallthru
          _
        // Predicated region
        $region29: #{hgnn_layer_forward.2} parent=11 // pred_check
          %p206 = pneg %p145
        $region30: #{hgnn_layer_forward.2} parent=11 // pred_check_branch
          %208 = sbr.rel (%p206) target = $region32
        $region31: #{hgnn_layer_forward.2} parent=11 // pred_region
          _
        $region32: #{hgnn_layer_forward.2} parent=11 // pred_fallthru
          _
      $region12: #{hgnn_layer_forward.2} parent=5 // pred_fallthru
        _
      %p209 = scmp.lt.s32.totalorder %s14, 2
      // Predicated region
      $region33: #{hgnn_layer_forward.2} parent=5 // pred_check
        %p210 = pneg %p209
      $region34: #{hgnn_layer_forward.2} parent=5 // pred_check_branch
        %212 = sbr.rel (%p210) target = $region36
      $region35: #{hgnn_layer_forward.2} parent=5 // pred_region
        // Predicated region
        $region37: #{hgnn_layer_forward.2} parent=35 // pred_check
          %p213 = pneg %p118
        $region38: #{hgnn_layer_forward.2} parent=35 // pred_check_branch
          %215 = sbr.rel (%p213) target = $region40
        $region39: #{hgnn_layer_forward.2} parent=35 // pred_region
          %p216 = scmp.lt.s32.totalorder %s14, 1
          %s217 = scalar_select %p216, %s14, 1
          %s218 = smul.addr %s217, 8
          %s219 = scalar_lea.vmem %s4, %s218
        $region40: #{hgnn_layer_forward.2} parent=35 // pred_fallthru
          _
      $region36: #{hgnn_layer_forward.2} parent=5 // pred_fallthru
        _
      %p220 = scmp.le.s32.totalorder 1, %s14
      %p221 = scmp.lt.s32.totalorder %s14, 3
      %p222 = pnand %p220, %p221
      %p223 = pneg %p222
      // Predicated region
      $region41: #{hgnn_layer_forward.2} parent=5 // pred_check
        _
      $region42: #{hgnn_layer_forward.2} parent=5 // pred_check_branch
        %225 = sbr.rel (%p222) target = $region44
      $region43: #{hgnn_layer_forward.2} parent=5 // pred_region
        %s226 = ssub.s32 %s14, 1
        // Predicated region
        $region45: #{hgnn_layer_forward.2} parent=43 // pred_check
          %p227 = pneg %p35
        $region46: #{hgnn_layer_forward.2} parent=43 // pred_check_branch
          %229 = sbr.rel (%p227) target = $region48
        $region47: #{hgnn_layer_forward.2} parent=43 // pred_region
          %230 = dma.done [#allocation6], 16
        $region48: #{hgnn_layer_forward.2} parent=43 // pred_fallthru
          _
        %231 = sfence
        %p232 = pneg %p35
        %p233 = pneg %p32
        %p234 = pneg %p56
        %p235 = pneg %p53
        %p236 = pneg %p77
        %p237 = pneg %p74
        %p238 = pneg %p98
        %p239 = pneg %p95
        %p240 = scmp.lt.s32.totalorder %s19, 1
        %s241 = scalar_select %p240, %s19, 1
        %s242 = smul.addr %s241, 8
        %s243 = scalar_lea.vmem %s4, %s242
        %p244 = pneg %p124
        %p245 = pneg %p121
        %p246 = pneg %p145
        %p247 = pneg %p142
        %p248 = pneg %p171
        %p249 = pneg %p168
        %p250 = scmp.lt.s32.totalorder %s19, 1
        %s251 = scalar_select %p250, %s19, 1
        %s252 = smul.addr %s251, 8
        %s253 = scalar_lea.vmem %s6, %s252
        %p254 = scmp.lt.s32.totalorder %s19, 1
        %s255 = scalar_select %p254, %s19, 1
        %s256 = smul.addr %s255, 8
        %s257 = scalar_lea.vmem %s4, %s256
        %p258 = scmp.lt.s32.totalorder %s19, 1
        %s259 = scalar_select %p258, %s19, 1
        %s260 = smul.addr %s259, 8
        %s261 = scalar_lea.vmem %s6, %s260
        %p263 = scmp.eq.s32.totalorder %s19, 0
        // Predicated region
        $region49: #{hgnn_layer_forward.2} parent=43 // pred_check
          %p264 = pneg %p263
        $region50: #{hgnn_layer_forward.2} parent=43 // pred_check_branch
          %266 = sbr.rel (%p264) target = $region52
        $region51: #{hgnn_layer_forward.2} parent=43 // pred_region
          %s267 = sld [smem:[#allocation4]]
          %v268 = vld [vmem:[%s2] sm:$0xf]
          %v269 = vld [vmem:[%s2 + $0x4] sm:$0xf]
          %v270 = vld [vmem:[%s3] sm:$0xf]
          %v271 = vld [vmem:[%s3 + $0x4] sm:$0xf]
          %v272 = vld [vmem:[%s3 + $0x8] sm:$0xf]
          %v273 = vld [vmem:[%s3 + $0xc] sm:$0xf]
          %v276 = vunpack.c.l.b16 %v268
          %v277 = vunpack.c.l.b16 %v269
          %v278 = vpack.c.b16 %v277, %v276
          %v283 = vunpack.c.l.b16 %v270
          %v284 = vunpack.c.l.b16 %v271
          %v285 = vunpack.c.l.b16 %v272
          %v286 = vunpack.c.l.b16 %v273
          %v287 = vpack.c.b16 %v284, %v283
          %v288 = vpack.c.b16 %v286, %v285
          %vm291 = vcmask 261120
          %v293 = vsel %vm291, %v278, 0
          %295 = vmatprep.subr.bf16.mxu0 0
          %296 = vmatpush1.bf16.msra.mxu0 %v287
          %297 = vmatprep.subr.bf16.mxu0 0
          %298 = vmatpush1.bf16.msra.mxu0 %v288
          %299 = vmatprep.subr.bf16.mxu0 0
          %300 = vmatpush1.bf16.msra.mxu0 0
          %301 = vmatprep.subr.bf16.mxu0 0
          %302 = vmatpush1.bf16.msra.mxu0 0
          %303 = vmatprep.subr.bf16.mxu0 0
          %304 = vmatpush1.bf16.msra.mxu0 0
          %305 = vmatprep.subr.bf16.mxu0 0
          %306 = vmatpush1.bf16.msra.mxu0 0
          %307 = vmatprep.subr.bf16.mxu0 0
          %308 = vmatpush1.bf16.msra.mxu0 0
          %309 = vmatprep.subr.bf16.mxu0 0
          %310 = vmatpush1.bf16.msra.mxu0 0
          %311 = vmatprep.subr.bf16.mxu0 0
          %312 = vmatpush1.bf16.msra.mxu0 0
          %313 = vmatprep.subr.bf16.mxu0 0
          %314 = vmatpush1.bf16.msra.mxu0 0
          %315 = vmatprep.subr.bf16.mxu0 0
          %316 = vmatpush1.bf16.msra.mxu0 0
          %317 = vmatprep.subr.bf16.mxu0 0
          %318 = vmatpush1.bf16.msra.mxu0 0
          %319 = vmatprep.subr.bf16.mxu0 0
          %320 = vmatpush1.bf16.msra.mxu0 0
          %321 = vmatprep.subr.bf16.mxu0 0
          %322 = vmatpush1.bf16.msra.mxu0 0
          %323 = vmatprep.subr.bf16.mxu0 0
          %324 = vmatpush1.bf16.msra.mxu0 0
          %325 = vmatprep.subr.bf16.mxu0 0
          %326 = vmatpush1.bf16.msra.mxu0 0
          %327 = vmatprep.mubr.bf16.mxu0 0
          %328 = vmatmul.mubr.bf16.gmra.mrb[0].mxu0 %v293
          %v329 = vpop.f32.mrb[0].mxu0
          %v330 = vadd.f32 0.0, %v329
          %v331 = vpop.f32.mrb[0].mxu0
          %v332 = vpop.f32.mrb[0].mxu0
          %v333 = vadd.f32 0.0, %v332
          %v334 = vpop.f32.mrb[0].mxu0
          %335 = vdwg.mxu0
          %v336 = vstv %s267
          %v337 = vmul.f32 %v330, %v336
          %v338 = vmul.f32 %v333, %v336
          %339 = vst [vmem:[#allocation2] sm:$0xff] %v337
          %340 = vst [vmem:[#allocation2 + $0x8] sm:$0xff] %v338
        $region52: #{hgnn_layer_forward.2} parent=43 // pred_fallthru
          _
        %s341 = smul.u32 %s19, 8
        %v342 = vld [vmem:[%s257] sm:$0xff]
        %s343 = sadd.s32 %s341, 0
        %s344 = smul.u32 %s343, 8
        %s345 = sld [smem:[#allocation5 + %s344]]
        %s346 = scalar_lea.vmem [#allocation2], %s345
        %v347 = vld [vmem:[%s346] sm:$0x1]
        %s348 = sadd.s32 %s343, 1
        %s349 = smul.u32 %s348, 8
        %s350 = sld [smem:[#allocation5 + %s349]]
        %s351 = scalar_lea.vmem [#allocation2], %s350
        %v352 = vld [vmem:[%s351] sm:$0x1]
        %s353 = sadd.s32 %s343, 2
        %s354 = smul.u32 %s353, 8
        %s355 = sld [smem:[#allocation5 + %s354]]
        %s356 = scalar_lea.vmem [#allocation2], %s355
        %v357 = vld [vmem:[%s356] sm:$0x1]
        %s358 = sadd.s32 %s343, 3
        %s359 = smul.u32 %s358, 8
        %s360 = sld [smem:[#allocation5 + %s359]]
        %s361 = scalar_lea.vmem [#allocation2], %s360
        %v362 = vld [vmem:[%s361] sm:$0x1]
        %s363 = sadd.s32 %s343, 4
        %s364 = smul.u32 %s363, 8
        %s365 = sld [smem:[#allocation5 + %s364]]
        %s366 = scalar_lea.vmem [#allocation2], %s365
        %v367 = vld [vmem:[%s366] sm:$0x1]
        %s368 = sadd.s32 %s343, 5
        %s369 = smul.u32 %s368, 8
        %s370 = sld [smem:[#allocation5 + %s369]]
        %s371 = scalar_lea.vmem [#allocation2], %s370
        %v372 = vld [vmem:[%s371] sm:$0x1]
        %s373 = sadd.s32 %s343, 6
        %s374 = smul.u32 %s373, 8
        %s375 = sld [smem:[#allocation5 + %s374]]
        %s376 = scalar_lea.vmem [#allocation2], %s375
        %v377 = vld [vmem:[%s376] sm:$0x1]
        %s378 = sadd.s32 %s343, 7
        %s379 = smul.u32 %s378, 8
        %s380 = sld [smem:[#allocation5 + %s379]]
        %s381 = scalar_lea.vmem [#allocation2], %s380
        %v382 = vld [vmem:[%s381] sm:$0x1]
        %v384 = vrot.slane %v352, 7
        %v387 = vrot.slane %v357, 6
        %v390 = vrot.slane %v362, 5
        %v393 = vrot.slane %v367, 4
        %v396 = vrot.slane %v372, 3
        %v399 = vrot.slane %v377, 2
        %v402 = vrot.slane %v382, 1
        %vm404 = vcmask 1040384
        %v405 = vsel %vm404, %v347, %v384
        %vm406 = vcmask 1041408
        %v407 = vsel %vm406, %v405, %v387
        %vm408 = vcmask 1042432
        %v409 = vsel %vm408, %v407, %v390
        %vm410 = vcmask 1043456
        %v411 = vsel %vm410, %v409, %v393
        %vm412 = vcmask 1044480
        %v413 = vsel %vm412, %v411, %v396
        %vm414 = vcmask 1045504
        %v415 = vsel %vm414, %v413, %v399
        %vm416 = vcmask 1046528
        %v417 = vsel %vm416, %v415, %v402
        %419 = vset.pattern.permute.xlu0 0
        %420 = vperm.xlu0 %419, %v342
        %v421 = vpop.permute.xlu0 %420
        %v423 = vmul.f32 %v421, %v417
        %v424 = vadd.f32 %v423, 0.0
        %s425 = sadd.s32 %s344, 1
        %s426 = sld [smem:[#allocation5 + %s425]]
        %s427 = scalar_lea.vmem [#allocation2], %s426
        %v428 = vld [vmem:[%s427] sm:$0x1]
        %s429 = sadd.s32 %s349, 1
        %s430 = sld [smem:[#allocation5 + %s429]]
        %s431 = scalar_lea.vmem [#allocation2], %s430
        %v432 = vld [vmem:[%s431] sm:$0x1]
        %s433 = sadd.s32 %s354, 1
        %s434 = sld [smem:[#allocation5 + %s433]]
        %s435 = scalar_lea.vmem [#allocation2], %s434
        %v436 = vld [vmem:[%s435] sm:$0x1]
        %s437 = sadd.s32 %s359, 1
        %s438 = sld [smem:[#allocation5 + %s437]]
        %s439 = scalar_lea.vmem [#allocation2], %s438
        %v440 = vld [vmem:[%s439] sm:$0x1]
        %s441 = sadd.s32 %s364, 1
        %s442 = sld [smem:[#allocation5 + %s441]]
        %s443 = scalar_lea.vmem [#allocation2], %s442
        %v444 = vld [vmem:[%s443] sm:$0x1]
        %s445 = sadd.s32 %s369, 1
        %s446 = sld [smem:[#allocation5 + %s445]]
        %s447 = scalar_lea.vmem [#allocation2], %s446
        %v448 = vld [vmem:[%s447] sm:$0x1]
        %s449 = sadd.s32 %s374, 1
        %s450 = sld [smem:[#allocation5 + %s449]]
        %s451 = scalar_lea.vmem [#allocation2], %s450
        %v452 = vld [vmem:[%s451] sm:$0x1]
        %s453 = sadd.s32 %s379, 1
        %s454 = sld [smem:[#allocation5 + %s453]]
        %s455 = scalar_lea.vmem [#allocation2], %s454
        %v456 = vld [vmem:[%s455] sm:$0x1]
        %v458 = vrot.slane %v432, 7
        %v461 = vrot.slane %v436, 6
        %v464 = vrot.slane %v440, 5
        %v467 = vrot.slane %v444, 4
        %v470 = vrot.slane %v448, 3
        %v473 = vrot.slane %v452, 2
        %v476 = vrot.slane %v456, 1
        %v478 = vsel %vm404, %v428, %v458
        %v479 = vsel %vm406, %v478, %v461
        %v480 = vsel %vm408, %v479, %v464
        %v481 = vsel %vm410, %v480, %v467
        %v482 = vsel %vm412, %v481, %v470
        %v483 = vsel %vm414, %v482, %v473
        %v484 = vsel %vm416, %v483, %v476
        %485 = vset.pattern.permute.xlu0 1
        %486 = vperm.xlu0 %485, %v342
        %v487 = vpop.permute.xlu0 %486
        %v489 = vmul.f32 %v487, %v484
        %v490 = vadd.f32 %v424, %v489
        %s491 = sadd.s32 %s344, 2
        %s492 = sld [smem:[#allocation5 + %s491]]
        %s493 = scalar_lea.vmem [#allocation2], %s492
        %v494 = vld [vmem:[%s493] sm:$0x1]
        %s495 = sadd.s32 %s349, 2
        %s496 = sld [smem:[#allocation5 + %s495]]
        %s497 = scalar_lea.vmem [#allocation2], %s496
        %v498 = vld [vmem:[%s497] sm:$0x1]
        %s499 = sadd.s32 %s354, 2
        %s500 = sld [smem:[#allocation5 + %s499]]
        %s501 = scalar_lea.vmem [#allocation2], %s500
        %v502 = vld [vmem:[%s501] sm:$0x1]
        %s503 = sadd.s32 %s359, 2
        %s504 = sld [smem:[#allocation5 + %s503]]
        %s505 = scalar_lea.vmem [#allocation2], %s504
        %v506 = vld [vmem:[%s505] sm:$0x1]
        %s507 = sadd.s32 %s364, 2
        %s508 = sld [smem:[#allocation5 + %s507]]
        %s509 = scalar_lea.vmem [#allocation2], %s508
        %v510 = vld [vmem:[%s509] sm:$0x1]
        %s511 = sadd.s32 %s369, 2
        %s512 = sld [smem:[#allocation5 + %s511]]
        %s513 = scalar_lea.vmem [#allocation2], %s512
        %v514 = vld [vmem:[%s513] sm:$0x1]
        %s515 = sadd.s32 %s374, 2
        %s516 = sld [smem:[#allocation5 + %s515]]
        %s517 = scalar_lea.vmem [#allocation2], %s516
        %v518 = vld [vmem:[%s517] sm:$0x1]
        %s519 = sadd.s32 %s379, 2
        %s520 = sld [smem:[#allocation5 + %s519]]
        %s521 = scalar_lea.vmem [#allocation2], %s520
        %v522 = vld [vmem:[%s521] sm:$0x1]
        %v524 = vrot.slane %v498, 7
        %v527 = vrot.slane %v502, 6
        %v530 = vrot.slane %v506, 5
        %v533 = vrot.slane %v510, 4
        %v536 = vrot.slane %v514, 3
        %v539 = vrot.slane %v518, 2
        %v542 = vrot.slane %v522, 1
        %v544 = vsel %vm404, %v494, %v524
        %v545 = vsel %vm406, %v544, %v527
        %v546 = vsel %vm408, %v545, %v530
        %v547 = vsel %vm410, %v546, %v533
        %v548 = vsel %vm412, %v547, %v536
        %v549 = vsel %vm414, %v548, %v539
        %v550 = vsel %vm416, %v549, %v542
        %551 = vset.pattern.permute.xlu0 2
        %552 = vperm.xlu0 %551, %v342
        %v553 = vpop.permute.xlu0 %552
        %v555 = vmul.f32 %v553, %v550
        %v556 = vadd.f32 %v490, %v555
        %s557 = sadd.s32 %s344, 3
        %s558 = sld [smem:[#allocation5 + %s557]]
        %s559 = scalar_lea.vmem [#allocation2], %s558
        %v560 = vld [vmem:[%s559] sm:$0x1]
        %s561 = sadd.s32 %s349, 3
        %s562 = sld [smem:[#allocation5 + %s561]]
        %s563 = scalar_lea.vmem [#allocation2], %s562
        %v564 = vld [vmem:[%s563] sm:$0x1]
        %s565 = sadd.s32 %s354, 3
        %s566 = sld [smem:[#allocation5 + %s565]]
        %s567 = scalar_lea.vmem [#allocation2], %s566
        %v568 = vld [vmem:[%s567] sm:$0x1]
        %s569 = sadd.s32 %s359, 3
        %s570 = sld [smem:[#allocation5 + %s569]]
        %s571 = scalar_lea.vmem [#allocation2], %s570
        %v572 = vld [vmem:[%s571] sm:$0x1]
        %s573 = sadd.s32 %s364, 3
        %s574 = sld [smem:[#allocation5 + %s573]]
        %s575 = scalar_lea.vmem [#allocation2], %s574
        %v576 = vld [vmem:[%s575] sm:$0x1]
        %s577 = sadd.s32 %s369, 3
        %s578 = sld [smem:[#allocation5 + %s577]]
        %s579 = scalar_lea.vmem [#allocation2], %s578
        %v580 = vld [vmem:[%s579] sm:$0x1]
        %s581 = sadd.s32 %s374, 3
        %s582 = sld [smem:[#allocation5 + %s581]]
        %s583 = scalar_lea.vmem [#allocation2], %s582
        %v584 = vld [vmem:[%s583] sm:$0x1]
        %s585 = sadd.s32 %s379, 3
        %s586 = sld [smem:[#allocation5 + %s585]]
        %s587 = scalar_lea.vmem [#allocation2], %s586
        %v588 = vld [vmem:[%s587] sm:$0x1]
        %v590 = vrot.slane %v564, 7
        %v593 = vrot.slane %v568, 6
        %v596 = vrot.slane %v572, 5
        %v599 = vrot.slane %v576, 4
        %v602 = vrot.slane %v580, 3
        %v605 = vrot.slane %v584, 2
        %v608 = vrot.slane %v588, 1
        %v610 = vsel %vm404, %v560, %v590
        %v611 = vsel %vm406, %v610, %v593
        %v612 = vsel %vm408, %v611, %v596
        %v613 = vsel %vm410, %v612, %v599
        %v614 = vsel %vm412, %v613, %v602
        %v615 = vsel %vm414, %v614, %v605
        %v616 = vsel %vm416, %v615, %v608
        %617 = vset.pattern.permute.xlu0 3
        %618 = vperm.xlu0 %617, %v342
        %v619 = vpop.permute.xlu0 %618
        %v621 = vmul.f32 %v619, %v616
        %v622 = vadd.f32 %v556, %v621
        %s623 = sadd.s32 %s344, 4
        %s624 = sld [smem:[#allocation5 + %s623]]
        %s625 = scalar_lea.vmem [#allocation2], %s624
        %v626 = vld [vmem:[%s625] sm:$0x1]
        %s627 = sadd.s32 %s349, 4
        %s628 = sld [smem:[#allocation5 + %s627]]
        %s629 = scalar_lea.vmem [#allocation2], %s628
        %v630 = vld [vmem:[%s629] sm:$0x1]
        %s631 = sadd.s32 %s354, 4
        %s632 = sld [smem:[#allocation5 + %s631]]
        %s633 = scalar_lea.vmem [#allocation2], %s632
        %v634 = vld [vmem:[%s633] sm:$0x1]
        %s635 = sadd.s32 %s359, 4
        %s636 = sld [smem:[#allocation5 + %s635]]
        %s637 = scalar_lea.vmem [#allocation2], %s636
        %v638 = vld [vmem:[%s637] sm:$0x1]
        %s639 = sadd.s32 %s364, 4
        %s640 = sld [smem:[#allocation5 + %s639]]
        %s641 = scalar_lea.vmem [#allocation2], %s640
        %v642 = vld [vmem:[%s641] sm:$0x1]
        %s643 = sadd.s32 %s369, 4
        %s644 = sld [smem:[#allocation5 + %s643]]
        %s645 = scalar_lea.vmem [#allocation2], %s644
        %v646 = vld [vmem:[%s645] sm:$0x1]
        %s647 = sadd.s32 %s374, 4
        %s648 = sld [smem:[#allocation5 + %s647]]
        %s649 = scalar_lea.vmem [#allocation2], %s648
        %v650 = vld [vmem:[%s649] sm:$0x1]
        %s651 = sadd.s32 %s379, 4
        %s652 = sld [smem:[#allocation5 + %s651]]
        %s653 = scalar_lea.vmem [#allocation2], %s652
        %v654 = vld [vmem:[%s653] sm:$0x1]
        %v656 = vrot.slane %v630, 7
        %v659 = vrot.slane %v634, 6
        %v662 = vrot.slane %v638, 5
        %v665 = vrot.slane %v642, 4
        %v668 = vrot.slane %v646, 3
        %v671 = vrot.slane %v650, 2
        %v674 = vrot.slane %v654, 1
        %v676 = vsel %vm404, %v626, %v656
        %v677 = vsel %vm406, %v676, %v659
        %v678 = vsel %vm408, %v677, %v662
        %v679 = vsel %vm410, %v678, %v665
        %v680 = vsel %vm412, %v679, %v668
        %v681 = vsel %vm414, %v680, %v671
        %v682 = vsel %vm416, %v681, %v674
        %683 = vset.pattern.permute.xlu0 4
        %684 = vperm.xlu0 %683, %v342
        %v685 = vpop.permute.xlu0 %684
        %v687 = vmul.f32 %v685, %v682
        %v688 = vadd.f32 %v622, %v687
        %s689 = sadd.s32 %s344, 5
        %s690 = sld [smem:[#allocation5 + %s689]]
        %s691 = scalar_lea.vmem [#allocation2], %s690
        %v692 = vld [vmem:[%s691] sm:$0x1]
        %s693 = sadd.s32 %s349, 5
        %s694 = sld [smem:[#allocation5 + %s693]]
        %s695 = scalar_lea.vmem [#allocation2], %s694
        %v696 = vld [vmem:[%s695] sm:$0x1]
        %s697 = sadd.s32 %s354, 5
        %s698 = sld [smem:[#allocation5 + %s697]]
        %s699 = scalar_lea.vmem [#allocation2], %s698
        %v700 = vld [vmem:[%s699] sm:$0x1]
        %s701 = sadd.s32 %s359, 5
        %s702 = sld [smem:[#allocation5 + %s701]]
        %s703 = scalar_lea.vmem [#allocation2], %s702
        %v704 = vld [vmem:[%s703] sm:$0x1]
        %s705 = sadd.s32 %s364, 5
        %s706 = sld [smem:[#allocation5 + %s705]]
        %s707 = scalar_lea.vmem [#allocation2], %s706
        %v708 = vld [vmem:[%s707] sm:$0x1]
        %s709 = sadd.s32 %s369, 5
        %s710 = sld [smem:[#allocation5 + %s709]]
        %s711 = scalar_lea.vmem [#allocation2], %s710
        %v712 = vld [vmem:[%s711] sm:$0x1]
        %s713 = sadd.s32 %s374, 5
        %s714 = sld [smem:[#allocation5 + %s713]]
        %s715 = scalar_lea.vmem [#allocation2], %s714
        %v716 = vld [vmem:[%s715] sm:$0x1]
        %s717 = sadd.s32 %s379, 5
        %s718 = sld [smem:[#allocation5 + %s717]]
        %s719 = scalar_lea.vmem [#allocation2], %s718
        %v720 = vld [vmem:[%s719] sm:$0x1]
        %v722 = vrot.slane %v696, 7
        %v725 = vrot.slane %v700, 6
        %v728 = vrot.slane %v704, 5
        %v731 = vrot.slane %v708, 4
        %v734 = vrot.slane %v712, 3
        %v737 = vrot.slane %v716, 2
        %v740 = vrot.slane %v720, 1
        %v742 = vsel %vm404, %v692, %v722
        %v743 = vsel %vm406, %v742, %v725
        %v744 = vsel %vm408, %v743, %v728
        %v745 = vsel %vm410, %v744, %v731
        %v746 = vsel %vm412, %v745, %v734
        %v747 = vsel %vm414, %v746, %v737
        %v748 = vsel %vm416, %v747, %v740
        %749 = vset.pattern.permute.xlu0 5
        %750 = vperm.xlu0 %749, %v342
        %v751 = vpop.permute.xlu0 %750
        %v753 = vmul.f32 %v751, %v748
        %v754 = vadd.f32 %v688, %v753
        %s755 = sadd.s32 %s344, 6
        %s756 = sld [smem:[#allocation5 + %s755]]
        %s757 = scalar_lea.vmem [#allocation2], %s756
        %v758 = vld [vmem:[%s757] sm:$0x1]
        %s759 = sadd.s32 %s349, 6
        %s760 = sld [smem:[#allocation5 + %s759]]
        %s761 = scalar_lea.vmem [#allocation2], %s760
        %v762 = vld [vmem:[%s761] sm:$0x1]
        %s763 = sadd.s32 %s354, 6
        %s764 = sld [smem:[#allocation5 + %s763]]
        %s765 = scalar_lea.vmem [#allocation2], %s764
        %v766 = vld [vmem:[%s765] sm:$0x1]
        %s767 = sadd.s32 %s359, 6
        %s768 = sld [smem:[#allocation5 + %s767]]
        %s769 = scalar_lea.vmem [#allocation2], %s768
        %v770 = vld [vmem:[%s769] sm:$0x1]
        %s771 = sadd.s32 %s364, 6
        %s772 = sld [smem:[#allocation5 + %s771]]
        %s773 = scalar_lea.vmem [#allocation2], %s772
        %v774 = vld [vmem:[%s773] sm:$0x1]
        %s775 = sadd.s32 %s369, 6
        %s776 = sld [smem:[#allocation5 + %s775]]
        %s777 = scalar_lea.vmem [#allocation2], %s776
        %v778 = vld [vmem:[%s777] sm:$0x1]
        %s779 = sadd.s32 %s374, 6
        %s780 = sld [smem:[#allocation5 + %s779]]
        %s781 = scalar_lea.vmem [#allocation2], %s780
        %v782 = vld [vmem:[%s781] sm:$0x1]
        %s783 = sadd.s32 %s379, 6
        %s784 = sld [smem:[#allocation5 + %s783]]
        %s785 = scalar_lea.vmem [#allocation2], %s784
        %v786 = vld [vmem:[%s785] sm:$0x1]
        %v788 = vrot.slane %v762, 7
        %v791 = vrot.slane %v766, 6
        %v794 = vrot.slane %v770, 5
        %v797 = vrot.slane %v774, 4
        %v800 = vrot.slane %v778, 3
        %v803 = vrot.slane %v782, 2
        %v806 = vrot.slane %v786, 1
        %v808 = vsel %vm404, %v758, %v788
        %v809 = vsel %vm406, %v808, %v791
        %v810 = vsel %vm408, %v809, %v794
        %v811 = vsel %vm410, %v810, %v797
        %v812 = vsel %vm412, %v811, %v800
        %v813 = vsel %vm414, %v812, %v803
        %v814 = vsel %vm416, %v813, %v806
        %815 = vset.pattern.permute.xlu0 6
        %816 = vperm.xlu0 %815, %v342
        %v817 = vpop.permute.xlu0 %816
        %v819 = vmul.f32 %v817, %v814
        %v820 = vadd.f32 %v754, %v819
        %s821 = sadd.s32 %s344, 7
        %s822 = sld [smem:[#allocation5 + %s821]]
        %s823 = scalar_lea.vmem [#allocation2], %s822
        %v824 = vld [vmem:[%s823] sm:$0x1]
        %s825 = sadd.s32 %s349, 7
        %s826 = sld [smem:[#allocation5 + %s825]]
        %s827 = scalar_lea.vmem [#allocation2], %s826
        %v828 = vld [vmem:[%s827] sm:$0x1]
        %s829 = sadd.s32 %s354, 7
        %s830 = sld [smem:[#allocation5 + %s829]]
        %s831 = scalar_lea.vmem [#allocation2], %s830
        %v832 = vld [vmem:[%s831] sm:$0x1]
        %s833 = sadd.s32 %s359, 7
        %s834 = sld [smem:[#allocation5 + %s833]]
        %s835 = scalar_lea.vmem [#allocation2], %s834
        %v836 = vld [vmem:[%s835] sm:$0x1]
        %s837 = sadd.s32 %s364, 7
        %s838 = sld [smem:[#allocation5 + %s837]]
        %s839 = scalar_lea.vmem [#allocation2], %s838
        %v840 = vld [vmem:[%s839] sm:$0x1]
        %s841 = sadd.s32 %s369, 7
        %s842 = sld [smem:[#allocation5 + %s841]]
        %s843 = scalar_lea.vmem [#allocation2], %s842
        %v844 = vld [vmem:[%s843] sm:$0x1]
        %s845 = sadd.s32 %s374, 7
        %s846 = sld [smem:[#allocation5 + %s845]]
        %s847 = scalar_lea.vmem [#allocation2], %s846
        %v848 = vld [vmem:[%s847] sm:$0x1]
        %s849 = sadd.s32 %s379, 7
        %s850 = sld [smem:[#allocation5 + %s849]]
        %s851 = scalar_lea.vmem [#allocation2], %s850
        %v852 = vld [vmem:[%s851] sm:$0x1]
        %v854 = vrot.slane %v828, 7
        %v857 = vrot.slane %v832, 6
        %v860 = vrot.slane %v836, 5
        %v863 = vrot.slane %v840, 4
        %v866 = vrot.slane %v844, 3
        %v869 = vrot.slane %v848, 2
        %v872 = vrot.slane %v852, 1
        %v874 = vsel %vm404, %v824, %v854
        %v875 = vsel %vm406, %v874, %v857
        %v876 = vsel %vm408, %v875, %v860
        %v877 = vsel %vm410, %v876, %v863
        %v878 = vsel %vm412, %v877, %v866
        %v879 = vsel %vm414, %v878, %v869
        %v880 = vsel %vm416, %v879, %v872
        %881 = vset.pattern.permute.xlu0 7
        %882 = vperm.xlu0 %881, %v342
        %v883 = vpop.permute.xlu0 %882
        %v885 = vmul.f32 %v883, %v880
        %v886 = vadd.f32 %v820, %v885
        %v887 = vmax.f32 %v886, 0.0
        %888 = vst [vmem:[#allocation3] sm:$0xff] %v887
        %v889 = vld [vmem:[#allocation3] sm:$0xff]
        %v890 = vpack.c.bf16 %v889, %v889
        %v891 = vld [vmem:[%s5] sm:$0xf]
        %v892 = vld [vmem:[%s5 + $0x4] sm:$0xf]
        %v893 = vld [vmem:[%s5 + $0x8] sm:$0xf]
        %v894 = vld [vmem:[%s5 + $0xc] sm:$0xf]
        %v895 = vld [vmem:[%s5 + $0x10] sm:$0xf]
        %v896 = vld [vmem:[%s5 + $0x14] sm:$0xf]
        %v897 = vld [vmem:[%s5 + $0x18] sm:$0xf]
        %v898 = vld [vmem:[%s5 + $0x1c] sm:$0xf]
        %v899 = vld [vmem:[%s5 + $0x20] sm:$0xf]
        %v900 = vld [vmem:[%s5 + $0x24] sm:$0xf]
        %v901 = vld [vmem:[%s5 + $0x28] sm:$0xf]
        %v902 = vld [vmem:[%s5 + $0x2c] sm:$0xf]
        %v903 = vld [vmem:[%s5 + $0x30] sm:$0xf]
        %v904 = vld [vmem:[%s5 + $0x34] sm:$0xf]
        %v905 = vld [vmem:[%s5 + $0x38] sm:$0xf]
        %v906 = vld [vmem:[%s5 + $0x3c] sm:$0xf]
        %v923 = vunpack.c.l.b16 %v891
        %v924 = vunpack.c.l.b16 %v892
        %v925 = vunpack.c.l.b16 %v893
        %v926 = vunpack.c.l.b16 %v894
        %v927 = vunpack.c.l.b16 %v895
        %v928 = vunpack.c.l.b16 %v896
        %v929 = vunpack.c.l.b16 %v897
        %v930 = vunpack.c.l.b16 %v898
        %v931 = vunpack.c.l.b16 %v899
        %v932 = vunpack.c.l.b16 %v900
        %v933 = vunpack.c.l.b16 %v901
        %v934 = vunpack.c.l.b16 %v902
        %v935 = vunpack.c.l.b16 %v903
        %v936 = vunpack.c.l.b16 %v904
        %v937 = vunpack.c.l.b16 %v905
        %v938 = vunpack.c.l.b16 %v906
        %v939 = vpack.c.b16 %v924, %v923
        %v940 = vpack.c.b16 %v926, %v925
        %v941 = vpack.c.b16 %v928, %v927
        %v942 = vpack.c.b16 %v930, %v929
        %v943 = vpack.c.b16 %v932, %v931
        %v944 = vpack.c.b16 %v934, %v933
        %v945 = vpack.c.b16 %v936, %v935
        %v946 = vpack.c.b16 %v938, %v937
        %955 = vmatprep.subr.bf16.mxu0 0
        %956 = vmatpush1.bf16.msra.mxu0 %v939
        %957 = vmatprep.subr.bf16.mxu0 0
        %958 = vmatpush1.bf16.msra.mxu0 %v940
        %959 = vmatprep.subr.bf16.mxu0 0
        %960 = vmatpush1.bf16.msra.mxu0 %v941
        %961 = vmatprep.subr.bf16.mxu0 0
        %962 = vmatpush1.bf16.msra.mxu0 %v942
        %963 = vmatprep.subr.bf16.mxu0 0
        %964 = vmatpush1.bf16.msra.mxu0 %v943
        %965 = vmatprep.subr.bf16.mxu0 0
        %966 = vmatpush1.bf16.msra.mxu0 %v944
        %967 = vmatprep.subr.bf16.mxu0 0
        %968 = vmatpush1.bf16.msra.mxu0 %v945
        %969 = vmatprep.subr.bf16.mxu0 0
        %970 = vmatpush1.bf16.msra.mxu0 %v946
        %971 = vmatprep.subr.bf16.mxu0 0
        %972 = vmatpush1.bf16.msra.mxu0 0
        %973 = vmatprep.subr.bf16.mxu0 0
        %974 = vmatpush1.bf16.msra.mxu0 0
        %975 = vmatprep.subr.bf16.mxu0 0
        %976 = vmatpush1.bf16.msra.mxu0 0
        %977 = vmatprep.subr.bf16.mxu0 0
        %978 = vmatpush1.bf16.msra.mxu0 0
        %979 = vmatprep.subr.bf16.mxu0 0
        %980 = vmatpush1.bf16.msra.mxu0 0
        %981 = vmatprep.subr.bf16.mxu0 0
        %982 = vmatpush1.bf16.msra.mxu0 0
        %983 = vmatprep.subr.bf16.mxu0 0
        %984 = vmatpush1.bf16.msra.mxu0 0
        %985 = vmatprep.subr.bf16.mxu0 0
        %986 = vmatpush1.bf16.msra.mxu0 0
        %987 = vmatprep.mubr.bf16.mxu0 0
        %988 = vmatmul.mubr.bf16.gmra.mrb[0].mxu0 %v890
        %v989 = vpop.f32.mrb[0].mxu0
        %v990 = vadd.f32 0.0, %v989
        %v991 = vpop.f32.mrb[0].mxu0
        %v992 = vpop.f32.mrb[0].mxu0
        %v993 = vpop.f32.mrb[0].mxu0
        %994 = vdwg.mxu0
        %995 = vst [vmem:[%s261] sm:$0xff] %v990
        %p996 = scmp.lt.s32.totalorder %s19, 1
        %s997 = scalar_select %p996, %s19, 1
        %s998 = smul.addr %s997, 8
        %s999 = scalar_lea.vmem %s6, %s998
        // Predicated region
        $region53: #{hgnn_layer_forward.2} parent=43 // pred_check
          %p1000 = pneg %p168
        $region54: #{hgnn_layer_forward.2} parent=43 // pred_check_branch
          %1002 = sbr.rel (%p1000) target = $region56
        $region55: #{hgnn_layer_forward.2} parent=43 // pred_region
          _
        $region56: #{hgnn_layer_forward.2} parent=43 // pred_fallthru
          _
      $region44: #{hgnn_layer_forward.2} parent=5 // pred_fallthru
        _
      %p1003 = scmp.le.s32.totalorder 2, %s14
      // Predicated region
      $region57: #{hgnn_layer_forward.2} parent=5 // pred_check
        %p1004 = pneg %p1003
      $region58: #{hgnn_layer_forward.2} parent=5 // pred_check_branch
        %1006 = sbr.rel (%p1004) target = $region60
      $region59: #{hgnn_layer_forward.2} parent=5 // pred_region
        %s1007 = ssub.s32 %s14, 2
        // Predicated region
        $region61: #{hgnn_layer_forward.2} parent=59 // pred_check
          %p1008 = pneg %p174
        $region62: #{hgnn_layer_forward.2} parent=59 // pred_check_branch
          %1010 = sbr.rel (%p1008) target = $region64
        $region63: #{hgnn_layer_forward.2} parent=59 // pred_region
          %p1011 = scmp.lt.s32.totalorder %s20, 1
          %s1012 = scalar_select %p1011, %s20, 1
          %s1013 = smul.addr %s1012, 8
          %s1014 = scalar_lea.vmem %s6, %s1013
        $region64: #{hgnn_layer_forward.2} parent=59 // pred_fallthru
          _
      $region60: #{hgnn_layer_forward.2} parent=5 // pred_fallthru
        _
    $region6: #{hgnn_layer_forward.2} parent=1 // loop_footer
      %s18 = sadd.s32 1, %s14
    $region7: #{hgnn_layer_forward.2} parent=1 // loop_footer_branch
      %13 = sbr.rel target = $region3
    $region8: #{hgnn_layer_forward.2} parent=1 // loop_exit
      _
    %1015 = vsyncpa [#allocation6], 1
    %s1016 = scalar_lea.sflag [#allocation6], 1
    %1017 = vsyncpa %s1016, 1

</llo_original>
